<compile_context>
chip_gen: v7x
topology: tpu7x:2x2x1
jax: 0.10.0
libtpu: 0.0.40
codegen_flags: <defaults>
</compile_context>

<pallas_src>
import jax
import jax.numpy as jnp
from jax.experimental import pallas as pl
from jax.experimental.pallas import tpu as pltpu

_LANES = 128


def _round_up(x, m):
    return ((x + m - 1) // m) * m


def _dqn_mlp_kernel(
    x1_ref, x2_ref,
    w1a_ref, b1a_ref, w1b_ref, b1b_ref,      # path 1
    w2a_ref, b2a_ref, w2b_ref, b2b_ref,      # path 2
    w3a_ref, w3b_ref, b3_ref,                # final layer 1 (split for concat)
    w4_ref, b4_ref,                          # final layer 2 (lane-padded)
    out_ref,
):
    f32 = jnp.float32
    bf16 = jnp.bfloat16
    relu = lambda v: jnp.maximum(v, 0.0)

    # --- path 1: bf16 inputs/weights, f32 accumulation ---
    h1 = relu(jnp.dot(x1_ref[...], w1a_ref[...], preferred_element_type=f32)
              + b1a_ref[...])
    h1 = relu(jnp.dot(h1.astype(bf16), w1b_ref[...], preferred_element_type=f32)
              + b1b_ref[...])

    # --- path 2 ---
    h2 = relu(jnp.dot(x2_ref[...], w2a_ref[...], preferred_element_type=f32)
              + b2a_ref[...])
    h2 = relu(jnp.dot(h2.astype(bf16), w2b_ref[...], preferred_element_type=f32)
              + b2b_ref[...])

    # --- final layers (concat expressed as split-weight matmul sum) ---
    h3 = relu(jnp.dot(h1.astype(bf16), w3a_ref[...], preferred_element_type=f32)
              + jnp.dot(h2.astype(bf16), w3b_ref[...], preferred_element_type=f32)
              + b3_ref[...])

    out_ref[...] = (jnp.dot(h3.astype(bf16), w4_ref[...], preferred_element_type=f32)
                    + b4_ref[...])


def dqn_mlp_forward(obs1, obs2, params, num_actions, *, tm_max=256):
    """obs1: (B, C1, H1, W1), obs2: (B, C2, H2, W2). Returns (B, num_actions) f32."""
    B = obs1.shape[0]
    x1 = obs1.reshape(B, -1).astype(jnp.bfloat16)
    x2 = obs2.reshape(B, -1).astype(jnp.bfloat16)
    D1, D2 = x1.shape[1], x2.shape[1]
    H = params["w1b"].shape[0]
    n_pad = params["w4"].shape[1]            # lane-padded action dim (>=128)

    # Batch tile: multiple of 8 sublanes, capped so the kernel fits v7x VMEM.
    tm = min(tm_max, _round_up(B, 8))
    B_pad = _round_up(B, tm)
    if B_pad != B:
        x1 = jnp.pad(x1, ((0, B_pad - B), (0, 0)))
        x2 = jnp.pad(x2, ((0, B_pad - B), (0, 0)))
    grid = (B_pad // tm,)

    weight_args = (
        params["w1a"], params["b1a"], params["w1b"], params["b1b"],
        params["w2a"], params["b2a"], params["w2b"], params["b2b"],
        params["w3a"], params["w3b"], params["b3"],
        params["w4"], params["b4"],
    )
    args = (x1, x2) + weight_args

    in_specs = [
        pl.BlockSpec((tm, D1), lambda i: (i, 0)),
        pl.BlockSpec((tm, D2), lambda i: (i, 0)),
    ] + [
        # Whole-array blocks with a constant index map: weights/biases stay
        # VMEM-resident across the batch grid (no re-fetch per tile).
        pl.BlockSpec(a.shape, lambda i: (0, 0)) for a in weight_args
    ]
    out_specs = pl.BlockSpec((tm, n_pad), lambda i: (i, 0))

    flops = 2 * B_pad * (D1 * H + D2 * H + 4 * H * H + H * n_pad)
    bytes_accessed = (sum(int(a.size) * a.dtype.itemsize for a in args)
                      + B_pad * n_pad * 4)

    out = pl.pallas_call(
        _dqn_mlp_kernel,
        out_shape=jax.ShapeDtypeStruct((B_pad, n_pad), jnp.float32),
        grid=grid,
        in_specs=in_specs,
        out_specs=out_specs,
        compiler_params=pltpu.CompilerParams(
            dimension_semantics=("parallel",),
            vmem_limit_bytes=16 << 20,        # actual footprint ~8 MiB at tm=256
        ),
        cost_estimate=pl.CostEstimate(
            flops=flops, transcendentals=0, bytes_accessed=bytes_accessed),
    )(*args)

    return out[:B, :num_actions]


def _xavier_normal(key, fan_in, fan_out, dtype=jnp.bfloat16):
    # Matches torch.nn.init.xavier_normal_(gain=1): std = sqrt(2/(fan_in+fan_out))
    std = (2.0 / (fan_in + fan_out)) ** 0.5
    w = std * jax.random.normal(key, (fan_in, fan_out), dtype=jnp.float32)
    return w.astype(dtype)


def init_params(key, d1, d2, num_actions, hidden=512):
    ks = jax.random.split(key, 6)
    zf = lambda n: jnp.zeros((1, n), dtype=jnp.float32)   # biases kept f32 (tiny)
    n_pad = _round_up(max(num_actions, _LANES), _LANES)

    # Final concat layer: (2*hidden, hidden) weight split into two halves.
    w3_full = _xavier_normal(ks[4], 2 * hidden, hidden)
    # Output layer: xavier with the TRUE fan_out, then zero-pad to 128 lanes.
    w4 = _xavier_normal(ks[5], hidden, num_actions)
    w4 = jnp.pad(w4, ((0, 0), (0, n_pad - num_actions)))

    return {
        "w1a": _xavier_normal(ks[0], d1, hidden),     "b1a": zf(hidden),
        "w1b": _xavier_normal(ks[1], hidden, hidden), "b1b": zf(hidden),
        "w2a": _xavier_normal(ks[2], d2, hidden),     "b2a": zf(hidden),
        "w2b": _xavier_normal(ks[3], hidden, hidden), "b2b": zf(hidden),
        "w3a": w3_full[:hidden, :],
        "w3b": w3_full[hidden:, :],
        "b3":  zf(hidden),
        "w4":  w4,
        "b4":  zf(n_pad),
    }


def _reference(obs1, obs2, p, num_actions):
    """Pure-JAX reference with the same bf16-weights / f32-accumulation numerics."""
    f32, bf16 = jnp.float32, jnp.bfloat16
    B = obs1.shape[0]
    x1 = obs1.reshape(B, -1).astype(bf16)
    x2 = obs2.reshape(B, -1).astype(bf16)
    relu = lambda v: jnp.maximum(v, 0.0)
    dot = lambda a, b: jnp.dot(a.astype(bf16), b, preferred_element_type=f32)

    h1 = relu(dot(x1, p["w1a"]) + p["b1a"])
    h1 = relu(dot(h1, p["w1b"]) + p["b1b"])
    h2 = relu(dot(x2, p["w2a"]) + p["b2a"])
    h2 = relu(dot(h2, p["w2b"]) + p["b2b"])
    h3 = relu(dot(h1, p["w3a"]) + dot(h2, p["w3b"]) + p["b3"])
    out = dot(h3, p["w4"]) + p["b4"]
    return out[:, :num_actions]


if __name__ == "__main__":
    key = jax.random.PRNGKey(0)
    k_o1, k_o2, k_p = jax.random.split(key, 3)

    # Small synthetic obs shapes consistent with the module's 3-D obs specs.
    B = 8
    card_obs_shape = (4, 4, 8)     # -> input_dim1 = 128
    action_obs_shape = (2, 4, 8)   # -> input_dim2 = 64
    num_actions = 16

    d1 = card_obs_shape[0] * card_obs_shape[1] * card_obs_shape[2]
    d2 = action_obs_shape[0] * action_obs_shape[1] * action_obs_shape[2]

    obs1 = jax.random.normal(k_o1, (B,) + card_obs_shape, dtype=jnp.float32)
    obs2 = jax.random.normal(k_o2, (B,) + action_obs_shape, dtype=jnp.float32)
    params = init_params(k_p, d1, d2, num_actions)

    out = dqn_mlp_forward(obs1, obs2, params, num_actions)
    out = jax.block_until_ready(out)

    ref = _reference(obs1, obs2, params, num_actions)
    assert out.shape == (B, num_actions)
    assert jnp.allclose(out, ref, atol=5e-3, rtol=5e-3), "mismatch vs reference"

    # TODO(synk): Adam optimizer / MSELoss from the PyTorch module are training-side
    # and not part of the forward pass; not implemented here.
    print("KERNEL_OK")
</pallas_src>

<mosaic_0001>
module attributes {stable_mosaic.version = 11 : i64} {
  func.func @_dqn_mlp_kernel(%arg0: i32, %arg1: memref<8x128xbf16, #tpu.memory_space<vmem>>, %arg2: memref<8x64xbf16, #tpu.memory_space<vmem>>, %arg3: memref<128x512xbf16, #tpu.memory_space<vmem>>, %arg4: memref<1x512xf32, #tpu.memory_space<vmem>>, %arg5: memref<512x512xbf16, #tpu.memory_space<vmem>>, %arg6: memref<1x512xf32, #tpu.memory_space<vmem>>, %arg7: memref<64x512xbf16, #tpu.memory_space<vmem>>, %arg8: memref<1x512xf32, #tpu.memory_space<vmem>>, %arg9: memref<512x512xbf16, #tpu.memory_space<vmem>>, %arg10: memref<1x512xf32, #tpu.memory_space<vmem>>, %arg11: memref<512x512xbf16, #tpu.memory_space<vmem>>, %arg12: memref<512x512xbf16, #tpu.memory_space<vmem>>, %arg13: memref<1x512xf32, #tpu.memory_space<vmem>>, %arg14: memref<512x128xbf16, #tpu.memory_space<vmem>>, %arg15: memref<1x128xf32, #tpu.memory_space<vmem>>, %arg16: memref<8x128xf32, #tpu.memory_space<vmem>>) attributes {dimension_semantics = [#tpu.dimension_semantics<parallel>], iteration_bounds = array<i64: 1>, scalar_prefetch = 0 : i64, scratch_operands = 0 : i64, tpu.core_type = #tpu.core_type<tc>, window_params = [{transform_indices = @transform_0, window_bounds = array<i64: 8, 128>}, {transform_indices = @transform_1, window_bounds = array<i64: 8, 64>}, {pipeline_mode = #tpu.pipeline_mode<synchronous>, transform_indices = @transform_2, window_bounds = array<i64: 128, 512>}, {pipeline_mode = #tpu.pipeline_mode<synchronous>, transform_indices = @transform_3, window_bounds = array<i64: 1, 512>}, {pipeline_mode = #tpu.pipeline_mode<synchronous>, transform_indices = @transform_4, window_bounds = array<i64: 512, 512>}, {pipeline_mode = #tpu.pipeline_mode<synchronous>, transform_indices = @transform_5, window_bounds = array<i64: 1, 512>}, {pipeline_mode = #tpu.pipeline_mode<synchronous>, transform_indices = @transform_6, window_bounds = array<i64: 64, 512>}, {pipeline_mode = #tpu.pipeline_mode<synchronous>, transform_indices = @transform_7, window_bounds = array<i64: 1, 512>}, {pipeline_mode = #tpu.pipeline_mode<synchronous>, transform_indices = @transform_8, window_bounds = array<i64: 512, 512>}, {pipeline_mode = #tpu.pipeline_mode<synchronous>, transform_indices = @transform_9, window_bounds = array<i64: 1, 512>}, {pipeline_mode = #tpu.pipeline_mode<synchronous>, transform_indices = @transform_10, window_bounds = array<i64: 512, 512>}, {pipeline_mode = #tpu.pipeline_mode<synchronous>, transform_indices = @transform_11, window_bounds = array<i64: 512, 512>}, {pipeline_mode = #tpu.pipeline_mode<synchronous>, transform_indices = @transform_12, window_bounds = array<i64: 1, 512>}, {pipeline_mode = #tpu.pipeline_mode<synchronous>, transform_indices = @transform_13, window_bounds = array<i64: 512, 128>}, {pipeline_mode = #tpu.pipeline_mode<synchronous>, transform_indices = @transform_14, window_bounds = array<i64: 1, 128>}, {transform_indices = @transform_15, window_bounds = array<i64: 8, 128>}]} {
    %c0 = arith.constant 0 : index
    %c0_0 = arith.constant 0 : index
    %0 = vector.load %arg1[%c0, %c0_0] : memref<8x128xbf16, #tpu.memory_space<vmem>>, vector<8x128xbf16>
    %c0_1 = arith.constant 0 : index
    %c0_2 = arith.constant 0 : index
    %1 = vector.load %arg3[%c0_1, %c0_2] : memref<128x512xbf16, #tpu.memory_space<vmem>>, vector<128x512xbf16>
    %cst = arith.constant dense<0.000000e+00> : vector<8x512xf32>
    %2 = tpu.matmul %0, %1, %cst {dimension_numbers = #tpu.dot_dimension_numbers<[1], [0], [0], [1], [0, 0, 1, 1], [], []>} : vector<8x128xbf16>, vector<128x512xbf16>, vector<8x512xf32> -> vector<8x512xf32>
    %c0_3 = arith.constant 0 : index
    %c0_4 = arith.constant 0 : index
    %3 = vector.load %arg4[%c0_3, %c0_4] : memref<1x512xf32, #tpu.memory_space<vmem>>, vector<1x512xf32>
    %4 = vector.broadcast %3 : vector<1x512xf32> to vector<8x512xf32>
    %5 = arith.addf %2, %4 : vector<8x512xf32>
    %cst_5 = arith.constant 0.000000e+00 : f32
    %6 = vector.broadcast %cst_5 : f32 to vector<8x512xf32>
    %7 = arith.maximumf %5, %6 : vector<8x512xf32>
    %8 = arith.truncf %7 : vector<8x512xf32> to vector<8x512xbf16>
    %c0_6 = arith.constant 0 : index
    %c0_7 = arith.constant 0 : index
    %9 = vector.load %arg5[%c0_6, %c0_7] : memref<512x512xbf16, #tpu.memory_space<vmem>>, vector<512x512xbf16>
    %cst_8 = arith.constant dense<0.000000e+00> : vector<8x512xf32>
    %10 = tpu.matmul %8, %9, %cst_8 {dimension_numbers = #tpu.dot_dimension_numbers<[1], [0], [0], [1], [0, 0, 1, 1], [], []>} : vector<8x512xbf16>, vector<512x512xbf16>, vector<8x512xf32> -> vector<8x512xf32>
    %c0_9 = arith.constant 0 : index
    %c0_10 = arith.constant 0 : index
    %11 = vector.load %arg6[%c0_9, %c0_10] : memref<1x512xf32, #tpu.memory_space<vmem>>, vector<1x512xf32>
    %12 = vector.broadcast %11 : vector<1x512xf32> to vector<8x512xf32>
    %13 = arith.addf %10, %12 : vector<8x512xf32>
    %cst_11 = arith.constant 0.000000e+00 : f32
    %14 = vector.broadcast %cst_11 : f32 to vector<8x512xf32>
    %15 = arith.maximumf %13, %14 : vector<8x512xf32>
    %c0_12 = arith.constant 0 : index
    %c0_13 = arith.constant 0 : index
    %16 = vector.load %arg2[%c0_12, %c0_13] : memref<8x64xbf16, #tpu.memory_space<vmem>>, vector<8x64xbf16>
    %c0_14 = arith.constant 0 : index
    %c0_15 = arith.constant 0 : index
    %17 = vector.load %arg7[%c0_14, %c0_15] : memref<64x512xbf16, #tpu.memory_space<vmem>>, vector<64x512xbf16>
    %cst_16 = arith.constant dense<0.000000e+00> : vector<8x512xf32>
    %18 = tpu.matmul %16, %17, %cst_16 {dimension_numbers = #tpu.dot_dimension_numbers<[1], [0], [0], [1], [0, 0, 1, 1], [], []>} : vector<8x64xbf16>, vector<64x512xbf16>, vector<8x512xf32> -> vector<8x512xf32>
    %c0_17 = arith.constant 0 : index
    %c0_18 = arith.constant 0 : index
    %19 = vector.load %arg8[%c0_17, %c0_18] : memref<1x512xf32, #tpu.memory_space<vmem>>, vector<1x512xf32>
    %20 = vector.broadcast %19 : vector<1x512xf32> to vector<8x512xf32>
    %21 = arith.addf %18, %20 : vector<8x512xf32>
    %cst_19 = arith.constant 0.000000e+00 : f32
    %22 = vector.broadcast %cst_19 : f32 to vector<8x512xf32>
    %23 = arith.maximumf %21, %22 : vector<8x512xf32>
    %24 = arith.truncf %23 : vector<8x512xf32> to vector<8x512xbf16>
    %c0_20 = arith.constant 0 : index
    %c0_21 = arith.constant 0 : index
    %25 = vector.load %arg9[%c0_20, %c0_21] : memref<512x512xbf16, #tpu.memory_space<vmem>>, vector<512x512xbf16>
    %cst_22 = arith.constant dense<0.000000e+00> : vector<8x512xf32>
    %26 = tpu.matmul %24, %25, %cst_22 {dimension_numbers = #tpu.dot_dimension_numbers<[1], [0], [0], [1], [0, 0, 1, 1], [], []>} : vector<8x512xbf16>, vector<512x512xbf16>, vector<8x512xf32> -> vector<8x512xf32>
    %c0_23 = arith.constant 0 : index
    %c0_24 = arith.constant 0 : index
    %27 = vector.load %arg10[%c0_23, %c0_24] : memref<1x512xf32, #tpu.memory_space<vmem>>, vector<1x512xf32>
    %28 = vector.broadcast %27 : vector<1x512xf32> to vector<8x512xf32>
    %29 = arith.addf %26, %28 : vector<8x512xf32>
    %cst_25 = arith.constant 0.000000e+00 : f32
    %30 = vector.broadcast %cst_25 : f32 to vector<8x512xf32>
    %31 = arith.maximumf %29, %30 : vector<8x512xf32>
    %32 = arith.truncf %15 : vector<8x512xf32> to vector<8x512xbf16>
    %c0_26 = arith.constant 0 : index
    %c0_27 = arith.constant 0 : index
    %33 = vector.load %arg11[%c0_26, %c0_27] : memref<512x512xbf16, #tpu.memory_space<vmem>>, vector<512x512xbf16>
    %cst_28 = arith.constant dense<0.000000e+00> : vector<8x512xf32>
    %34 = tpu.matmul %32, %33, %cst_28 {dimension_numbers = #tpu.dot_dimension_numbers<[1], [0], [0], [1], [0, 0, 1, 1], [], []>} : vector<8x512xbf16>, vector<512x512xbf16>, vector<8x512xf32> -> vector<8x512xf32>
    %35 = arith.truncf %31 : vector<8x512xf32> to vector<8x512xbf16>
    %c0_29 = arith.constant 0 : index
    %c0_30 = arith.constant 0 : index
    %36 = vector.load %arg12[%c0_29, %c0_30] : memref<512x512xbf16, #tpu.memory_space<vmem>>, vector<512x512xbf16>
    %cst_31 = arith.constant dense<0.000000e+00> : vector<8x512xf32>
    %37 = tpu.matmul %35, %36, %cst_31 {dimension_numbers = #tpu.dot_dimension_numbers<[1], [0], [0], [1], [0, 0, 1, 1], [], []>} : vector<8x512xbf16>, vector<512x512xbf16>, vector<8x512xf32> -> vector<8x512xf32>
    %38 = arith.addf %34, %37 : vector<8x512xf32>
    %c0_32 = arith.constant 0 : index
    %c0_33 = arith.constant 0 : index
    %39 = vector.load %arg13[%c0_32, %c0_33] : memref<1x512xf32, #tpu.memory_space<vmem>>, vector<1x512xf32>
    %40 = vector.broadcast %39 : vector<1x512xf32> to vector<8x512xf32>
    %41 = arith.addf %38, %40 : vector<8x512xf32>
    %cst_34 = arith.constant 0.000000e+00 : f32
    %42 = vector.broadcast %cst_34 : f32 to vector<8x512xf32>
    %43 = arith.maximumf %41, %42 : vector<8x512xf32>
    %44 = arith.truncf %43 : vector<8x512xf32> to vector<8x512xbf16>
    %c0_35 = arith.constant 0 : index
    %c0_36 = arith.constant 0 : index
    %45 = vector.load %arg14[%c0_35, %c0_36] : memref<512x128xbf16, #tpu.memory_space<vmem>>, vector<512x128xbf16>
    %cst_37 = arith.constant dense<0.000000e+00> : vector<8x128xf32>
    %46 = tpu.matmul %44, %45, %cst_37 {dimension_numbers = #tpu.dot_dimension_numbers<[1], [0], [0], [1], [0, 0, 1, 1], [], []>} : vector<8x512xbf16>, vector<512x128xbf16>, vector<8x128xf32> -> vector<8x128xf32>
    %c0_38 = arith.constant 0 : index
    %c0_39 = arith.constant 0 : index
    %47 = vector.load %arg15[%c0_38, %c0_39] : memref<1x128xf32, #tpu.memory_space<vmem>>, vector<1x128xf32>
    %48 = vector.broadcast %47 : vector<1x128xf32> to vector<8x128xf32>
    %49 = arith.addf %46, %48 : vector<8x128xf32>
    %c0_40 = arith.constant 0 : index
    %c0_41 = arith.constant 0 : index
    %50 = vector.load %arg16[%c0_40, %c0_41] : memref<8x128xf32, #tpu.memory_space<vmem>>, vector<8x128xf32>
    tpu.vector_store %arg16[%c0_40, %c0_41], %49 {strides = array<i32>} : memref<8x128xf32, #tpu.memory_space<vmem>>, vector<8x128xf32>,
    return
  }
  func.func @transform_0(%arg0: i32) -> (i32, i32) {
    %c0_i32 = arith.constant 0 : i32
    %c0_i32_0 = arith.constant 0 : i32
    return %arg0, %c0_i32 : i32, i32
  }
  func.func @transform_1(%arg0: i32) -> (i32, i32) {
    %c0_i32 = arith.constant 0 : i32
    %c0_i32_0 = arith.constant 0 : i32
    return %arg0, %c0_i32 : i32, i32
  }
  func.func @transform_2(%arg0: i32) -> (i32, i32) {
    %c0_i32 = arith.constant 0 : i32
    %c0_i32_0 = arith.constant 0 : i32
    %c0_i32_1 = arith.constant 0 : i32
    return %c0_i32, %c0_i32_0 : i32, i32
  }
  func.func @transform_3(%arg0: i32) -> (i32, i32) {
    %c0_i32 = arith.constant 0 : i32
    %c0_i32_0 = arith.constant 0 : i32
    %c0_i32_1 = arith.constant 0 : i32
    return %c0_i32, %c0_i32_0 : i32, i32
  }
  func.func @transform_4(%arg0: i32) -> (i32, i32) {
    %c0_i32 = arith.constant 0 : i32
    %c0_i32_0 = arith.constant 0 : i32
    %c0_i32_1 = arith.constant 0 : i32
    return %c0_i32, %c0_i32_0 : i32, i32
  }
  func.func @transform_5(%arg0: i32) -> (i32, i32) {
    %c0_i32 = arith.constant 0 : i32
    %c0_i32_0 = arith.constant 0 : i32
    %c0_i32_1 = arith.constant 0 : i32
    return %c0_i32, %c0_i32_0 : i32, i32
  }
  func.func @transform_6(%arg0: i32) -> (i32, i32) {
    %c0_i32 = arith.constant 0 : i32
    %c0_i32_0 = arith.constant 0 : i32
    %c0_i32_1 = arith.constant 0 : i32
    return %c0_i32, %c0_i32_0 : i32, i32
  }
  func.func @transform_7(%arg0: i32) -> (i32, i32) {
    %c0_i32 = arith.constant 0 : i32
    %c0_i32_0 = arith.constant 0 : i32
    %c0_i32_1 = arith.constant 0 : i32
    return %c0_i32, %c0_i32_0 : i32, i32
  }
  func.func @transform_8(%arg0: i32) -> (i32, i32) {
    %c0_i32 = arith.constant 0 : i32
    %c0_i32_0 = arith.constant 0 : i32
    %c0_i32_1 = arith.constant 0 : i32
    return %c0_i32, %c0_i32_0 : i32, i32
  }
  func.func @transform_9(%arg0: i32) -> (i32, i32) {
    %c0_i32 = arith.constant 0 : i32
    %c0_i32_0 = arith.constant 0 : i32
    %c0_i32_1 = arith.constant 0 : i32
    return %c0_i32, %c0_i32_0 : i32, i32
  }
  func.func @transform_10(%arg0: i32) -> (i32, i32) {
    %c0_i32 = arith.constant 0 : i32
    %c0_i32_0 = arith.constant 0 : i32
    %c0_i32_1 = arith.constant 0 : i32
    return %c0_i32, %c0_i32_0 : i32, i32
  }
  func.func @transform_11(%arg0: i32) -> (i32, i32) {
    %c0_i32 = arith.constant 0 : i32
    %c0_i32_0 = arith.constant 0 : i32
    %c0_i32_1 = arith.constant 0 : i32
    return %c0_i32, %c0_i32_0 : i32, i32
  }
  func.func @transform_12(%arg0: i32) -> (i32, i32) {
    %c0_i32 = arith.constant 0 : i32
    %c0_i32_0 = arith.constant 0 : i32
    %c0_i32_1 = arith.constant 0 : i32
    return %c0_i32, %c0_i32_0 : i32, i32
  }
  func.func @transform_13(%arg0: i32) -> (i32, i32) {
    %c0_i32 = arith.constant 0 : i32
    %c0_i32_0 = arith.constant 0 : i32
    %c0_i32_1 = arith.constant 0 : i32
    return %c0_i32, %c0_i32_0 : i32, i32
  }
  func.func @transform_14(%arg0: i32) -> (i32, i32) {
    %c0_i32 = arith.constant 0 : i32
    %c0_i32_0 = arith.constant 0 : i32
    %c0_i32_1 = arith.constant 0 : i32
    return %c0_i32, %c0_i32_0 : i32, i32
  }
  func.func @transform_15(%arg0: i32) -> (i32, i32) {
    %c0_i32 = arith.constant 0 : i32
    %c0_i32_0 = arith.constant 0 : i32
    return %arg0, %c0_i32 : i32, i32
  }
}

</mosaic_0001>

<llo_original>
// kernel: tpu_custom_call.1
$region0: #{tpu_custom_call.1}
  #allocation0 [shape = 'u32[]', space=smem, size = 0x4, offset = 0x4, fixed_abs, tag = 'smem constant byte address 0x4 - core index']
  #allocation1 [shape = 'u32[144,128]{1,0:T(1,128)}', space=vmem, size = 0x12000, scoped, tag = 'internal scratch']
  %s0 = inlined_call_operand.hbm [shape: bf16[8,128], index: 0, kind: input, shape index: {}]
  %s1 = inlined_call_operand.hbm [shape: bf16[8,64], index: 1, kind: input, shape index: {}]
  %s2 = inlined_call_operand.hbm [shape: bf16[128,512], index: 2, kind: input, shape index: {}]
  %s3 = inlined_call_operand.vmem [shape: f32[1,512], index: 3, kind: input, shape index: {}]
  %s4 = inlined_call_operand.hbm [shape: bf16[512,512], index: 4, kind: input, shape index: {}]
  %s5 = inlined_call_operand.vmem [shape: f32[1,512], index: 5, kind: input, shape index: {}]
  %s6 = inlined_call_operand.hbm [shape: bf16[64,512], index: 6, kind: input, shape index: {}]
  %s7 = inlined_call_operand.vmem [shape: f32[1,512], index: 7, kind: input, shape index: {}]
  %s8 = inlined_call_operand.hbm [shape: bf16[512,512], index: 8, kind: input, shape index: {}]
  %s9 = inlined_call_operand.vmem [shape: f32[1,512], index: 9, kind: input, shape index: {}]
  %s10 = inlined_call_operand.hbm [shape: bf16[512,512], index: 10, kind: input, shape index: {}]
  %s11 = inlined_call_operand.hbm [shape: bf16[512,512], index: 11, kind: input, shape index: {}]
  %s12 = inlined_call_operand.vmem [shape: f32[1,512], index: 12, kind: input, shape index: {}]
  %s13 = inlined_call_operand.hbm [shape: bf16[512,128], index: 13, kind: input, shape index: {}]
  %s14 = inlined_call_operand.vmem [shape: f32[1,128], index: 14, kind: input, shape index: {}]
  %s15 = inlined_call_operand.hbm [shape: f32[8,128], index: 15, kind: output, shape index: {}]
  %s16 = sld [smem:[#allocation0]]
  $region106: #{tpu_custom_call.1} parent=0
    _
  %s18 = ssub.s32 1, %s16
  %s19 = scalar_select 0, %s18, %s16
  $region1: #{tpu_custom_call.1} parent=0
    #allocation2 [shape = 'u8[2048]{0}', space=vmem, size = 0x800, scoped, tag = 'input window, operand 0, single buffered']
    #allocation3 [shape = 's32[1]{0}', space=sflag, size = 0x4, scoped, tag = 'scoped memory for tpu_custom_call.1']
    #allocation4 [shape = 's32[1]{0}', space=sflag, size = 0x4, scoped, tag = 'scoped memory for tpu_custom_call.1']
    #allocation5 [shape = 'u8[2048]{0}', space=vmem, size = 0x800, scoped, tag = 'input window, operand 1, single buffered']
    #allocation6 [shape = 's32[1]{0}', space=sflag, size = 0x4, scoped, tag = 'scoped memory for tpu_custom_call.1']
    #allocation7 [shape = 'u8[131072]{0}', space=vmem, size = 0x20000, scoped, tag = 'input window, operand 2, single buffered']
    #allocation8 [shape = 'u8[524288]{0}', space=vmem, size = 0x80000, scoped, tag = 'input window, operand 4, single buffered']
    #allocation9 [shape = 's32[1]{0}', space=sflag, size = 0x4, scoped, tag = 'scoped memory for tpu_custom_call.1']
    #allocation10 [shape = 'u8[65536]{0}', space=vmem, size = 0x10000, scoped, tag = 'input window, operand 6, single buffered']
    #allocation11 [shape = 'u8[524288]{0}', space=vmem, size = 0x80000, scoped, tag = 'input window, operand 8, single buffered']
    #allocation12 [shape = 's32[1]{0}', space=sflag, size = 0x4, scoped, tag = 'scoped memory for tpu_custom_call.1']
    #allocation13 [shape = 'u8[524288]{0}', space=vmem, size = 0x80000, scoped, tag = 'input window, operand 10, single buffered']
    #allocation14 [shape = 'u8[524288]{0}', space=vmem, size = 0x80000, scoped, tag = 'input window, operand 11, single buffered']
    #allocation15 [shape = 's32[1]{0}', space=sflag, size = 0x4, scoped, tag = 'scoped memory for tpu_custom_call.1']
    #allocation16 [shape = 'u8[131072]{0}', space=vmem, size = 0x20000, scoped, tag = 'input window, operand 13, single buffered']
    #allocation17 [shape = 'u8[4096]{0}', space=vmem, size = 0x1000, scoped, tag = 'output window, operand 0, single buffered']
    %20 = vsyncpa [#allocation3], 0
    %21 = vsyncpa [#allocation6], 0
    %22 = vsyncpa [#allocation9], 0
    %23 = vsyncpa [#allocation12], 0
    %24 = vsyncpa [#allocation15], 0
    %25 = vsyncpa [#allocation4], 0
    // Predicated region
    $region2: #{tpu_custom_call.1} parent=1 // pred_check
      _
    $region3: #{tpu_custom_call.1} parent=1 // pred_check_branch
      %27 = sbr.rel (0) target = $region5
    $region4: #{tpu_custom_call.1} parent=1 // pred_region
      %s29 = ssub.s32 64, 64
      %30 = vsyncadd [#allocation3], %s29
      %s32 = sshll.u32 [#allocation2], 4
      %s33 = int_to_ptr.vmem [resolvable:$true] %s32
      %35 = dma.hbm_to_vmem [thread:$0]  %s0, 64, %s33, [#allocation3]
    $region5: #{tpu_custom_call.1} parent=1 // pred_fallthru
      _
    // Predicated region
    $region6: #{tpu_custom_call.1} parent=1 // pred_check
      _
    $region7: #{tpu_custom_call.1} parent=1 // pred_check_branch
      %37 = sbr.rel (0) target = $region9
    $region8: #{tpu_custom_call.1} parent=1 // pred_region
      %s39 = ssub.s32 64, 64
      %40 = vsyncadd [#allocation6], %s39
      %s42 = sshll.u32 [#allocation5], 4
      %s43 = int_to_ptr.vmem [resolvable:$true] %s42
      %45 = dma.hbm_to_vmem [thread:$0]  %s1, 64, %s43, [#allocation6]
    $region9: #{tpu_custom_call.1} parent=1 // pred_fallthru
      _
    // Predicated region
    $region10: #{tpu_custom_call.1} parent=1 // pred_check
      _
    $region11: #{tpu_custom_call.1} parent=1 // pred_check_branch
      %47 = sbr.rel (0) target = $region13
    $region12: #{tpu_custom_call.1} parent=1 // pred_region
      %s49 = ssub.s32 4096, 4096
      %50 = vsyncadd [#allocation6], %s49
      %s51 = sshll.u32 [#allocation7], 4
      %s52 = int_to_ptr.vmem [resolvable:$true] %s51
      %57 = dma.hbm_to_vmem [thread:$0]  %s2, 4096, %s52, [#allocation6], 256, 256, 16
    $region13: #{tpu_custom_call.1} parent=1 // pred_fallthru
      _
    // Predicated region
    $region14: #{tpu_custom_call.1} parent=1 // pred_check
      _
    $region15: #{tpu_custom_call.1} parent=1 // pred_check_branch
      %59 = sbr.rel (0) target = $region17
    $region16: #{tpu_custom_call.1} parent=1 // pred_region
      _
    $region17: #{tpu_custom_call.1} parent=1 // pred_fallthru
      _
    // Predicated region
    $region18: #{tpu_custom_call.1} parent=1 // pred_check
      _
    $region19: #{tpu_custom_call.1} parent=1 // pred_check_branch
      %61 = sbr.rel (0) target = $region21
    $region20: #{tpu_custom_call.1} parent=1 // pred_region
      %s63 = ssub.s32 16384, 16384
      %64 = vsyncadd [#allocation9], %s63
      %s65 = sshll.u32 [#allocation8], 4
      %s66 = int_to_ptr.vmem [resolvable:$true] %s65
      %71 = dma.hbm_to_vmem [thread:$0]  %s4, 16384, %s66, [#allocation9], 256, 256, 16
    $region21: #{tpu_custom_call.1} parent=1 // pred_fallthru
      _
    // Predicated region
    $region22: #{tpu_custom_call.1} parent=1 // pred_check
      _
    $region23: #{tpu_custom_call.1} parent=1 // pred_check_branch
      %73 = sbr.rel (0) target = $region25
    $region24: #{tpu_custom_call.1} parent=1 // pred_region
      _
    $region25: #{tpu_custom_call.1} parent=1 // pred_fallthru
      _
    // Predicated region
    $region26: #{tpu_custom_call.1} parent=1 // pred_check
      _
    $region27: #{tpu_custom_call.1} parent=1 // pred_check_branch
      %75 = sbr.rel (0) target = $region29
    $region28: #{tpu_custom_call.1} parent=1 // pred_region
      %s77 = ssub.s32 2048, 2048
      %78 = vsyncadd [#allocation9], %s77
      %s79 = sshll.u32 [#allocation10], 4
      %s80 = int_to_ptr.vmem [resolvable:$true] %s79
      %85 = dma.hbm_to_vmem [thread:$0]  %s6, 2048, %s80, [#allocation9], 256, 256, 16
    $region29: #{tpu_custom_call.1} parent=1 // pred_fallthru
      _
    // Predicated region
    $region30: #{tpu_custom_call.1} parent=1 // pred_check
      _
    $region31: #{tpu_custom_call.1} parent=1 // pred_check_branch
      %87 = sbr.rel (0) target = $region33
    $region32: #{tpu_custom_call.1} parent=1 // pred_region
      _
    $region33: #{tpu_custom_call.1} parent=1 // pred_fallthru
      _
    // Predicated region
    $region34: #{tpu_custom_call.1} parent=1 // pred_check
      _
    $region35: #{tpu_custom_call.1} parent=1 // pred_check_branch
      %89 = sbr.rel (0) target = $region37
    $region36: #{tpu_custom_call.1} parent=1 // pred_region
      %s91 = ssub.s32 16384, 16384
      %92 = vsyncadd [#allocation12], %s91
      %s93 = sshll.u32 [#allocation11], 4
      %s94 = int_to_ptr.vmem [resolvable:$true] %s93
      %99 = dma.hbm_to_vmem [thread:$0]  %s8, 16384, %s94, [#allocation12], 256, 256, 16
    $region37: #{tpu_custom_call.1} parent=1 // pred_fallthru
      _
    // Predicated region
    $region38: #{tpu_custom_call.1} parent=1 // pred_check
      _
    $region39: #{tpu_custom_call.1} parent=1 // pred_check_branch
      %101 = sbr.rel (0) target = $region41
    $region40: #{tpu_custom_call.1} parent=1 // pred_region
      _
    $region41: #{tpu_custom_call.1} parent=1 // pred_fallthru
      _
    // Predicated region
    $region42: #{tpu_custom_call.1} parent=1 // pred_check
      _
    $region43: #{tpu_custom_call.1} parent=1 // pred_check_branch
      %103 = sbr.rel (0) target = $region45
    $region44: #{tpu_custom_call.1} parent=1 // pred_region
      %s105 = ssub.s32 16384, 16384
      %106 = vsyncadd [#allocation12], %s105
      %s107 = sshll.u32 [#allocation13], 4
      %s108 = int_to_ptr.vmem [resolvable:$true] %s107
      %113 = dma.hbm_to_vmem [thread:$0]  %s10, 16384, %s108, [#allocation12], 256, 256, 16
    $region45: #{tpu_custom_call.1} parent=1 // pred_fallthru
      _
    // Predicated region
    $region46: #{tpu_custom_call.1} parent=1 // pred_check
      _
    $region47: #{tpu_custom_call.1} parent=1 // pred_check_branch
      %115 = sbr.rel (0) target = $region49
    $region48: #{tpu_custom_call.1} parent=1 // pred_region
      %s117 = ssub.s32 16384, 16384
      %118 = vsyncadd [#allocation15], %s117
      %s119 = sshll.u32 [#allocation14], 4
      %s120 = int_to_ptr.vmem [resolvable:$true] %s119
      %125 = dma.hbm_to_vmem [thread:$0]  %s11, 16384, %s120, [#allocation15], 256, 256, 16
    $region49: #{tpu_custom_call.1} parent=1 // pred_fallthru
      _
    // Predicated region
    $region50: #{tpu_custom_call.1} parent=1 // pred_check
      _
    $region51: #{tpu_custom_call.1} parent=1 // pred_check_branch
      %127 = sbr.rel (0) target = $region53
    $region52: #{tpu_custom_call.1} parent=1 // pred_region
      _
    $region53: #{tpu_custom_call.1} parent=1 // pred_fallthru
      _
    // Predicated region
    $region54: #{tpu_custom_call.1} parent=1 // pred_check
      _
    $region55: #{tpu_custom_call.1} parent=1 // pred_check_branch
      %129 = sbr.rel (0) target = $region57
    $region56: #{tpu_custom_call.1} parent=1 // pred_region
      %s131 = ssub.s32 4096, 4096
      %132 = vsyncadd [#allocation15], %s131
      %s133 = sshll.u32 [#allocation16], 4
      %s134 = int_to_ptr.vmem [resolvable:$true] %s133
      %139 = dma.hbm_to_vmem [thread:$0]  %s13, 4096, %s134, [#allocation15], 64, 64, 4
    $region57: #{tpu_custom_call.1} parent=1 // pred_fallthru
      _
    // Predicated region
    $region58: #{tpu_custom_call.1} parent=1 // pred_check
      _
    $region59: #{tpu_custom_call.1} parent=1 // pred_check_branch
      %141 = sbr.rel (0) target = $region61
    $region60: #{tpu_custom_call.1} parent=1 // pred_region
      _
    $region61: #{tpu_custom_call.1} parent=1 // pred_fallthru
      _
    // Predicated region
    $region62: #{tpu_custom_call.1} parent=1 // pred_check
      _
    $region63: #{tpu_custom_call.1} parent=1 // pred_check_branch
      %143 = sbr.rel (0) target = $region65
    $region64: #{tpu_custom_call.1} parent=1 // pred_region
      %144 = dma.done [#allocation3], 64
    $region65: #{tpu_custom_call.1} parent=1 // pred_fallthru
      _
    // Predicated region
    $region66: #{tpu_custom_call.1} parent=1 // pred_check
      _
    $region67: #{tpu_custom_call.1} parent=1 // pred_check_branch
      %146 = sbr.rel (0) target = $region69
    $region68: #{tpu_custom_call.1} parent=1 // pred_region
      %147 = dma.done [#allocation6], 64
    $region69: #{tpu_custom_call.1} parent=1 // pred_fallthru
      _
    // Predicated region
    $region70: #{tpu_custom_call.1} parent=1 // pred_check
      _
    $region71: #{tpu_custom_call.1} parent=1 // pred_check_branch
      %149 = sbr.rel (0) target = $region73
    $region72: #{tpu_custom_call.1} parent=1 // pred_region
      %150 = dma.done [#allocation6], 4096
    $region73: #{tpu_custom_call.1} parent=1 // pred_fallthru
      _
    // Predicated region
    $region74: #{tpu_custom_call.1} parent=1 // pred_check
      _
    $region75: #{tpu_custom_call.1} parent=1 // pred_check_branch
      %152 = sbr.rel (0) target = $region77
    $region76: #{tpu_custom_call.1} parent=1 // pred_region
      %153 = dma.done [#allocation9], 16384
    $region77: #{tpu_custom_call.1} parent=1 // pred_fallthru
      _
    // Predicated region
    $region78: #{tpu_custom_call.1} parent=1 // pred_check
      _
    $region79: #{tpu_custom_call.1} parent=1 // pred_check_branch
      %155 = sbr.rel (0) target = $region81
    $region80: #{tpu_custom_call.1} parent=1 // pred_region
      %156 = dma.done [#allocation9], 2048
    $region81: #{tpu_custom_call.1} parent=1 // pred_fallthru
      _
    // Predicated region
    $region82: #{tpu_custom_call.1} parent=1 // pred_check
      _
    $region83: #{tpu_custom_call.1} parent=1 // pred_check_branch
      %158 = sbr.rel (0) target = $region85
    $region84: #{tpu_custom_call.1} parent=1 // pred_region
      %159 = dma.done [#allocation12], 16384
    $region85: #{tpu_custom_call.1} parent=1 // pred_fallthru
      _
    // Predicated region
    $region86: #{tpu_custom_call.1} parent=1 // pred_check
      _
    $region87: #{tpu_custom_call.1} parent=1 // pred_check_branch
      %161 = sbr.rel (0) target = $region89
    $region88: #{tpu_custom_call.1} parent=1 // pred_region
      %162 = dma.done [#allocation12], 16384
    $region89: #{tpu_custom_call.1} parent=1 // pred_fallthru
      _
    // Predicated region
    $region90: #{tpu_custom_call.1} parent=1 // pred_check
      _
    $region91: #{tpu_custom_call.1} parent=1 // pred_check_branch
      %164 = sbr.rel (0) target = $region93
    $region92: #{tpu_custom_call.1} parent=1 // pred_region
      %165 = dma.done [#allocation15], 16384
    $region93: #{tpu_custom_call.1} parent=1 // pred_fallthru
      _
    // Predicated region
    $region94: #{tpu_custom_call.1} parent=1 // pred_check
      _
    $region95: #{tpu_custom_call.1} parent=1 // pred_check_branch
      %167 = sbr.rel (0) target = $region97
    $region96: #{tpu_custom_call.1} parent=1 // pred_region
      %168 = dma.done [#allocation15], 4096
    $region97: #{tpu_custom_call.1} parent=1 // pred_fallthru
      _
    %v170 = vld [vmem:[#allocation2] sm:$0xf]
    %v171 = vld [vmem:[#allocation7] sm:$0xff]
    %v172 = vld [vmem:[#allocation7 + $0x8] sm:$0xff]
    %v173 = vld [vmem:[#allocation7 + $0x10] sm:$0xff]
    %v174 = vld [vmem:[#allocation7 + $0x18] sm:$0xff]
    %v175 = vld [vmem:[#allocation7 + $0x20] sm:$0xff]
    %v176 = vld [vmem:[#allocation7 + $0x28] sm:$0xff]
    %v177 = vld [vmem:[#allocation7 + $0x30] sm:$0xff]
    %v178 = vld [vmem:[#allocation7 + $0x38] sm:$0xff]
    %v179 = vld [vmem:[#allocation7 + $0x40] sm:$0xff]
    %v180 = vld [vmem:[#allocation7 + $0x48] sm:$0xff]
    %v181 = vld [vmem:[#allocation7 + $0x50] sm:$0xff]
    %v182 = vld [vmem:[#allocation7 + $0x58] sm:$0xff]
    %v183 = vld [vmem:[#allocation7 + $0x60] sm:$0xff]
    %v184 = vld [vmem:[#allocation7 + $0x68] sm:$0xff]
    %v185 = vld [vmem:[#allocation7 + $0x70] sm:$0xff]
    %v186 = vld [vmem:[#allocation7 + $0x78] sm:$0xff]
    %v187 = vld [vmem:[#allocation7 + $0x80] sm:$0xff]
    %v188 = vld [vmem:[#allocation7 + $0x88] sm:$0xff]
    %v189 = vld [vmem:[#allocation7 + $0x90] sm:$0xff]
    %v190 = vld [vmem:[#allocation7 + $0x98] sm:$0xff]
    %v191 = vld [vmem:[#allocation7 + $0xa0] sm:$0xff]
    %v192 = vld [vmem:[#allocation7 + $0xa8] sm:$0xff]
    %v193 = vld [vmem:[#allocation7 + $0xb0] sm:$0xff]
    %v194 = vld [vmem:[#allocation7 + $0xb8] sm:$0xff]
    %v195 = vld [vmem:[#allocation7 + $0xc0] sm:$0xff]
    %v196 = vld [vmem:[#allocation7 + $0xc8] sm:$0xff]
    %v197 = vld [vmem:[#allocation7 + $0xd0] sm:$0xff]
    %v198 = vld [vmem:[#allocation7 + $0xd8] sm:$0xff]
    %v199 = vld [vmem:[#allocation7 + $0xe0] sm:$0xff]
    %v200 = vld [vmem:[#allocation7 + $0xe8] sm:$0xff]
    %v201 = vld [vmem:[#allocation7 + $0xf0] sm:$0xff]
    %v202 = vld [vmem:[#allocation7 + $0xf8] sm:$0xff]
    %v203 = vld [vmem:[%s3] sm:$0xf]
    %v205 = vlaneseq
    %v206 = vshrl.u32 %v205, 7
    %v207 = vsub.s32 0, %v206
    %v208 = vrot.slane %v203, %v207
    %v209 = vlaneseq
    %v210 = vshrl.u32 %v209, 7
    %v211 = vsub.s32 1, %v210
    %v212 = vrot.slane %v203, %v211
    %v213 = vlaneseq
    %v214 = vshrl.u32 %v213, 7
    %v215 = vsub.s32 2, %v214
    %v216 = vrot.slane %v203, %v215
    %v217 = vlaneseq
    %v218 = vshrl.u32 %v217, 7
    %v219 = vsub.s32 3, %v218
    %v220 = vrot.slane %v203, %v219
    %v257 = vunpack.c.l.b16 %v171
    %v258 = vunpack.c.h.b16 %v171
    %v259 = vunpack.c.l.b16 %v172
    %v260 = vunpack.c.h.b16 %v172
    %v261 = vunpack.c.l.b16 %v173
    %v262 = vunpack.c.h.b16 %v173
    %v263 = vunpack.c.l.b16 %v174
    %v264 = vunpack.c.h.b16 %v174
    %v265 = vunpack.c.l.b16 %v175
    %v266 = vunpack.c.h.b16 %v175
    %v267 = vunpack.c.l.b16 %v176
    %v268 = vunpack.c.h.b16 %v176
    %v269 = vunpack.c.l.b16 %v177
    %v270 = vunpack.c.h.b16 %v177
    %v271 = vunpack.c.l.b16 %v178
    %v272 = vunpack.c.h.b16 %v178
    %v273 = vunpack.c.l.b16 %v179
    %v274 = vunpack.c.h.b16 %v179
    %v275 = vunpack.c.l.b16 %v180
    %v276 = vunpack.c.h.b16 %v180
    %v277 = vunpack.c.l.b16 %v181
    %v278 = vunpack.c.h.b16 %v181
    %v279 = vunpack.c.l.b16 %v182
    %v280 = vunpack.c.h.b16 %v182
    %v281 = vunpack.c.l.b16 %v183
    %v282 = vunpack.c.h.b16 %v183
    %v283 = vunpack.c.l.b16 %v184
    %v284 = vunpack.c.h.b16 %v184
    %v285 = vunpack.c.l.b16 %v185
    %v286 = vunpack.c.h.b16 %v185
    %v287 = vunpack.c.l.b16 %v186
    %v288 = vunpack.c.h.b16 %v186
    %v289 = vunpack.c.l.b16 %v187
    %v290 = vunpack.c.h.b16 %v187
    %v291 = vunpack.c.l.b16 %v188
    %v292 = vunpack.c.h.b16 %v188
    %v293 = vunpack.c.l.b16 %v189
    %v294 = vunpack.c.h.b16 %v189
    %v295 = vunpack.c.l.b16 %v190
    %v296 = vunpack.c.h.b16 %v190
    %v297 = vunpack.c.l.b16 %v191
    %v298 = vunpack.c.h.b16 %v191
    %v299 = vunpack.c.l.b16 %v192
    %v300 = vunpack.c.h.b16 %v192
    %v301 = vunpack.c.l.b16 %v193
    %v302 = vunpack.c.h.b16 %v193
    %v303 = vunpack.c.l.b16 %v194
    %v304 = vunpack.c.h.b16 %v194
    %v305 = vunpack.c.l.b16 %v195
    %v306 = vunpack.c.h.b16 %v195
    %v307 = vunpack.c.l.b16 %v196
    %v308 = vunpack.c.h.b16 %v196
    %v309 = vunpack.c.l.b16 %v197
    %v310 = vunpack.c.h.b16 %v197
    %v311 = vunpack.c.l.b16 %v198
    %v312 = vunpack.c.h.b16 %v198
    %v313 = vunpack.c.l.b16 %v199
    %v314 = vunpack.c.h.b16 %v199
    %v315 = vunpack.c.l.b16 %v200
    %v316 = vunpack.c.h.b16 %v200
    %v317 = vunpack.c.l.b16 %v201
    %v318 = vunpack.c.h.b16 %v201
    %v319 = vunpack.c.l.b16 %v202
    %v320 = vunpack.c.h.b16 %v202
    %v321 = vpack.c.b16 %v261, %v257
    %v322 = vpack.c.b16 %v262, %v258
    %v323 = vpack.c.b16 %v263, %v259
    %v324 = vpack.c.b16 %v264, %v260
    %v325 = vpack.c.b16 %v269, %v265
    %v326 = vpack.c.b16 %v270, %v266
    %v327 = vpack.c.b16 %v271, %v267
    %v328 = vpack.c.b16 %v272, %v268
    %v329 = vpack.c.b16 %v277, %v273
    %v330 = vpack.c.b16 %v278, %v274
    %v331 = vpack.c.b16 %v279, %v275
    %v332 = vpack.c.b16 %v280, %v276
    %v333 = vpack.c.b16 %v285, %v281
    %v334 = vpack.c.b16 %v286, %v282
    %v335 = vpack.c.b16 %v287, %v283
    %v336 = vpack.c.b16 %v288, %v284
    %v337 = vpack.c.b16 %v293, %v289
    %v338 = vpack.c.b16 %v294, %v290
    %v339 = vpack.c.b16 %v295, %v291
    %v340 = vpack.c.b16 %v296, %v292
    %v341 = vpack.c.b16 %v301, %v297
    %v342 = vpack.c.b16 %v302, %v298
    %v343 = vpack.c.b16 %v303, %v299
    %v344 = vpack.c.b16 %v304, %v300
    %v345 = vpack.c.b16 %v309, %v305
    %v346 = vpack.c.b16 %v310, %v306
    %v347 = vpack.c.b16 %v311, %v307
    %v348 = vpack.c.b16 %v312, %v308
    %v349 = vpack.c.b16 %v317, %v313
    %v350 = vpack.c.b16 %v318, %v314
    %v351 = vpack.c.b16 %v319, %v315
    %v352 = vpack.c.b16 %v320, %v316
    %385 = vmatprep.subr.bf16.mxu0 %v322
    %386 = vmatpush1.bf16.msra.mxu0 %v321
    %387 = vmatprep.subr.bf16.mxu0 %v326
    %388 = vmatpush1.bf16.msra.mxu0 %v325
    %389 = vmatprep.subr.bf16.mxu0 %v330
    %390 = vmatpush1.bf16.msra.mxu0 %v329
    %391 = vmatprep.subr.bf16.mxu0 %v334
    %392 = vmatpush1.bf16.msra.mxu0 %v333
    %393 = vmatprep.subr.bf16.mxu0 %v338
    %394 = vmatpush1.bf16.msra.mxu0 %v337
    %395 = vmatprep.subr.bf16.mxu0 %v342
    %396 = vmatpush1.bf16.msra.mxu0 %v341
    %397 = vmatprep.subr.bf16.mxu0 %v346
    %398 = vmatpush1.bf16.msra.mxu0 %v345
    %399 = vmatprep.subr.bf16.mxu0 %v350
    %400 = vmatpush1.bf16.msra.mxu0 %v349
    %401 = vmatprep.subr.bf16.mxu0 0
    %402 = vmatpush1.bf16.msra.mxu0 0
    %403 = vmatprep.subr.bf16.mxu0 0
    %404 = vmatpush1.bf16.msra.mxu0 0
    %405 = vmatprep.subr.bf16.mxu0 0
    %406 = vmatpush1.bf16.msra.mxu0 0
    %407 = vmatprep.subr.bf16.mxu0 0
    %408 = vmatpush1.bf16.msra.mxu0 0
    %409 = vmatprep.subr.bf16.mxu0 0
    %410 = vmatpush1.bf16.msra.mxu0 0
    %411 = vmatprep.subr.bf16.mxu0 0
    %412 = vmatpush1.bf16.msra.mxu0 0
    %413 = vmatprep.subr.bf16.mxu0 0
    %414 = vmatpush1.bf16.msra.mxu0 0
    %415 = vmatprep.subr.bf16.mxu0 0
    %416 = vmatpush1.bf16.msra.mxu0 0
    %417 = vmatprep.mubr.bf16.mxu0 0
    %418 = vmatmul.mubr.bf16.gmra.mrb[0].mxu0 %v170
    %v419 = vpop.f32.mrb[0].mxu0
    %v420 = vadd.f32 %v208, %v419
    %v421 = vpop.f32.mrb[0].mxu0
    %v422 = vadd.f32 %v212, %v421
    %v423 = vpop.f32.mrb[0].mxu0
    %v424 = vpop.f32.mrb[0].mxu0
    %425 = vdwg.mxu0
    %426 = vmatprep.subr.bf16.mxu0 %v324
    %427 = vmatpush1.bf16.msra.mxu0 %v323
    %428 = vmatprep.subr.bf16.mxu0 %v328
    %429 = vmatpush1.bf16.msra.mxu0 %v327
    %430 = vmatprep.subr.bf16.mxu0 %v332
    %431 = vmatpush1.bf16.msra.mxu0 %v331
    %432 = vmatprep.subr.bf16.mxu0 %v336
    %433 = vmatpush1.bf16.msra.mxu0 %v335
    %434 = vmatprep.subr.bf16.mxu0 %v340
    %435 = vmatpush1.bf16.msra.mxu0 %v339
    %436 = vmatprep.subr.bf16.mxu0 %v344
    %437 = vmatpush1.bf16.msra.mxu0 %v343
    %438 = vmatprep.subr.bf16.mxu0 %v348
    %439 = vmatpush1.bf16.msra.mxu0 %v347
    %440 = vmatprep.subr.bf16.mxu0 %v352
    %441 = vmatpush1.bf16.msra.mxu0 %v351
    %442 = vmatprep.subr.bf16.mxu0 0
    %443 = vmatpush1.bf16.msra.mxu0 0
    %444 = vmatprep.subr.bf16.mxu0 0
    %445 = vmatpush1.bf16.msra.mxu0 0
    %446 = vmatprep.subr.bf16.mxu0 0
    %447 = vmatpush1.bf16.msra.mxu0 0
    %448 = vmatprep.subr.bf16.mxu0 0
    %449 = vmatpush1.bf16.msra.mxu0 0
    %450 = vmatprep.subr.bf16.mxu0 0
    %451 = vmatpush1.bf16.msra.mxu0 0
    %452 = vmatprep.subr.bf16.mxu0 0
    %453 = vmatpush1.bf16.msra.mxu0 0
    %454 = vmatprep.subr.bf16.mxu0 0
    %455 = vmatpush1.bf16.msra.mxu0 0
    %456 = vmatprep.subr.bf16.mxu0 0
    %457 = vmatpush1.bf16.msra.mxu0 0
    %458 = vmatprep.mubr.bf16.mxu0 0
    %459 = vmatmul.mubr.bf16.gmra.mrb[0].mxu0 %v170
    %v460 = vpop.f32.mrb[0].mxu0
    %v461 = vadd.f32 %v216, %v460
    %v462 = vpop.f32.mrb[0].mxu0
    %v463 = vadd.f32 %v220, %v462
    %v464 = vpop.f32.mrb[0].mxu0
    %v465 = vpop.f32.mrb[0].mxu0
    %466 = vdwg.mxu0
    %v467 = vmax.f32 %v420, 0.0
    %v468 = vmax.f32 %v422, 0.0
    %v469 = vmax.f32 %v461, 0.0
    %v470 = vmax.f32 %v463, 0.0
    %v471 = vpack.c.bf16 %v467, %v467
    %v472 = vpack.c.bf16 %v468, %v468
    %v473 = vpack.c.bf16 %v469, %v469
    %v474 = vpack.c.bf16 %v470, %v470
    %v475 = vld [vmem:[#allocation8] sm:$0xff]
    %v476 = vld [vmem:[#allocation8 + $0x8] sm:$0xff]
    %v477 = vld [vmem:[#allocation8 + $0x10] sm:$0xff]
    %v478 = vld [vmem:[#allocation8 + $0x18] sm:$0xff]
    %v479 = vld [vmem:[#allocation8 + $0x20] sm:$0xff]
    %v480 = vld [vmem:[#allocation8 + $0x28] sm:$0xff]
    %v481 = vld [vmem:[#allocation8 + $0x30] sm:$0xff]
    %v482 = vld [vmem:[#allocation8 + $0x38] sm:$0xff]
    %v483 = vld [vmem:[#allocation8 + $0x40] sm:$0xff]
    %v484 = vld [vmem:[#allocation8 + $0x48] sm:$0xff]
    %v485 = vld [vmem:[#allocation8 + $0x50] sm:$0xff]
    %v486 = vld [vmem:[#allocation8 + $0x58] sm:$0xff]
    %v487 = vld [vmem:[#allocation8 + $0x60] sm:$0xff]
    %v488 = vld [vmem:[#allocation8 + $0x68] sm:$0xff]
    %v489 = vld [vmem:[#allocation8 + $0x70] sm:$0xff]
    %v490 = vld [vmem:[#allocation8 + $0x78] sm:$0xff]
    %v491 = vld [vmem:[#allocation8 + $0x80] sm:$0xff]
    %v492 = vld [vmem:[#allocation8 + $0x88] sm:$0xff]
    %v493 = vld [vmem:[#allocation8 + $0x90] sm:$0xff]
    %v494 = vld [vmem:[#allocation8 + $0x98] sm:$0xff]
    %v495 = vld [vmem:[#allocation8 + $0xa0] sm:$0xff]
    %v496 = vld [vmem:[#allocation8 + $0xa8] sm:$0xff]
    %v497 = vld [vmem:[#allocation8 + $0xb0] sm:$0xff]
    %v498 = vld [vmem:[#allocation8 + $0xb8] sm:$0xff]
    %v499 = vld [vmem:[#allocation8 + $0xc0] sm:$0xff]
    %v500 = vld [vmem:[#allocation8 + $0xc8] sm:$0xff]
    %v501 = vld [vmem:[#allocation8 + $0xd0] sm:$0xff]
    %v502 = vld [vmem:[#allocation8 + $0xd8] sm:$0xff]
    %v503 = vld [vmem:[#allocation8 + $0xe0] sm:$0xff]
    %v504 = vld [vmem:[#allocation8 + $0xe8] sm:$0xff]
    %v505 = vld [vmem:[#allocation8 + $0xf0] sm:$0xff]
    %v506 = vld [vmem:[#allocation8 + $0xf8] sm:$0xff]
    %v507 = vld [vmem:[#allocation8 + $0x100] sm:$0xff]
    %v508 = vld [vmem:[#allocation8 + $0x108] sm:$0xff]
    %v509 = vld [vmem:[#allocation8 + $0x110] sm:$0xff]
    %v510 = vld [vmem:[#allocation8 + $0x118] sm:$0xff]
    %v511 = vld [vmem:[#allocation8 + $0x120] sm:$0xff]
    %v512 = vld [vmem:[#allocation8 + $0x128] sm:$0xff]
    %v513 = vld [vmem:[#allocation8 + $0x130] sm:$0xff]
    %v514 = vld [vmem:[#allocation8 + $0x138] sm:$0xff]
    %v515 = vld [vmem:[#allocation8 + $0x140] sm:$0xff]
    %v516 = vld [vmem:[#allocation8 + $0x148] sm:$0xff]
    %v517 = vld [vmem:[#allocation8 + $0x150] sm:$0xff]
    %v518 = vld [vmem:[#allocation8 + $0x158] sm:$0xff]
    %v519 = vld [vmem:[#allocation8 + $0x160] sm:$0xff]
    %v520 = vld [vmem:[#allocation8 + $0x168] sm:$0xff]
    %v521 = vld [vmem:[#allocation8 + $0x170] sm:$0xff]
    %v522 = vld [vmem:[#allocation8 + $0x178] sm:$0xff]
    %v523 = vld [vmem:[#allocation8 + $0x180] sm:$0xff]
    %v524 = vld [vmem:[#allocation8 + $0x188] sm:$0xff]
    %v525 = vld [vmem:[#allocation8 + $0x190] sm:$0xff]
    %v526 = vld [vmem:[#allocation8 + $0x198] sm:$0xff]
    %v527 = vld [vmem:[#allocation8 + $0x1a0] sm:$0xff]
    %v528 = vld [vmem:[#allocation8 + $0x1a8] sm:$0xff]
    %v529 = vld [vmem:[#allocation8 + $0x1b0] sm:$0xff]
    %v530 = vld [vmem:[#allocation8 + $0x1b8] sm:$0xff]
    %v531 = vld [vmem:[#allocation8 + $0x1c0] sm:$0xff]
    %v532 = vld [vmem:[#allocation8 + $0x1c8] sm:$0xff]
    %v533 = vld [vmem:[#allocation8 + $0x1d0] sm:$0xff]
    %v534 = vld [vmem:[#allocation8 + $0x1d8] sm:$0xff]
    %v535 = vld [vmem:[#allocation8 + $0x1e0] sm:$0xff]
    %v536 = vld [vmem:[#allocation8 + $0x1e8] sm:$0xff]
    %v537 = vld [vmem:[#allocation8 + $0x1f0] sm:$0xff]
    %v538 = vld [vmem:[#allocation8 + $0x1f8] sm:$0xff]
    %v539 = vld [vmem:[#allocation8 + $0x200] sm:$0xff]
    %v540 = vld [vmem:[#allocation8 + $0x208] sm:$0xff]
    %v541 = vld [vmem:[#allocation8 + $0x210] sm:$0xff]
    %v542 = vld [vmem:[#allocation8 + $0x218] sm:$0xff]
    %v543 = vld [vmem:[#allocation8 + $0x220] sm:$0xff]
    %v544 = vld [vmem:[#allocation8 + $0x228] sm:$0xff]
    %v545 = vld [vmem:[#allocation8 + $0x230] sm:$0xff]
    %v546 = vld [vmem:[#allocation8 + $0x238] sm:$0xff]
    %v547 = vld [vmem:[#allocation8 + $0x240] sm:$0xff]
    %v548 = vld [vmem:[#allocation8 + $0x248] sm:$0xff]
    %v549 = vld [vmem:[#allocation8 + $0x250] sm:$0xff]
    %v550 = vld [vmem:[#allocation8 + $0x258] sm:$0xff]
    %v551 = vld [vmem:[#allocation8 + $0x260] sm:$0xff]
    %v552 = vld [vmem:[#allocation8 + $0x268] sm:$0xff]
    %v553 = vld [vmem:[#allocation8 + $0x270] sm:$0xff]
    %v554 = vld [vmem:[#allocation8 + $0x278] sm:$0xff]
    %v555 = vld [vmem:[#allocation8 + $0x280] sm:$0xff]
    %v556 = vld [vmem:[#allocation8 + $0x288] sm:$0xff]
    %v557 = vld [vmem:[#allocation8 + $0x290] sm:$0xff]
    %v558 = vld [vmem:[#allocation8 + $0x298] sm:$0xff]
    %v559 = vld [vmem:[#allocation8 + $0x2a0] sm:$0xff]
    %v560 = vld [vmem:[#allocation8 + $0x2a8] sm:$0xff]
    %v561 = vld [vmem:[#allocation8 + $0x2b0] sm:$0xff]
    %v562 = vld [vmem:[#allocation8 + $0x2b8] sm:$0xff]
    %v563 = vld [vmem:[#allocation8 + $0x2c0] sm:$0xff]
    %v564 = vld [vmem:[#allocation8 + $0x2c8] sm:$0xff]
    %v565 = vld [vmem:[#allocation8 + $0x2d0] sm:$0xff]
    %v566 = vld [vmem:[#allocation8 + $0x2d8] sm:$0xff]
    %v567 = vld [vmem:[#allocation8 + $0x2e0] sm:$0xff]
    %v568 = vld [vmem:[#allocation8 + $0x2e8] sm:$0xff]
    %v569 = vld [vmem:[#allocation8 + $0x2f0] sm:$0xff]
    %v570 = vld [vmem:[#allocation8 + $0x2f8] sm:$0xff]
    %v571 = vld [vmem:[#allocation8 + $0x300] sm:$0xff]
    %v572 = vld [vmem:[#allocation8 + $0x308] sm:$0xff]
    %v573 = vld [vmem:[#allocation8 + $0x310] sm:$0xff]
    %v574 = vld [vmem:[#allocation8 + $0x318] sm:$0xff]
    %v575 = vld [vmem:[#allocation8 + $0x320] sm:$0xff]
    %v576 = vld [vmem:[#allocation8 + $0x328] sm:$0xff]
    %v577 = vld [vmem:[#allocation8 + $0x330] sm:$0xff]
    %v578 = vld [vmem:[#allocation8 + $0x338] sm:$0xff]
    %v579 = vld [vmem:[#allocation8 + $0x340] sm:$0xff]
    %v580 = vld [vmem:[#allocation8 + $0x348] sm:$0xff]
    %v581 = vld [vmem:[#allocation8 + $0x350] sm:$0xff]
    %v582 = vld [vmem:[#allocation8 + $0x358] sm:$0xff]
    %v583 = vld [vmem:[#allocation8 + $0x360] sm:$0xff]
    %v584 = vld [vmem:[#allocation8 + $0x368] sm:$0xff]
    %v585 = vld [vmem:[#allocation8 + $0x370] sm:$0xff]
    %v586 = vld [vmem:[#allocation8 + $0x378] sm:$0xff]
    %v587 = vld [vmem:[#allocation8 + $0x380] sm:$0xff]
    %v588 = vld [vmem:[#allocation8 + $0x388] sm:$0xff]
    %v589 = vld [vmem:[#allocation8 + $0x390] sm:$0xff]
    %v590 = vld [vmem:[#allocation8 + $0x398] sm:$0xff]
    %v591 = vld [vmem:[#allocation8 + $0x3a0] sm:$0xff]
    %v592 = vld [vmem:[#allocation8 + $0x3a8] sm:$0xff]
    %v593 = vld [vmem:[#allocation8 + $0x3b0] sm:$0xff]
    %v594 = vld [vmem:[#allocation8 + $0x3b8] sm:$0xff]
    %v595 = vld [vmem:[#allocation8 + $0x3c0] sm:$0xff]
    %v596 = vld [vmem:[#allocation8 + $0x3c8] sm:$0xff]
    %v597 = vld [vmem:[#allocation8 + $0x3d0] sm:$0xff]
    %v598 = vld [vmem:[#allocation8 + $0x3d8] sm:$0xff]
    %v599 = vld [vmem:[#allocation8 + $0x3e0] sm:$0xff]
    %v600 = vld [vmem:[#allocation8 + $0x3e8] sm:$0xff]
    %v601 = vld [vmem:[#allocation8 + $0x3f0] sm:$0xff]
    %v602 = vld [vmem:[#allocation8 + $0x3f8] sm:$0xff]
    %v603 = vld [vmem:[%s5] sm:$0xf]
    %v605 = vlaneseq
    %v606 = vshrl.u32 %v605, 7
    %v607 = vsub.s32 0, %v606
    %v608 = vrot.slane %v603, %v607
    %v609 = vlaneseq
    %v610 = vshrl.u32 %v609, 7
    %v611 = vsub.s32 1, %v610
    %v612 = vrot.slane %v603, %v611
    %v613 = vlaneseq
    %v614 = vshrl.u32 %v613, 7
    %v615 = vsub.s32 2, %v614
    %v616 = vrot.slane %v603, %v615
    %v617 = vlaneseq
    %v618 = vshrl.u32 %v617, 7
    %v619 = vsub.s32 3, %v618
    %v620 = vrot.slane %v603, %v619
    %v753 = vunpack.c.l.b16 %v475
    %v754 = vunpack.c.h.b16 %v475
    %v755 = vunpack.c.l.b16 %v476
    %v756 = vunpack.c.h.b16 %v476
    %v757 = vunpack.c.l.b16 %v477
    %v758 = vunpack.c.h.b16 %v477
    %v759 = vunpack.c.l.b16 %v478
    %v760 = vunpack.c.h.b16 %v478
    %v761 = vunpack.c.l.b16 %v479
    %v762 = vunpack.c.h.b16 %v479
    %v763 = vunpack.c.l.b16 %v480
    %v764 = vunpack.c.h.b16 %v480
    %v765 = vunpack.c.l.b16 %v481
    %v766 = vunpack.c.h.b16 %v481
    %v767 = vunpack.c.l.b16 %v482
    %v768 = vunpack.c.h.b16 %v482
    %v769 = vunpack.c.l.b16 %v483
    %v770 = vunpack.c.h.b16 %v483
    %v771 = vunpack.c.l.b16 %v484
    %v772 = vunpack.c.h.b16 %v484
    %v773 = vunpack.c.l.b16 %v485
    %v774 = vunpack.c.h.b16 %v485
    %v775 = vunpack.c.l.b16 %v486
    %v776 = vunpack.c.h.b16 %v486
    %v777 = vunpack.c.l.b16 %v487
    %v778 = vunpack.c.h.b16 %v487
    %v779 = vunpack.c.l.b16 %v488
    %v780 = vunpack.c.h.b16 %v488
    %v781 = vunpack.c.l.b16 %v489
    %v782 = vunpack.c.h.b16 %v489
    %v783 = vunpack.c.l.b16 %v490
    %v784 = vunpack.c.h.b16 %v490
    %v785 = vunpack.c.l.b16 %v491
    %v786 = vunpack.c.h.b16 %v491
    %v787 = vunpack.c.l.b16 %v492
    %v788 = vunpack.c.h.b16 %v492
    %v789 = vunpack.c.l.b16 %v493
    %v790 = vunpack.c.h.b16 %v493
    %v791 = vunpack.c.l.b16 %v494
    %v792 = vunpack.c.h.b16 %v494
    %v793 = vunpack.c.l.b16 %v495
    %v794 = vunpack.c.h.b16 %v495
    %v795 = vunpack.c.l.b16 %v496
    %v796 = vunpack.c.h.b16 %v496
    %v797 = vunpack.c.l.b16 %v497
    %v798 = vunpack.c.h.b16 %v497
    %v799 = vunpack.c.l.b16 %v498
    %v800 = vunpack.c.h.b16 %v498
    %v801 = vunpack.c.l.b16 %v499
    %v802 = vunpack.c.h.b16 %v499
    %v803 = vunpack.c.l.b16 %v500
    %v804 = vunpack.c.h.b16 %v500
    %v805 = vunpack.c.l.b16 %v501
    %v806 = vunpack.c.h.b16 %v501
    %v807 = vunpack.c.l.b16 %v502
    %v808 = vunpack.c.h.b16 %v502
    %v809 = vunpack.c.l.b16 %v503
    %v810 = vunpack.c.h.b16 %v503
    %v811 = vunpack.c.l.b16 %v504
    %v812 = vunpack.c.h.b16 %v504
    %v813 = vunpack.c.l.b16 %v505
    %v814 = vunpack.c.h.b16 %v505
    %v815 = vunpack.c.l.b16 %v506
    %v816 = vunpack.c.h.b16 %v506
    %v817 = vunpack.c.l.b16 %v507
    %v818 = vunpack.c.h.b16 %v507
    %v819 = vunpack.c.l.b16 %v508
    %v820 = vunpack.c.h.b16 %v508
    %v821 = vunpack.c.l.b16 %v509
    %v822 = vunpack.c.h.b16 %v509
    %v823 = vunpack.c.l.b16 %v510
    %v824 = vunpack.c.h.b16 %v510
    %v825 = vunpack.c.l.b16 %v511
    %v826 = vunpack.c.h.b16 %v511
    %v827 = vunpack.c.l.b16 %v512
    %v828 = vunpack.c.h.b16 %v512
    %v829 = vunpack.c.l.b16 %v513
    %v830 = vunpack.c.h.b16 %v513
    %v831 = vunpack.c.l.b16 %v514
    %v832 = vunpack.c.h.b16 %v514
    %v833 = vunpack.c.l.b16 %v515
    %v834 = vunpack.c.h.b16 %v515
    %v835 = vunpack.c.l.b16 %v516
    %v836 = vunpack.c.h.b16 %v516
    %v837 = vunpack.c.l.b16 %v517
    %v838 = vunpack.c.h.b16 %v517
    %v839 = vunpack.c.l.b16 %v518
    %v840 = vunpack.c.h.b16 %v518
    %v841 = vunpack.c.l.b16 %v519
    %v842 = vunpack.c.h.b16 %v519
    %v843 = vunpack.c.l.b16 %v520
    %v844 = vunpack.c.h.b16 %v520
    %v845 = vunpack.c.l.b16 %v521
    %v846 = vunpack.c.h.b16 %v521
    %v847 = vunpack.c.l.b16 %v522
    %v848 = vunpack.c.h.b16 %v522
    %v849 = vunpack.c.l.b16 %v523
    %v850 = vunpack.c.h.b16 %v523
    %v851 = vunpack.c.l.b16 %v524
    %v852 = vunpack.c.h.b16 %v524
    %v853 = vunpack.c.l.b16 %v525
    %v854 = vunpack.c.h.b16 %v525
    %v855 = vunpack.c.l.b16 %v526
    %v856 = vunpack.c.h.b16 %v526
    %v857 = vunpack.c.l.b16 %v527
    %v858 = vunpack.c.h.b16 %v527
    %v859 = vunpack.c.l.b16 %v528
    %v860 = vunpack.c.h.b16 %v528
    %v861 = vunpack.c.l.b16 %v529
    %v862 = vunpack.c.h.b16 %v529
    %v863 = vunpack.c.l.b16 %v530
    %v864 = vunpack.c.h.b16 %v530
    %v865 = vunpack.c.l.b16 %v531
    %v866 = vunpack.c.h.b16 %v531
    %v867 = vunpack.c.l.b16 %v532
    %v868 = vunpack.c.h.b16 %v532
    %v869 = vunpack.c.l.b16 %v533
    %v870 = vunpack.c.h.b16 %v533
    %v871 = vunpack.c.l.b16 %v534
    %v872 = vunpack.c.h.b16 %v534
    %v873 = vunpack.c.l.b16 %v535
    %v874 = vunpack.c.h.b16 %v535
    %v875 = vunpack.c.l.b16 %v536
    %v876 = vunpack.c.h.b16 %v536
    %v877 = vunpack.c.l.b16 %v537
    %v878 = vunpack.c.h.b16 %v537
    %v879 = vunpack.c.l.b16 %v538
    %v880 = vunpack.c.h.b16 %v538
    %v881 = vunpack.c.l.b16 %v539
    %v882 = vunpack.c.h.b16 %v539
    %v883 = vunpack.c.l.b16 %v540
    %v884 = vunpack.c.h.b16 %v540
    %v885 = vunpack.c.l.b16 %v541
    %v886 = vunpack.c.h.b16 %v541
    %v887 = vunpack.c.l.b16 %v542
    %v888 = vunpack.c.h.b16 %v542
    %v889 = vunpack.c.l.b16 %v543
    %v890 = vunpack.c.h.b16 %v543
    %v891 = vunpack.c.l.b16 %v544
    %v892 = vunpack.c.h.b16 %v544
    %v893 = vunpack.c.l.b16 %v545
    %v894 = vunpack.c.h.b16 %v545
    %v895 = vunpack.c.l.b16 %v546
    %v896 = vunpack.c.h.b16 %v546
    %v897 = vunpack.c.l.b16 %v547
    %v898 = vunpack.c.h.b16 %v547
    %v899 = vunpack.c.l.b16 %v548
    %v900 = vunpack.c.h.b16 %v548
    %v901 = vunpack.c.l.b16 %v549
    %v902 = vunpack.c.h.b16 %v549
    %v903 = vunpack.c.l.b16 %v550
    %v904 = vunpack.c.h.b16 %v550
    %v905 = vunpack.c.l.b16 %v551
    %v906 = vunpack.c.h.b16 %v551
    %v907 = vunpack.c.l.b16 %v552
    %v908 = vunpack.c.h.b16 %v552
    %v909 = vunpack.c.l.b16 %v553
    %v910 = vunpack.c.h.b16 %v553
    %v911 = vunpack.c.l.b16 %v554
    %v912 = vunpack.c.h.b16 %v554
    %v913 = vunpack.c.l.b16 %v555
    %v914 = vunpack.c.h.b16 %v555
    %v915 = vunpack.c.l.b16 %v556
    %v916 = vunpack.c.h.b16 %v556
    %v917 = vunpack.c.l.b16 %v557
    %v918 = vunpack.c.h.b16 %v557
    %v919 = vunpack.c.l.b16 %v558
    %v920 = vunpack.c.h.b16 %v558
    %v921 = vunpack.c.l.b16 %v559
    %v922 = vunpack.c.h.b16 %v559
    %v923 = vunpack.c.l.b16 %v560
    %v924 = vunpack.c.h.b16 %v560
    %v925 = vunpack.c.l.b16 %v561
    %v926 = vunpack.c.h.b16 %v561
    %v927 = vunpack.c.l.b16 %v562
    %v928 = vunpack.c.h.b16 %v562
    %v929 = vunpack.c.l.b16 %v563
    %v930 = vunpack.c.h.b16 %v563
    %v931 = vunpack.c.l.b16 %v564
    %v932 = vunpack.c.h.b16 %v564
    %v933 = vunpack.c.l.b16 %v565
    %v934 = vunpack.c.h.b16 %v565
    %v935 = vunpack.c.l.b16 %v566
    %v936 = vunpack.c.h.b16 %v566
    %v937 = vunpack.c.l.b16 %v567
    %v938 = vunpack.c.h.b16 %v567
    %v939 = vunpack.c.l.b16 %v568
    %v940 = vunpack.c.h.b16 %v568
    %v941 = vunpack.c.l.b16 %v569
    %v942 = vunpack.c.h.b16 %v569
    %v943 = vunpack.c.l.b16 %v570
    %v944 = vunpack.c.h.b16 %v570
    %v945 = vunpack.c.l.b16 %v571
    %v946 = vunpack.c.h.b16 %v571
    %v947 = vunpack.c.l.b16 %v572
    %v948 = vunpack.c.h.b16 %v572
    %v949 = vunpack.c.l.b16 %v573
    %v950 = vunpack.c.h.b16 %v573
    %v951 = vunpack.c.l.b16 %v574
    %v952 = vunpack.c.h.b16 %v574
    %v953 = vunpack.c.l.b16 %v575
    %v954 = vunpack.c.h.b16 %v575
    %v955 = vunpack.c.l.b16 %v576
    %v956 = vunpack.c.h.b16 %v576
    %v957 = vunpack.c.l.b16 %v577
    %v958 = vunpack.c.h.b16 %v577
    %v959 = vunpack.c.l.b16 %v578
    %v960 = vunpack.c.h.b16 %v578
    %v961 = vunpack.c.l.b16 %v579
    %v962 = vunpack.c.h.b16 %v579
    %v963 = vunpack.c.l.b16 %v580
    %v964 = vunpack.c.h.b16 %v580
    %v965 = vunpack.c.l.b16 %v581
    %v966 = vunpack.c.h.b16 %v581
    %v967 = vunpack.c.l.b16 %v582
    %v968 = vunpack.c.h.b16 %v582
    %v969 = vunpack.c.l.b16 %v583
    %v970 = vunpack.c.h.b16 %v583
    %v971 = vunpack.c.l.b16 %v584
    %v972 = vunpack.c.h.b16 %v584
    %v973 = vunpack.c.l.b16 %v585
    %v974 = vunpack.c.h.b16 %v585
    %v975 = vunpack.c.l.b16 %v586
    %v976 = vunpack.c.h.b16 %v586
    %v977 = vunpack.c.l.b16 %v587
    %v978 = vunpack.c.h.b16 %v587
    %v979 = vunpack.c.l.b16 %v588
    %v980 = vunpack.c.h.b16 %v588
    %v981 = vunpack.c.l.b16 %v589
    %v982 = vunpack.c.h.b16 %v589
    %v983 = vunpack.c.l.b16 %v590
    %v984 = vunpack.c.h.b16 %v590
    %v985 = vunpack.c.l.b16 %v591
    %v986 = vunpack.c.h.b16 %v591
    %v987 = vunpack.c.l.b16 %v592
    %v988 = vunpack.c.h.b16 %v592
    %v989 = vunpack.c.l.b16 %v593
    %v990 = vunpack.c.h.b16 %v593
    %v991 = vunpack.c.l.b16 %v594
    %v992 = vunpack.c.h.b16 %v594
    %v993 = vunpack.c.l.b16 %v595
    %v994 = vunpack.c.h.b16 %v595
    %v995 = vunpack.c.l.b16 %v596
    %v996 = vunpack.c.h.b16 %v596
    %v997 = vunpack.c.l.b16 %v597
    %v998 = vunpack.c.h.b16 %v597
    %v999 = vunpack.c.l.b16 %v598
    %v1000 = vunpack.c.h.b16 %v598
    %v1001 = vunpack.c.l.b16 %v599
    %v1002 = vunpack.c.h.b16 %v599
    %v1003 = vunpack.c.l.b16 %v600
    %v1004 = vunpack.c.h.b16 %v600
    %v1005 = vunpack.c.l.b16 %v601
    %v1006 = vunpack.c.h.b16 %v601
    %v1007 = vunpack.c.l.b16 %v602
    %v1008 = vunpack.c.h.b16 %v602
    %v1009 = vpack.c.b16 %v757, %v753
    %v1010 = vpack.c.b16 %v758, %v754
    %v1011 = vpack.c.b16 %v759, %v755
    %v1012 = vpack.c.b16 %v760, %v756
    %v1013 = vpack.c.b16 %v765, %v761
    %v1014 = vpack.c.b16 %v766, %v762
    %v1015 = vpack.c.b16 %v767, %v763
    %v1016 = vpack.c.b16 %v768, %v764
    %v1017 = vpack.c.b16 %v773, %v769
    %v1018 = vpack.c.b16 %v774, %v770
    %v1019 = vpack.c.b16 %v775, %v771
    %v1020 = vpack.c.b16 %v776, %v772
    %v1021 = vpack.c.b16 %v781, %v777
    %v1022 = vpack.c.b16 %v782, %v778
    %v1023 = vpack.c.b16 %v783, %v779
    %v1024 = vpack.c.b16 %v784, %v780
    %v1025 = vpack.c.b16 %v789, %v785
    %v1026 = vpack.c.b16 %v790, %v786
    %v1027 = vpack.c.b16 %v791, %v787
    %v1028 = vpack.c.b16 %v792, %v788
    %v1029 = vpack.c.b16 %v797, %v793
    %v1030 = vpack.c.b16 %v798, %v794
    %v1031 = vpack.c.b16 %v799, %v795
    %v1032 = vpack.c.b16 %v800, %v796
    %v1033 = vpack.c.b16 %v805, %v801
    %v1034 = vpack.c.b16 %v806, %v802
    %v1035 = vpack.c.b16 %v807, %v803
    %v1036 = vpack.c.b16 %v808, %v804
    %v1037 = vpack.c.b16 %v813, %v809
    %v1038 = vpack.c.b16 %v814, %v810
    %v1039 = vpack.c.b16 %v815, %v811
    %v1040 = vpack.c.b16 %v816, %v812
    %v1041 = vpack.c.b16 %v821, %v817
    %v1042 = vpack.c.b16 %v822, %v818
    %v1043 = vpack.c.b16 %v823, %v819
    %v1044 = vpack.c.b16 %v824, %v820
    %v1045 = vpack.c.b16 %v829, %v825
    %v1046 = vpack.c.b16 %v830, %v826
    %v1047 = vpack.c.b16 %v831, %v827
    %v1048 = vpack.c.b16 %v832, %v828
    %v1049 = vpack.c.b16 %v837, %v833
    %v1050 = vpack.c.b16 %v838, %v834
    %v1051 = vpack.c.b16 %v839, %v835
    %v1052 = vpack.c.b16 %v840, %v836
    %v1053 = vpack.c.b16 %v845, %v841
    %v1054 = vpack.c.b16 %v846, %v842
    %v1055 = vpack.c.b16 %v847, %v843
    %v1056 = vpack.c.b16 %v848, %v844
    %v1057 = vpack.c.b16 %v853, %v849
    %v1058 = vpack.c.b16 %v854, %v850
    %v1059 = vpack.c.b16 %v855, %v851
    %v1060 = vpack.c.b16 %v856, %v852
    %v1061 = vpack.c.b16 %v861, %v857
    %v1062 = vpack.c.b16 %v862, %v858
    %v1063 = vpack.c.b16 %v863, %v859
    %v1064 = vpack.c.b16 %v864, %v860
    %v1065 = vpack.c.b16 %v869, %v865
    %v1066 = vpack.c.b16 %v870, %v866
    %v1067 = vpack.c.b16 %v871, %v867
    %v1068 = vpack.c.b16 %v872, %v868
    %v1069 = vpack.c.b16 %v877, %v873
    %v1070 = vpack.c.b16 %v878, %v874
    %v1071 = vpack.c.b16 %v879, %v875
    %v1072 = vpack.c.b16 %v880, %v876
    %v1073 = vpack.c.b16 %v885, %v881
    %v1074 = vpack.c.b16 %v886, %v882
    %v1075 = vpack.c.b16 %v887, %v883
    %v1076 = vpack.c.b16 %v888, %v884
    %v1077 = vpack.c.b16 %v893, %v889
    %v1078 = vpack.c.b16 %v894, %v890
    %v1079 = vpack.c.b16 %v895, %v891
    %v1080 = vpack.c.b16 %v896, %v892
    %v1081 = vpack.c.b16 %v901, %v897
    %v1082 = vpack.c.b16 %v902, %v898
    %v1083 = vpack.c.b16 %v903, %v899
    %v1084 = vpack.c.b16 %v904, %v900
    %v1085 = vpack.c.b16 %v909, %v905
    %v1086 = vpack.c.b16 %v910, %v906
    %v1087 = vpack.c.b16 %v911, %v907
    %v1088 = vpack.c.b16 %v912, %v908
    %v1089 = vpack.c.b16 %v917, %v913
    %v1090 = vpack.c.b16 %v918, %v914
    %v1091 = vpack.c.b16 %v919, %v915
    %v1092 = vpack.c.b16 %v920, %v916
    %v1093 = vpack.c.b16 %v925, %v921
    %v1094 = vpack.c.b16 %v926, %v922
    %v1095 = vpack.c.b16 %v927, %v923
    %v1096 = vpack.c.b16 %v928, %v924
    %v1097 = vpack.c.b16 %v933, %v929
    %v1098 = vpack.c.b16 %v934, %v930
    %v1099 = vpack.c.b16 %v935, %v931
    %v1100 = vpack.c.b16 %v936, %v932
    %v1101 = vpack.c.b16 %v941, %v937
    %v1102 = vpack.c.b16 %v942, %v938
    %v1103 = vpack.c.b16 %v943, %v939
    %v1104 = vpack.c.b16 %v944, %v940
    %v1105 = vpack.c.b16 %v949, %v945
    %v1106 = vpack.c.b16 %v950, %v946
    %v1107 = vpack.c.b16 %v951, %v947
    %v1108 = vpack.c.b16 %v952, %v948
    %v1109 = vpack.c.b16 %v957, %v953
    %v1110 = vpack.c.b16 %v958, %v954
    %v1111 = vpack.c.b16 %v959, %v955
    %v1112 = vpack.c.b16 %v960, %v956
    %v1113 = vpack.c.b16 %v965, %v961
    %v1114 = vpack.c.b16 %v966, %v962
    %v1115 = vpack.c.b16 %v967, %v963
    %v1116 = vpack.c.b16 %v968, %v964
    %v1117 = vpack.c.b16 %v973, %v969
    %v1118 = vpack.c.b16 %v974, %v970
    %v1119 = vpack.c.b16 %v975, %v971
    %v1120 = vpack.c.b16 %v976, %v972
    %v1121 = vpack.c.b16 %v981, %v977
    %v1122 = vpack.c.b16 %v982, %v978
    %v1123 = vpack.c.b16 %v983, %v979
    %v1124 = vpack.c.b16 %v984, %v980
    %v1125 = vpack.c.b16 %v989, %v985
    %v1126 = vpack.c.b16 %v990, %v986
    %v1127 = vpack.c.b16 %v991, %v987
    %v1128 = vpack.c.b16 %v992, %v988
    %v1129 = vpack.c.b16 %v997, %v993
    %v1130 = vpack.c.b16 %v998, %v994
    %v1131 = vpack.c.b16 %v999, %v995
    %v1132 = vpack.c.b16 %v1000, %v996
    %v1133 = vpack.c.b16 %v1005, %v1001
    %v1134 = vpack.c.b16 %v1006, %v1002
    %v1135 = vpack.c.b16 %v1007, %v1003
    %v1136 = vpack.c.b16 %v1008, %v1004
    %1265 = vmatprep.subr.bf16.mxu0 %v1010
    %1266 = vmatpush1.bf16.msra.mxu0 %v1009
    %1267 = vmatprep.subr.bf16.mxu0 %v1014
    %1268 = vmatpush1.bf16.msra.mxu0 %v1013
    %1269 = vmatprep.subr.bf16.mxu0 %v1018
    %1270 = vmatpush1.bf16.msra.mxu0 %v1017
    %1271 = vmatprep.subr.bf16.mxu0 %v1022
    %1272 = vmatpush1.bf16.msra.mxu0 %v1021
    %1273 = vmatprep.subr.bf16.mxu0 %v1026
    %1274 = vmatpush1.bf16.msra.mxu0 %v1025
    %1275 = vmatprep.subr.bf16.mxu0 %v1030
    %1276 = vmatpush1.bf16.msra.mxu0 %v1029
    %1277 = vmatprep.subr.bf16.mxu0 %v1034
    %1278 = vmatpush1.bf16.msra.mxu0 %v1033
    %1279 = vmatprep.subr.bf16.mxu0 %v1038
    %1280 = vmatpush1.bf16.msra.mxu0 %v1037
    %1281 = vmatprep.subr.bf16.mxu0 %v1042
    %1282 = vmatpush1.bf16.msra.mxu0 %v1041
    %1283 = vmatprep.subr.bf16.mxu0 %v1046
    %1284 = vmatpush1.bf16.msra.mxu0 %v1045
    %1285 = vmatprep.subr.bf16.mxu0 %v1050
    %1286 = vmatpush1.bf16.msra.mxu0 %v1049
    %1287 = vmatprep.subr.bf16.mxu0 %v1054
    %1288 = vmatpush1.bf16.msra.mxu0 %v1053
    %1289 = vmatprep.subr.bf16.mxu0 %v1058
    %1290 = vmatpush1.bf16.msra.mxu0 %v1057
    %1291 = vmatprep.subr.bf16.mxu0 %v1062
    %1292 = vmatpush1.bf16.msra.mxu0 %v1061
    %1293 = vmatprep.subr.bf16.mxu0 %v1066
    %1294 = vmatpush1.bf16.msra.mxu0 %v1065
    %1295 = vmatprep.subr.bf16.mxu0 %v1070
    %1296 = vmatpush1.bf16.msra.mxu0 %v1069
    %1297 = vmatprep.mubr.bf16.mxu0 %v472
    %1298 = vmatmul.mubr.bf16.gmra.mrb[0].mxu0 %v471
    %v1299 = vpop.f32.mrb[0].mxu0
    %v1300 = vadd.f32 %v608, %v1299
    %v1301 = vpop.f32.mrb[0].mxu0
    %v1302 = vadd.f32 %v612, %v1301
    %v1303 = vpop.f32.mrb[0].mxu0
    %v1304 = vpop.f32.mrb[0].mxu0
    %1305 = vdwg.mxu0
    %1306 = vmatprep.subr.bf16.mxu0 %v1074
    %1307 = vmatpush1.bf16.msra.mxu0 %v1073
    %1308 = vmatprep.subr.bf16.mxu0 %v1078
    %1309 = vmatpush1.bf16.msra.mxu0 %v1077
    %1310 = vmatprep.subr.bf16.mxu0 %v1082
    %1311 = vmatpush1.bf16.msra.mxu0 %v1081
    %1312 = vmatprep.subr.bf16.mxu0 %v1086
    %1313 = vmatpush1.bf16.msra.mxu0 %v1085
    %1314 = vmatprep.subr.bf16.mxu0 %v1090
    %1315 = vmatpush1.bf16.msra.mxu0 %v1089
    %1316 = vmatprep.subr.bf16.mxu0 %v1094
    %1317 = vmatpush1.bf16.msra.mxu0 %v1093
    %1318 = vmatprep.subr.bf16.mxu0 %v1098
    %1319 = vmatpush1.bf16.msra.mxu0 %v1097
    %1320 = vmatprep.subr.bf16.mxu0 %v1102
    %1321 = vmatpush1.bf16.msra.mxu0 %v1101
    %1322 = vmatprep.subr.bf16.mxu0 %v1106
    %1323 = vmatpush1.bf16.msra.mxu0 %v1105
    %1324 = vmatprep.subr.bf16.mxu0 %v1110
    %1325 = vmatpush1.bf16.msra.mxu0 %v1109
    %1326 = vmatprep.subr.bf16.mxu0 %v1114
    %1327 = vmatpush1.bf16.msra.mxu0 %v1113
    %1328 = vmatprep.subr.bf16.mxu0 %v1118
    %1329 = vmatpush1.bf16.msra.mxu0 %v1117
    %1330 = vmatprep.subr.bf16.mxu0 %v1122
    %1331 = vmatpush1.bf16.msra.mxu0 %v1121
    %1332 = vmatprep.subr.bf16.mxu0 %v1126
    %1333 = vmatpush1.bf16.msra.mxu0 %v1125
    %1334 = vmatprep.subr.bf16.mxu0 %v1130
    %1335 = vmatpush1.bf16.msra.mxu0 %v1129
    %1336 = vmatprep.subr.bf16.mxu0 %v1134
    %1337 = vmatpush1.bf16.msra.mxu0 %v1133
    %1338 = vmatprep.mubr.bf16.mxu0 %v474
    %1339 = vmatmul.mubr.bf16.gmra.mrb[0].mxu0 %v473
    %v1340 = vpop.f32.mrb[0].mxu0
    %v1341 = vadd.f32 %v1300, %v1340
    %v1342 = vpop.f32.mrb[0].mxu0
    %v1343 = vadd.f32 %v1302, %v1342
    %v1344 = vpop.f32.mrb[0].mxu0
    %v1345 = vpop.f32.mrb[0].mxu0
    %1346 = vdwg.mxu0
    %1347 = vmatprep.subr.bf16.mxu0 %v1012
    %1348 = vmatpush1.bf16.msra.mxu0 %v1011
    %1349 = vmatprep.subr.bf16.mxu0 %v1016
    %1350 = vmatpush1.bf16.msra.mxu0 %v1015
    %1351 = vmatprep.subr.bf16.mxu0 %v1020
    %1352 = vmatpush1.bf16.msra.mxu0 %v1019
    %1353 = vmatprep.subr.bf16.mxu0 %v1024
    %1354 = vmatpush1.bf16.msra.mxu0 %v1023
    %1355 = vmatprep.subr.bf16.mxu0 %v1028
    %1356 = vmatpush1.bf16.msra.mxu0 %v1027
    %1357 = vmatprep.subr.bf16.mxu0 %v1032
    %1358 = vmatpush1.bf16.msra.mxu0 %v1031
    %1359 = vmatprep.subr.bf16.mxu0 %v1036
    %1360 = vmatpush1.bf16.msra.mxu0 %v1035
    %1361 = vmatprep.subr.bf16.mxu0 %v1040
    %1362 = vmatpush1.bf16.msra.mxu0 %v1039
    %1363 = vmatprep.subr.bf16.mxu0 %v1044
    %1364 = vmatpush1.bf16.msra.mxu0 %v1043
    %1365 = vmatprep.subr.bf16.mxu0 %v1048
    %1366 = vmatpush1.bf16.msra.mxu0 %v1047
    %1367 = vmatprep.subr.bf16.mxu0 %v1052
    %1368 = vmatpush1.bf16.msra.mxu0 %v1051
    %1369 = vmatprep.subr.bf16.mxu0 %v1056
    %1370 = vmatpush1.bf16.msra.mxu0 %v1055
    %1371 = vmatprep.subr.bf16.mxu0 %v1060
    %1372 = vmatpush1.bf16.msra.mxu0 %v1059
    %1373 = vmatprep.subr.bf16.mxu0 %v1064
    %1374 = vmatpush1.bf16.msra.mxu0 %v1063
    %1375 = vmatprep.subr.bf16.mxu0 %v1068
    %1376 = vmatpush1.bf16.msra.mxu0 %v1067
    %1377 = vmatprep.subr.bf16.mxu0 %v1072
    %1378 = vmatpush1.bf16.msra.mxu0 %v1071
    %1379 = vmatprep.mubr.bf16.mxu0 %v472
    %1380 = vmatmul.mubr.bf16.gmra.mrb[0].mxu0 %v471
    %v1381 = vpop.f32.mrb[0].mxu0
    %v1382 = vadd.f32 %v616, %v1381
    %v1383 = vpop.f32.mrb[0].mxu0
    %v1384 = vadd.f32 %v620, %v1383
    %v1385 = vpop.f32.mrb[0].mxu0
    %v1386 = vpop.f32.mrb[0].mxu0
    %1387 = vdwg.mxu0
    %1388 = vmatprep.subr.bf16.mxu0 %v1076
    %1389 = vmatpush1.bf16.msra.mxu0 %v1075
    %1390 = vmatprep.subr.bf16.mxu0 %v1080
    %1391 = vmatpush1.bf16.msra.mxu0 %v1079
    %1392 = vmatprep.subr.bf16.mxu0 %v1084
    %1393 = vmatpush1.bf16.msra.mxu0 %v1083
    %1394 = vmatprep.subr.bf16.mxu0 %v1088
    %1395 = vmatpush1.bf16.msra.mxu0 %v1087
    %1396 = vmatprep.subr.bf16.mxu0 %v1092
    %1397 = vmatpush1.bf16.msra.mxu0 %v1091
    %1398 = vmatprep.subr.bf16.mxu0 %v1096
    %1399 = vmatpush1.bf16.msra.mxu0 %v1095
    %1400 = vmatprep.subr.bf16.mxu0 %v1100
    %1401 = vmatpush1.bf16.msra.mxu0 %v1099
    %1402 = vmatprep.subr.bf16.mxu0 %v1104
    %1403 = vmatpush1.bf16.msra.mxu0 %v1103
    %1404 = vmatprep.subr.bf16.mxu0 %v1108
    %1405 = vmatpush1.bf16.msra.mxu0 %v1107
    %1406 = vmatprep.subr.bf16.mxu0 %v1112
    %1407 = vmatpush1.bf16.msra.mxu0 %v1111
    %1408 = vmatprep.subr.bf16.mxu0 %v1116
    %1409 = vmatpush1.bf16.msra.mxu0 %v1115
    %1410 = vmatprep.subr.bf16.mxu0 %v1120
    %1411 = vmatpush1.bf16.msra.mxu0 %v1119
    %1412 = vmatprep.subr.bf16.mxu0 %v1124
    %1413 = vmatpush1.bf16.msra.mxu0 %v1123
    %1414 = vmatprep.subr.bf16.mxu0 %v1128
    %1415 = vmatpush1.bf16.msra.mxu0 %v1127
    %1416 = vmatprep.subr.bf16.mxu0 %v1132
    %1417 = vmatpush1.bf16.msra.mxu0 %v1131
    %1418 = vmatprep.subr.bf16.mxu0 %v1136
    %1419 = vmatpush1.bf16.msra.mxu0 %v1135
    %1420 = vmatprep.mubr.bf16.mxu0 %v474
    %1421 = vmatmul.mubr.bf16.gmra.mrb[0].mxu0 %v473
    %v1422 = vpop.f32.mrb[0].mxu0
    %v1423 = vadd.f32 %v1382, %v1422
    %v1424 = vpop.f32.mrb[0].mxu0
    %v1425 = vadd.f32 %v1384, %v1424
    %v1426 = vpop.f32.mrb[0].mxu0
    %v1427 = vpop.f32.mrb[0].mxu0
    %1428 = vdwg.mxu0
    %v1429 = vmax.f32 %v1341, 0.0
    %v1430 = vmax.f32 %v1343, 0.0
    %v1431 = vmax.f32 %v1423, 0.0
    %v1432 = vmax.f32 %v1425, 0.0
    %v1433 = vld [vmem:[#allocation5] sm:$0xf]
    %v1434 = vld [vmem:[#allocation10] sm:$0xff]
    %v1435 = vld [vmem:[#allocation10 + $0x8] sm:$0xff]
    %v1436 = vld [vmem:[#allocation10 + $0x10] sm:$0xff]
    %v1437 = vld [vmem:[#allocation10 + $0x18] sm:$0xff]
    %v1438 = vld [vmem:[#allocation10 + $0x20] sm:$0xff]
    %v1439 = vld [vmem:[#allocation10 + $0x28] sm:$0xff]
    %v1440 = vld [vmem:[#allocation10 + $0x30] sm:$0xff]
    %v1441 = vld [vmem:[#allocation10 + $0x38] sm:$0xff]
    %v1442 = vld [vmem:[#allocation10 + $0x40] sm:$0xff]
    %v1443 = vld [vmem:[#allocation10 + $0x48] sm:$0xff]
    %v1444 = vld [vmem:[#allocation10 + $0x50] sm:$0xff]
    %v1445 = vld [vmem:[#allocation10 + $0x58] sm:$0xff]
    %v1446 = vld [vmem:[#allocation10 + $0x60] sm:$0xff]
    %v1447 = vld [vmem:[#allocation10 + $0x68] sm:$0xff]
    %v1448 = vld [vmem:[#allocation10 + $0x70] sm:$0xff]
    %v1449 = vld [vmem:[#allocation10 + $0x78] sm:$0xff]
    %v1450 = vld [vmem:[%s7] sm:$0xf]
    %v1452 = vlaneseq
    %v1453 = vshrl.u32 %v1452, 7
    %v1454 = vsub.s32 0, %v1453
    %v1455 = vrot.slane %v1450, %v1454
    %v1456 = vlaneseq
    %v1457 = vshrl.u32 %v1456, 7
    %v1458 = vsub.s32 1, %v1457
    %v1459 = vrot.slane %v1450, %v1458
    %v1460 = vlaneseq
    %v1461 = vshrl.u32 %v1460, 7
    %v1462 = vsub.s32 2, %v1461
    %v1463 = vrot.slane %v1450, %v1462
    %v1464 = vlaneseq
    %v1465 = vshrl.u32 %v1464, 7
    %v1466 = vsub.s32 3, %v1465
    %v1467 = vrot.slane %v1450, %v1466
    %v1488 = vunpack.c.l.b16 %v1434
    %v1489 = vunpack.c.h.b16 %v1434
    %v1490 = vunpack.c.l.b16 %v1435
    %v1491 = vunpack.c.h.b16 %v1435
    %v1492 = vunpack.c.l.b16 %v1436
    %v1493 = vunpack.c.h.b16 %v1436
    %v1494 = vunpack.c.l.b16 %v1437
    %v1495 = vunpack.c.h.b16 %v1437
    %v1496 = vunpack.c.l.b16 %v1438
    %v1497 = vunpack.c.h.b16 %v1438
    %v1498 = vunpack.c.l.b16 %v1439
    %v1499 = vunpack.c.h.b16 %v1439
    %v1500 = vunpack.c.l.b16 %v1440
    %v1501 = vunpack.c.h.b16 %v1440
    %v1502 = vunpack.c.l.b16 %v1441
    %v1503 = vunpack.c.h.b16 %v1441
    %v1504 = vunpack.c.l.b16 %v1442
    %v1505 = vunpack.c.h.b16 %v1442
    %v1506 = vunpack.c.l.b16 %v1443
    %v1507 = vunpack.c.h.b16 %v1443
    %v1508 = vunpack.c.l.b16 %v1444
    %v1509 = vunpack.c.h.b16 %v1444
    %v1510 = vunpack.c.l.b16 %v1445
    %v1511 = vunpack.c.h.b16 %v1445
    %v1512 = vunpack.c.l.b16 %v1446
    %v1513 = vunpack.c.h.b16 %v1446
    %v1514 = vunpack.c.l.b16 %v1447
    %v1515 = vunpack.c.h.b16 %v1447
    %v1516 = vunpack.c.l.b16 %v1448
    %v1517 = vunpack.c.h.b16 %v1448
    %v1518 = vunpack.c.l.b16 %v1449
    %v1519 = vunpack.c.h.b16 %v1449
    %v1520 = vpack.c.b16 %v1492, %v1488
    %v1521 = vpack.c.b16 %v1493, %v1489
    %v1522 = vpack.c.b16 %v1494, %v1490
    %v1523 = vpack.c.b16 %v1495, %v1491
    %v1524 = vpack.c.b16 %v1500, %v1496
    %v1525 = vpack.c.b16 %v1501, %v1497
    %v1526 = vpack.c.b16 %v1502, %v1498
    %v1527 = vpack.c.b16 %v1503, %v1499
    %v1528 = vpack.c.b16 %v1508, %v1504
    %v1529 = vpack.c.b16 %v1509, %v1505
    %v1530 = vpack.c.b16 %v1510, %v1506
    %v1531 = vpack.c.b16 %v1511, %v1507
    %v1532 = vpack.c.b16 %v1516, %v1512
    %v1533 = vpack.c.b16 %v1517, %v1513
    %v1534 = vpack.c.b16 %v1518, %v1514
    %v1535 = vpack.c.b16 %v1519, %v1515
    %vm1552 = vcmask 523264
    %v1554 = vsel %vm1552, %v1433, 0
    %1556 = vmatprep.subr.bf16.mxu0 %v1521
    %1557 = vmatpush1.bf16.msra.mxu0 %v1520
    %1558 = vmatprep.subr.bf16.mxu0 %v1525
    %1559 = vmatpush1.bf16.msra.mxu0 %v1524
    %1560 = vmatprep.subr.bf16.mxu0 %v1529
    %1561 = vmatpush1.bf16.msra.mxu0 %v1528
    %1562 = vmatprep.subr.bf16.mxu0 %v1533
    %1563 = vmatpush1.bf16.msra.mxu0 %v1532
    %1564 = vmatprep.subr.bf16.mxu0 0
    %1565 = vmatpush1.bf16.msra.mxu0 0
    %1566 = vmatprep.subr.bf16.mxu0 0
    %1567 = vmatpush1.bf16.msra.mxu0 0
    %1568 = vmatprep.subr.bf16.mxu0 0
    %1569 = vmatpush1.bf16.msra.mxu0 0
    %1570 = vmatprep.subr.bf16.mxu0 0
    %1571 = vmatpush1.bf16.msra.mxu0 0
    %1572 = vmatprep.subr.bf16.mxu0 0
    %1573 = vmatpush1.bf16.msra.mxu0 0
    %1574 = vmatprep.subr.bf16.mxu0 0
    %1575 = vmatpush1.bf16.msra.mxu0 0
    %1576 = vmatprep.subr.bf16.mxu0 0
    %1577 = vmatpush1.bf16.msra.mxu0 0
    %1578 = vmatprep.subr.bf16.mxu0 0
    %1579 = vmatpush1.bf16.msra.mxu0 0
    %1580 = vmatprep.subr.bf16.mxu0 0
    %1581 = vmatpush1.bf16.msra.mxu0 0
    %1582 = vmatprep.subr.bf16.mxu0 0
    %1583 = vmatpush1.bf16.msra.mxu0 0
    %1584 = vmatprep.subr.bf16.mxu0 0
    %1585 = vmatpush1.bf16.msra.mxu0 0
    %1586 = vmatprep.subr.bf16.mxu0 0
    %1587 = vmatpush1.bf16.msra.mxu0 0
    %1588 = vmatprep.mubr.bf16.mxu0 0
    %1589 = vmatmul.mubr.bf16.gmra.mrb[0].mxu0 %v1554
    %v1590 = vpop.f32.mrb[0].mxu0
    %v1591 = vadd.f32 %v1455, %v1590
    %v1592 = vpop.f32.mrb[0].mxu0
    %v1593 = vadd.f32 %v1459, %v1592
    %v1594 = vpop.f32.mrb[0].mxu0
    %v1595 = vpop.f32.mrb[0].mxu0
    %1596 = vdwg.mxu0
    %1597 = vmatprep.subr.bf16.mxu0 %v1523
    %1598 = vmatpush1.bf16.msra.mxu0 %v1522
    %1599 = vmatprep.subr.bf16.mxu0 %v1527
    %1600 = vmatpush1.bf16.msra.mxu0 %v1526
    %1601 = vmatprep.subr.bf16.mxu0 %v1531
    %1602 = vmatpush1.bf16.msra.mxu0 %v1530
    %1603 = vmatprep.subr.bf16.mxu0 %v1535
    %1604 = vmatpush1.bf16.msra.mxu0 %v1534
    %1605 = vmatprep.subr.bf16.mxu0 0
    %1606 = vmatpush1.bf16.msra.mxu0 0
    %1607 = vmatprep.subr.bf16.mxu0 0
    %1608 = vmatpush1.bf16.msra.mxu0 0
    %1609 = vmatprep.subr.bf16.mxu0 0
    %1610 = vmatpush1.bf16.msra.mxu0 0
    %1611 = vmatprep.subr.bf16.mxu0 0
    %1612 = vmatpush1.bf16.msra.mxu0 0
    %1613 = vmatprep.subr.bf16.mxu0 0
    %1614 = vmatpush1.bf16.msra.mxu0 0
    %1615 = vmatprep.subr.bf16.mxu0 0
    %1616 = vmatpush1.bf16.msra.mxu0 0
    %1617 = vmatprep.subr.bf16.mxu0 0
    %1618 = vmatpush1.bf16.msra.mxu0 0
    %1619 = vmatprep.subr.bf16.mxu0 0
    %1620 = vmatpush1.bf16.msra.mxu0 0
    %1621 = vmatprep.subr.bf16.mxu0 0
    %1622 = vmatpush1.bf16.msra.mxu0 0
    %1623 = vmatprep.subr.bf16.mxu0 0
    %1624 = vmatpush1.bf16.msra.mxu0 0
    %1625 = vmatprep.subr.bf16.mxu0 0
    %1626 = vmatpush1.bf16.msra.mxu0 0
    %1627 = vmatprep.subr.bf16.mxu0 0
    %1628 = vmatpush1.bf16.msra.mxu0 0
    %1629 = vmatprep.mubr.bf16.mxu0 0
    %1630 = vmatmul.mubr.bf16.gmra.mrb[0].mxu0 %v1554
    %v1631 = vpop.f32.mrb[0].mxu0
    %v1632 = vadd.f32 %v1463, %v1631
    %v1633 = vpop.f32.mrb[0].mxu0
    %v1634 = vadd.f32 %v1467, %v1633
    %v1635 = vpop.f32.mrb[0].mxu0
    %v1636 = vpop.f32.mrb[0].mxu0
    %1637 = vdwg.mxu0
    %v1638 = vmax.f32 %v1591, 0.0
    %v1639 = vmax.f32 %v1593, 0.0
    %v1640 = vmax.f32 %v1632, 0.0
    %v1641 = vmax.f32 %v1634, 0.0
    %v1642 = vpack.c.bf16 %v1638, %v1638
    %v1643 = vpack.c.bf16 %v1639, %v1639
    %v1644 = vpack.c.bf16 %v1640, %v1640
    %v1645 = vpack.c.bf16 %v1641, %v1641
    %v1646 = vld [vmem:[#allocation11] sm:$0xff]
    %v1647 = vld [vmem:[#allocation11 + $0x8] sm:$0xff]
    %v1648 = vld [vmem:[#allocation11 + $0x10] sm:$0xff]
    %v1649 = vld [vmem:[#allocation11 + $0x18] sm:$0xff]
    %v1650 = vld [vmem:[#allocation11 + $0x20] sm:$0xff]
    %v1651 = vld [vmem:[#allocation11 + $0x28] sm:$0xff]
    %v1652 = vld [vmem:[#allocation11 + $0x30] sm:$0xff]
    %v1653 = vld [vmem:[#allocation11 + $0x38] sm:$0xff]
    %v1654 = vld [vmem:[#allocation11 + $0x40] sm:$0xff]
    %v1655 = vld [vmem:[#allocation11 + $0x48] sm:$0xff]
    %v1656 = vld [vmem:[#allocation11 + $0x50] sm:$0xff]
    %v1657 = vld [vmem:[#allocation11 + $0x58] sm:$0xff]
    %v1658 = vld [vmem:[#allocation11 + $0x60] sm:$0xff]
    %v1659 = vld [vmem:[#allocation11 + $0x68] sm:$0xff]
    %v1660 = vld [vmem:[#allocation11 + $0x70] sm:$0xff]
    %v1661 = vld [vmem:[#allocation11 + $0x78] sm:$0xff]
    %v1662 = vld [vmem:[#allocation11 + $0x80] sm:$0xff]
    %v1663 = vld [vmem:[#allocation11 + $0x88] sm:$0xff]
    %v1664 = vld [vmem:[#allocation11 + $0x90] sm:$0xff]
    %v1665 = vld [vmem:[#allocation11 + $0x98] sm:$0xff]
    %v1666 = vld [vmem:[#allocation11 + $0xa0] sm:$0xff]
    %v1667 = vld [vmem:[#allocation11 + $0xa8] sm:$0xff]
    %v1668 = vld [vmem:[#allocation11 + $0xb0] sm:$0xff]
    %v1669 = vld [vmem:[#allocation11 + $0xb8] sm:$0xff]
    %v1670 = vld [vmem:[#allocation11 + $0xc0] sm:$0xff]
    %v1671 = vld [vmem:[#allocation11 + $0xc8] sm:$0xff]
    %v1672 = vld [vmem:[#allocation11 + $0xd0] sm:$0xff]
    %v1673 = vld [vmem:[#allocation11 + $0xd8] sm:$0xff]
    %v1674 = vld [vmem:[#allocation11 + $0xe0] sm:$0xff]
    %v1675 = vld [vmem:[#allocation11 + $0xe8] sm:$0xff]
    %v1676 = vld [vmem:[#allocation11 + $0xf0] sm:$0xff]
    %v1677 = vld [vmem:[#allocation11 + $0xf8] sm:$0xff]
    %v1678 = vld [vmem:[#allocation11 + $0x100] sm:$0xff]
    %v1679 = vld [vmem:[#allocation11 + $0x108] sm:$0xff]
    %v1680 = vld [vmem:[#allocation11 + $0x110] sm:$0xff]
    %v1681 = vld [vmem:[#allocation11 + $0x118] sm:$0xff]
    %v1682 = vld [vmem:[#allocation11 + $0x120] sm:$0xff]
    %v1683 = vld [vmem:[#allocation11 + $0x128] sm:$0xff]
    %v1684 = vld [vmem:[#allocation11 + $0x130] sm:$0xff]
    %v1685 = vld [vmem:[#allocation11 + $0x138] sm:$0xff]
    %v1686 = vld [vmem:[#allocation11 + $0x140] sm:$0xff]
    %v1687 = vld [vmem:[#allocation11 + $0x148] sm:$0xff]
    %v1688 = vld [vmem:[#allocation11 + $0x150] sm:$0xff]
    %v1689 = vld [vmem:[#allocation11 + $0x158] sm:$0xff]
    %v1690 = vld [vmem:[#allocation11 + $0x160] sm:$0xff]
    %v1691 = vld [vmem:[#allocation11 + $0x168] sm:$0xff]
    %v1692 = vld [vmem:[#allocation11 + $0x170] sm:$0xff]
    %v1693 = vld [vmem:[#allocation11 + $0x178] sm:$0xff]
    %v1694 = vld [vmem:[#allocation11 + $0x180] sm:$0xff]
    %v1695 = vld [vmem:[#allocation11 + $0x188] sm:$0xff]
    %v1696 = vld [vmem:[#allocation11 + $0x190] sm:$0xff]
    %v1697 = vld [vmem:[#allocation11 + $0x198] sm:$0xff]
    %v1698 = vld [vmem:[#allocation11 + $0x1a0] sm:$0xff]
    %v1699 = vld [vmem:[#allocation11 + $0x1a8] sm:$0xff]
    %v1700 = vld [vmem:[#allocation11 + $0x1b0] sm:$0xff]
    %v1701 = vld [vmem:[#allocation11 + $0x1b8] sm:$0xff]
    %v1702 = vld [vmem:[#allocation11 + $0x1c0] sm:$0xff]
    %v1703 = vld [vmem:[#allocation11 + $0x1c8] sm:$0xff]
    %v1704 = vld [vmem:[#allocation11 + $0x1d0] sm:$0xff]
    %v1705 = vld [vmem:[#allocation11 + $0x1d8] sm:$0xff]
    %v1706 = vld [vmem:[#allocation11 + $0x1e0] sm:$0xff]
    %v1707 = vld [vmem:[#allocation11 + $0x1e8] sm:$0xff]
    %v1708 = vld [vmem:[#allocation11 + $0x1f0] sm:$0xff]
    %v1709 = vld [vmem:[#allocation11 + $0x1f8] sm:$0xff]
    %v1710 = vld [vmem:[#allocation11 + $0x200] sm:$0xff]
    %v1711 = vld [vmem:[#allocation11 + $0x208] sm:$0xff]
    %v1712 = vld [vmem:[#allocation11 + $0x210] sm:$0xff]
    %v1713 = vld [vmem:[#allocation11 + $0x218] sm:$0xff]
    %v1714 = vld [vmem:[#allocation11 + $0x220] sm:$0xff]
    %v1715 = vld [vmem:[#allocation11 + $0x228] sm:$0xff]
    %v1716 = vld [vmem:[#allocation11 + $0x230] sm:$0xff]
    %v1717 = vld [vmem:[#allocation11 + $0x238] sm:$0xff]
    %v1718 = vld [vmem:[#allocation11 + $0x240] sm:$0xff]
    %v1719 = vld [vmem:[#allocation11 + $0x248] sm:$0xff]
    %v1720 = vld [vmem:[#allocation11 + $0x250] sm:$0xff]
    %v1721 = vld [vmem:[#allocation11 + $0x258] sm:$0xff]
    %v1722 = vld [vmem:[#allocation11 + $0x260] sm:$0xff]
    %v1723 = vld [vmem:[#allocation11 + $0x268] sm:$0xff]
    %v1724 = vld [vmem:[#allocation11 + $0x270] sm:$0xff]
    %v1725 = vld [vmem:[#allocation11 + $0x278] sm:$0xff]
    %v1726 = vld [vmem:[#allocation11 + $0x280] sm:$0xff]
    %v1727 = vld [vmem:[#allocation11 + $0x288] sm:$0xff]
    %v1728 = vld [vmem:[#allocation11 + $0x290] sm:$0xff]
    %v1729 = vld [vmem:[#allocation11 + $0x298] sm:$0xff]
    %v1730 = vld [vmem:[#allocation11 + $0x2a0] sm:$0xff]
    %v1731 = vld [vmem:[#allocation11 + $0x2a8] sm:$0xff]
    %v1732 = vld [vmem:[#allocation11 + $0x2b0] sm:$0xff]
    %v1733 = vld [vmem:[#allocation11 + $0x2b8] sm:$0xff]
    %v1734 = vld [vmem:[#allocation11 + $0x2c0] sm:$0xff]
    %v1735 = vld [vmem:[#allocation11 + $0x2c8] sm:$0xff]
    %v1736 = vld [vmem:[#allocation11 + $0x2d0] sm:$0xff]
    %v1737 = vld [vmem:[#allocation11 + $0x2d8] sm:$0xff]
    %v1738 = vld [vmem:[#allocation11 + $0x2e0] sm:$0xff]
    %v1739 = vld [vmem:[#allocation11 + $0x2e8] sm:$0xff]
    %v1740 = vld [vmem:[#allocation11 + $0x2f0] sm:$0xff]
    %v1741 = vld [vmem:[#allocation11 + $0x2f8] sm:$0xff]
    %v1742 = vld [vmem:[#allocation11 + $0x300] sm:$0xff]
    %v1743 = vld [vmem:[#allocation11 + $0x308] sm:$0xff]
    %v1744 = vld [vmem:[#allocation11 + $0x310] sm:$0xff]
    %v1745 = vld [vmem:[#allocation11 + $0x318] sm:$0xff]
    %v1746 = vld [vmem:[#allocation11 + $0x320] sm:$0xff]
    %v1747 = vld [vmem:[#allocation11 + $0x328] sm:$0xff]
    %v1748 = vld [vmem:[#allocation11 + $0x330] sm:$0xff]
    %v1749 = vld [vmem:[#allocation11 + $0x338] sm:$0xff]
    %v1750 = vld [vmem:[#allocation11 + $0x340] sm:$0xff]
    %v1751 = vld [vmem:[#allocation11 + $0x348] sm:$0xff]
    %v1752 = vld [vmem:[#allocation11 + $0x350] sm:$0xff]
    %v1753 = vld [vmem:[#allocation11 + $0x358] sm:$0xff]
    %v1754 = vld [vmem:[#allocation11 + $0x360] sm:$0xff]
    %v1755 = vld [vmem:[#allocation11 + $0x368] sm:$0xff]
    %v1756 = vld [vmem:[#allocation11 + $0x370] sm:$0xff]
    %v1757 = vld [vmem:[#allocation11 + $0x378] sm:$0xff]
    %v1758 = vld [vmem:[#allocation11 + $0x380] sm:$0xff]
    %v1759 = vld [vmem:[#allocation11 + $0x388] sm:$0xff]
    %v1760 = vld [vmem:[#allocation11 + $0x390] sm:$0xff]
    %v1761 = vld [vmem:[#allocation11 + $0x398] sm:$0xff]
    %v1762 = vld [vmem:[#allocation11 + $0x3a0] sm:$0xff]
    %v1763 = vld [vmem:[#allocation11 + $0x3a8] sm:$0xff]
    %v1764 = vld [vmem:[#allocation11 + $0x3b0] sm:$0xff]
    %v1765 = vld [vmem:[#allocation11 + $0x3b8] sm:$0xff]
    %v1766 = vld [vmem:[#allocation11 + $0x3c0] sm:$0xff]
    %v1767 = vld [vmem:[#allocation11 + $0x3c8] sm:$0xff]
    %v1768 = vld [vmem:[#allocation11 + $0x3d0] sm:$0xff]
    %v1769 = vld [vmem:[#allocation11 + $0x3d8] sm:$0xff]
    %v1770 = vld [vmem:[#allocation11 + $0x3e0] sm:$0xff]
    %v1771 = vld [vmem:[#allocation11 + $0x3e8] sm:$0xff]
    %v1772 = vld [vmem:[#allocation11 + $0x3f0] sm:$0xff]
    %v1773 = vld [vmem:[#allocation11 + $0x3f8] sm:$0xff]
    %v1774 = vld [vmem:[%s9] sm:$0xf]
    %v1776 = vlaneseq
    %v1777 = vshrl.u32 %v1776, 7
    %v1778 = vsub.s32 0, %v1777
    %v1779 = vrot.slane %v1774, %v1778
    %v1780 = vlaneseq
    %v1781 = vshrl.u32 %v1780, 7
    %v1782 = vsub.s32 1, %v1781
    %v1783 = vrot.slane %v1774, %v1782
    %v1784 = vlaneseq
    %v1785 = vshrl.u32 %v1784, 7
    %v1786 = vsub.s32 2, %v1785
    %v1787 = vrot.slane %v1774, %v1786
    %v1788 = vlaneseq
    %v1789 = vshrl.u32 %v1788, 7
    %v1790 = vsub.s32 3, %v1789
    %v1791 = vrot.slane %v1774, %v1790
    %v1924 = vunpack.c.l.b16 %v1646
    %v1925 = vunpack.c.h.b16 %v1646
    %v1926 = vunpack.c.l.b16 %v1647
    %v1927 = vunpack.c.h.b16 %v1647
    %v1928 = vunpack.c.l.b16 %v1648
    %v1929 = vunpack.c.h.b16 %v1648
    %v1930 = vunpack.c.l.b16 %v1649
    %v1931 = vunpack.c.h.b16 %v1649
    %v1932 = vunpack.c.l.b16 %v1650
    %v1933 = vunpack.c.h.b16 %v1650
    %v1934 = vunpack.c.l.b16 %v1651
    %v1935 = vunpack.c.h.b16 %v1651
    %v1936 = vunpack.c.l.b16 %v1652
    %v1937 = vunpack.c.h.b16 %v1652
    %v1938 = vunpack.c.l.b16 %v1653
    %v1939 = vunpack.c.h.b16 %v1653
    %v1940 = vunpack.c.l.b16 %v1654
    %v1941 = vunpack.c.h.b16 %v1654
    %v1942 = vunpack.c.l.b16 %v1655
    %v1943 = vunpack.c.h.b16 %v1655
    %v1944 = vunpack.c.l.b16 %v1656
    %v1945 = vunpack.c.h.b16 %v1656
    %v1946 = vunpack.c.l.b16 %v1657
    %v1947 = vunpack.c.h.b16 %v1657
    %v1948 = vunpack.c.l.b16 %v1658
    %v1949 = vunpack.c.h.b16 %v1658
    %v1950 = vunpack.c.l.b16 %v1659
    %v1951 = vunpack.c.h.b16 %v1659
    %v1952 = vunpack.c.l.b16 %v1660
    %v1953 = vunpack.c.h.b16 %v1660
    %v1954 = vunpack.c.l.b16 %v1661
    %v1955 = vunpack.c.h.b16 %v1661
    %v1956 = vunpack.c.l.b16 %v1662
    %v1957 = vunpack.c.h.b16 %v1662
    %v1958 = vunpack.c.l.b16 %v1663
    %v1959 = vunpack.c.h.b16 %v1663
    %v1960 = vunpack.c.l.b16 %v1664
    %v1961 = vunpack.c.h.b16 %v1664
    %v1962 = vunpack.c.l.b16 %v1665
    %v1963 = vunpack.c.h.b16 %v1665
    %v1964 = vunpack.c.l.b16 %v1666
    %v1965 = vunpack.c.h.b16 %v1666
    %v1966 = vunpack.c.l.b16 %v1667
    %v1967 = vunpack.c.h.b16 %v1667
    %v1968 = vunpack.c.l.b16 %v1668
    %v1969 = vunpack.c.h.b16 %v1668
    %v1970 = vunpack.c.l.b16 %v1669
    %v1971 = vunpack.c.h.b16 %v1669
    %v1972 = vunpack.c.l.b16 %v1670
    %v1973 = vunpack.c.h.b16 %v1670
    %v1974 = vunpack.c.l.b16 %v1671
    %v1975 = vunpack.c.h.b16 %v1671
    %v1976 = vunpack.c.l.b16 %v1672
    %v1977 = vunpack.c.h.b16 %v1672
    %v1978 = vunpack.c.l.b16 %v1673
    %v1979 = vunpack.c.h.b16 %v1673
    %v1980 = vunpack.c.l.b16 %v1674
    %v1981 = vunpack.c.h.b16 %v1674
    %v1982 = vunpack.c.l.b16 %v1675
    %v1983 = vunpack.c.h.b16 %v1675
    %v1984 = vunpack.c.l.b16 %v1676
    %v1985 = vunpack.c.h.b16 %v1676
    %v1986 = vunpack.c.l.b16 %v1677
    %v1987 = vunpack.c.h.b16 %v1677
    %v1988 = vunpack.c.l.b16 %v1678
    %v1989 = vunpack.c.h.b16 %v1678
    %v1990 = vunpack.c.l.b16 %v1679
    %v1991 = vunpack.c.h.b16 %v1679
    %v1992 = vunpack.c.l.b16 %v1680
    %v1993 = vunpack.c.h.b16 %v1680
    %v1994 = vunpack.c.l.b16 %v1681
    %v1995 = vunpack.c.h.b16 %v1681
    %v1996 = vunpack.c.l.b16 %v1682
    %v1997 = vunpack.c.h.b16 %v1682
    %v1998 = vunpack.c.l.b16 %v1683
    %v1999 = vunpack.c.h.b16 %v1683
    %v2000 = vunpack.c.l.b16 %v1684
    %v2001 = vunpack.c.h.b16 %v1684
    %v2002 = vunpack.c.l.b16 %v1685
    %v2003 = vunpack.c.h.b16 %v1685
    %v2004 = vunpack.c.l.b16 %v1686
    %v2005 = vunpack.c.h.b16 %v1686
    %v2006 = vunpack.c.l.b16 %v1687
    %v2007 = vunpack.c.h.b16 %v1687
    %v2008 = vunpack.c.l.b16 %v1688
    %v2009 = vunpack.c.h.b16 %v1688
    %v2010 = vunpack.c.l.b16 %v1689
    %v2011 = vunpack.c.h.b16 %v1689
    %v2012 = vunpack.c.l.b16 %v1690
    %v2013 = vunpack.c.h.b16 %v1690
    %v2014 = vunpack.c.l.b16 %v1691
    %v2015 = vunpack.c.h.b16 %v1691
    %v2016 = vunpack.c.l.b16 %v1692
    %v2017 = vunpack.c.h.b16 %v1692
    %v2018 = vunpack.c.l.b16 %v1693
    %v2019 = vunpack.c.h.b16 %v1693
    %v2020 = vunpack.c.l.b16 %v1694
    %v2021 = vunpack.c.h.b16 %v1694
    %v2022 = vunpack.c.l.b16 %v1695
    %v2023 = vunpack.c.h.b16 %v1695
    %v2024 = vunpack.c.l.b16 %v1696
    %v2025 = vunpack.c.h.b16 %v1696
    %v2026 = vunpack.c.l.b16 %v1697
    %v2027 = vunpack.c.h.b16 %v1697
    %v2028 = vunpack.c.l.b16 %v1698
    %v2029 = vunpack.c.h.b16 %v1698
    %v2030 = vunpack.c.l.b16 %v1699
    %v2031 = vunpack.c.h.b16 %v1699
    %v2032 = vunpack.c.l.b16 %v1700
    %v2033 = vunpack.c.h.b16 %v1700
    %v2034 = vunpack.c.l.b16 %v1701
    %v2035 = vunpack.c.h.b16 %v1701
    %v2036 = vunpack.c.l.b16 %v1702
    %v2037 = vunpack.c.h.b16 %v1702
    %v2038 = vunpack.c.l.b16 %v1703
    %v2039 = vunpack.c.h.b16 %v1703
    %v2040 = vunpack.c.l.b16 %v1704
    %v2041 = vunpack.c.h.b16 %v1704
    %v2042 = vunpack.c.l.b16 %v1705
    %v2043 = vunpack.c.h.b16 %v1705
    %v2044 = vunpack.c.l.b16 %v1706
    %v2045 = vunpack.c.h.b16 %v1706
    %v2046 = vunpack.c.l.b16 %v1707
    %v2047 = vunpack.c.h.b16 %v1707
    %v2048 = vunpack.c.l.b16 %v1708
    %v2049 = vunpack.c.h.b16 %v1708
    %v2050 = vunpack.c.l.b16 %v1709
    %v2051 = vunpack.c.h.b16 %v1709
    %v2052 = vunpack.c.l.b16 %v1710
    %v2053 = vunpack.c.h.b16 %v1710
    %v2054 = vunpack.c.l.b16 %v1711
    %v2055 = vunpack.c.h.b16 %v1711
    %v2056 = vunpack.c.l.b16 %v1712
    %v2057 = vunpack.c.h.b16 %v1712
    %v2058 = vunpack.c.l.b16 %v1713
    %v2059 = vunpack.c.h.b16 %v1713
    %v2060 = vunpack.c.l.b16 %v1714
    %v2061 = vunpack.c.h.b16 %v1714
    %v2062 = vunpack.c.l.b16 %v1715
    %v2063 = vunpack.c.h.b16 %v1715
    %v2064 = vunpack.c.l.b16 %v1716
    %v2065 = vunpack.c.h.b16 %v1716
    %v2066 = vunpack.c.l.b16 %v1717
    %v2067 = vunpack.c.h.b16 %v1717
    %v2068 = vunpack.c.l.b16 %v1718
    %v2069 = vunpack.c.h.b16 %v1718
    %v2070 = vunpack.c.l.b16 %v1719
    %v2071 = vunpack.c.h.b16 %v1719
    %v2072 = vunpack.c.l.b16 %v1720
    %v2073 = vunpack.c.h.b16 %v1720
    %v2074 = vunpack.c.l.b16 %v1721
    %v2075 = vunpack.c.h.b16 %v1721
    %v2076 = vunpack.c.l.b16 %v1722
    %v2077 = vunpack.c.h.b16 %v1722
    %v2078 = vunpack.c.l.b16 %v1723
    %v2079 = vunpack.c.h.b16 %v1723
    %v2080 = vunpack.c.l.b16 %v1724
    %v2081 = vunpack.c.h.b16 %v1724
    %v2082 = vunpack.c.l.b16 %v1725
    %v2083 = vunpack.c.h.b16 %v1725
    %v2084 = vunpack.c.l.b16 %v1726
    %v2085 = vunpack.c.h.b16 %v1726
    %v2086 = vunpack.c.l.b16 %v1727
    %v2087 = vunpack.c.h.b16 %v1727
    %v2088 = vunpack.c.l.b16 %v1728
    %v2089 = vunpack.c.h.b16 %v1728
    %v2090 = vunpack.c.l.b16 %v1729
    %v2091 = vunpack.c.h.b16 %v1729
    %v2092 = vunpack.c.l.b16 %v1730
    %v2093 = vunpack.c.h.b16 %v1730
    %v2094 = vunpack.c.l.b16 %v1731
    %v2095 = vunpack.c.h.b16 %v1731
    %v2096 = vunpack.c.l.b16 %v1732
    %v2097 = vunpack.c.h.b16 %v1732
    %v2098 = vunpack.c.l.b16 %v1733
    %v2099 = vunpack.c.h.b16 %v1733
    %v2100 = vunpack.c.l.b16 %v1734
    %v2101 = vunpack.c.h.b16 %v1734
    %v2102 = vunpack.c.l.b16 %v1735
    %v2103 = vunpack.c.h.b16 %v1735
    %v2104 = vunpack.c.l.b16 %v1736
    %v2105 = vunpack.c.h.b16 %v1736
    %v2106 = vunpack.c.l.b16 %v1737
    %v2107 = vunpack.c.h.b16 %v1737
    %v2108 = vunpack.c.l.b16 %v1738
    %v2109 = vunpack.c.h.b16 %v1738
    %v2110 = vunpack.c.l.b16 %v1739
    %v2111 = vunpack.c.h.b16 %v1739
    %v2112 = vunpack.c.l.b16 %v1740
    %v2113 = vunpack.c.h.b16 %v1740
    %v2114 = vunpack.c.l.b16 %v1741
    %v2115 = vunpack.c.h.b16 %v1741
    %v2116 = vunpack.c.l.b16 %v1742
    %v2117 = vunpack.c.h.b16 %v1742
    %v2118 = vunpack.c.l.b16 %v1743
    %v2119 = vunpack.c.h.b16 %v1743
    %v2120 = vunpack.c.l.b16 %v1744
    %v2121 = vunpack.c.h.b16 %v1744
    %v2122 = vunpack.c.l.b16 %v1745
    %v2123 = vunpack.c.h.b16 %v1745
    %v2124 = vunpack.c.l.b16 %v1746
    %v2125 = vunpack.c.h.b16 %v1746
    %v2126 = vunpack.c.l.b16 %v1747
    %v2127 = vunpack.c.h.b16 %v1747
    %v2128 = vunpack.c.l.b16 %v1748
    %v2129 = vunpack.c.h.b16 %v1748
    %v2130 = vunpack.c.l.b16 %v1749
    %v2131 = vunpack.c.h.b16 %v1749
    %v2132 = vunpack.c.l.b16 %v1750
    %v2133 = vunpack.c.h.b16 %v1750
    %v2134 = vunpack.c.l.b16 %v1751
    %v2135 = vunpack.c.h.b16 %v1751
    %v2136 = vunpack.c.l.b16 %v1752
    %v2137 = vunpack.c.h.b16 %v1752
    %v2138 = vunpack.c.l.b16 %v1753
    %v2139 = vunpack.c.h.b16 %v1753
    %v2140 = vunpack.c.l.b16 %v1754
    %v2141 = vunpack.c.h.b16 %v1754
    %v2142 = vunpack.c.l.b16 %v1755
    %v2143 = vunpack.c.h.b16 %v1755
    %v2144 = vunpack.c.l.b16 %v1756
    %v2145 = vunpack.c.h.b16 %v1756
    %v2146 = vunpack.c.l.b16 %v1757
    %v2147 = vunpack.c.h.b16 %v1757
    %v2148 = vunpack.c.l.b16 %v1758
    %v2149 = vunpack.c.h.b16 %v1758
    %v2150 = vunpack.c.l.b16 %v1759
    %v2151 = vunpack.c.h.b16 %v1759
    %v2152 = vunpack.c.l.b16 %v1760
    %v2153 = vunpack.c.h.b16 %v1760
    %v2154 = vunpack.c.l.b16 %v1761
    %v2155 = vunpack.c.h.b16 %v1761
    %v2156 = vunpack.c.l.b16 %v1762
    %v2157 = vunpack.c.h.b16 %v1762
    %v2158 = vunpack.c.l.b16 %v1763
    %v2159 = vunpack.c.h.b16 %v1763
    %v2160 = vunpack.c.l.b16 %v1764
    %v2161 = vunpack.c.h.b16 %v1764
    %v2162 = vunpack.c.l.b16 %v1765
    %v2163 = vunpack.c.h.b16 %v1765
    %v2164 = vunpack.c.l.b16 %v1766
    %v2165 = vunpack.c.h.b16 %v1766
    %v2166 = vunpack.c.l.b16 %v1767
    %v2167 = vunpack.c.h.b16 %v1767
    %v2168 = vunpack.c.l.b16 %v1768
    %v2169 = vunpack.c.h.b16 %v1768
    %v2170 = vunpack.c.l.b16 %v1769
    %v2171 = vunpack.c.h.b16 %v1769
    %v2172 = vunpack.c.l.b16 %v1770
    %v2173 = vunpack.c.h.b16 %v1770
    %v2174 = vunpack.c.l.b16 %v1771
    %v2175 = vunpack.c.h.b16 %v1771
    %v2176 = vunpack.c.l.b16 %v1772
    %v2177 = vunpack.c.h.b16 %v1772
    %v2178 = vunpack.c.l.b16 %v1773
    %v2179 = vunpack.c.h.b16 %v1773
    %v2180 = vpack.c.b16 %v1928, %v1924
    %v2181 = vpack.c.b16 %v1929, %v1925
    %v2182 = vpack.c.b16 %v1930, %v1926
    %v2183 = vpack.c.b16 %v1931, %v1927
    %v2184 = vpack.c.b16 %v1936, %v1932
    %v2185 = vpack.c.b16 %v1937, %v1933
    %v2186 = vpack.c.b16 %v1938, %v1934
    %v2187 = vpack.c.b16 %v1939, %v1935
    %v2188 = vpack.c.b16 %v1944, %v1940
    %v2189 = vpack.c.b16 %v1945, %v1941
    %v2190 = vpack.c.b16 %v1946, %v1942
    %v2191 = vpack.c.b16 %v1947, %v1943
    %v2192 = vpack.c.b16 %v1952, %v1948
    %v2193 = vpack.c.b16 %v1953, %v1949
    %v2194 = vpack.c.b16 %v1954, %v1950
    %v2195 = vpack.c.b16 %v1955, %v1951
    %v2196 = vpack.c.b16 %v1960, %v1956
    %v2197 = vpack.c.b16 %v1961, %v1957
    %v2198 = vpack.c.b16 %v1962, %v1958
    %v2199 = vpack.c.b16 %v1963, %v1959
    %v2200 = vpack.c.b16 %v1968, %v1964
    %v2201 = vpack.c.b16 %v1969, %v1965
    %v2202 = vpack.c.b16 %v1970, %v1966
    %v2203 = vpack.c.b16 %v1971, %v1967
    %v2204 = vpack.c.b16 %v1976, %v1972
    %v2205 = vpack.c.b16 %v1977, %v1973
    %v2206 = vpack.c.b16 %v1978, %v1974
    %v2207 = vpack.c.b16 %v1979, %v1975
    %v2208 = vpack.c.b16 %v1984, %v1980
    %v2209 = vpack.c.b16 %v1985, %v1981
    %v2210 = vpack.c.b16 %v1986, %v1982
    %v2211 = vpack.c.b16 %v1987, %v1983
    %v2212 = vpack.c.b16 %v1992, %v1988
    %v2213 = vpack.c.b16 %v1993, %v1989
    %v2214 = vpack.c.b16 %v1994, %v1990
    %v2215 = vpack.c.b16 %v1995, %v1991
    %v2216 = vpack.c.b16 %v2000, %v1996
    %v2217 = vpack.c.b16 %v2001, %v1997
    %v2218 = vpack.c.b16 %v2002, %v1998
    %v2219 = vpack.c.b16 %v2003, %v1999
    %v2220 = vpack.c.b16 %v2008, %v2004
    %v2221 = vpack.c.b16 %v2009, %v2005
    %v2222 = vpack.c.b16 %v2010, %v2006
    %v2223 = vpack.c.b16 %v2011, %v2007
    %v2224 = vpack.c.b16 %v2016, %v2012
    %v2225 = vpack.c.b16 %v2017, %v2013
    %v2226 = vpack.c.b16 %v2018, %v2014
    %v2227 = vpack.c.b16 %v2019, %v2015
    %v2228 = vpack.c.b16 %v2024, %v2020
    %v2229 = vpack.c.b16 %v2025, %v2021
    %v2230 = vpack.c.b16 %v2026, %v2022
    %v2231 = vpack.c.b16 %v2027, %v2023
    %v2232 = vpack.c.b16 %v2032, %v2028
    %v2233 = vpack.c.b16 %v2033, %v2029
    %v2234 = vpack.c.b16 %v2034, %v2030
    %v2235 = vpack.c.b16 %v2035, %v2031
    %v2236 = vpack.c.b16 %v2040, %v2036
    %v2237 = vpack.c.b16 %v2041, %v2037
    %v2238 = vpack.c.b16 %v2042, %v2038
    %v2239 = vpack.c.b16 %v2043, %v2039
    %v2240 = vpack.c.b16 %v2048, %v2044
    %v2241 = vpack.c.b16 %v2049, %v2045
    %v2242 = vpack.c.b16 %v2050, %v2046
    %v2243 = vpack.c.b16 %v2051, %v2047
    %v2244 = vpack.c.b16 %v2056, %v2052
    %v2245 = vpack.c.b16 %v2057, %v2053
    %v2246 = vpack.c.b16 %v2058, %v2054
    %v2247 = vpack.c.b16 %v2059, %v2055
    %v2248 = vpack.c.b16 %v2064, %v2060
    %v2249 = vpack.c.b16 %v2065, %v2061
    %v2250 = vpack.c.b16 %v2066, %v2062
    %v2251 = vpack.c.b16 %v2067, %v2063
    %v2252 = vpack.c.b16 %v2072, %v2068
    %v2253 = vpack.c.b16 %v2073, %v2069
    %v2254 = vpack.c.b16 %v2074, %v2070
    %v2255 = vpack.c.b16 %v2075, %v2071
    %v2256 = vpack.c.b16 %v2080, %v2076
    %v2257 = vpack.c.b16 %v2081, %v2077
    %v2258 = vpack.c.b16 %v2082, %v2078
    %v2259 = vpack.c.b16 %v2083, %v2079
    %v2260 = vpack.c.b16 %v2088, %v2084
    %v2261 = vpack.c.b16 %v2089, %v2085
    %v2262 = vpack.c.b16 %v2090, %v2086
    %v2263 = vpack.c.b16 %v2091, %v2087
    %v2264 = vpack.c.b16 %v2096, %v2092
    %v2265 = vpack.c.b16 %v2097, %v2093
    %v2266 = vpack.c.b16 %v2098, %v2094
    %v2267 = vpack.c.b16 %v2099, %v2095
    %v2268 = vpack.c.b16 %v2104, %v2100
    %v2269 = vpack.c.b16 %v2105, %v2101
    %v2270 = vpack.c.b16 %v2106, %v2102
    %v2271 = vpack.c.b16 %v2107, %v2103
    %v2272 = vpack.c.b16 %v2112, %v2108
    %v2273 = vpack.c.b16 %v2113, %v2109
    %v2274 = vpack.c.b16 %v2114, %v2110
    %v2275 = vpack.c.b16 %v2115, %v2111
    %v2276 = vpack.c.b16 %v2120, %v2116
    %v2277 = vpack.c.b16 %v2121, %v2117
    %v2278 = vpack.c.b16 %v2122, %v2118
    %v2279 = vpack.c.b16 %v2123, %v2119
    %v2280 = vpack.c.b16 %v2128, %v2124
    %v2281 = vpack.c.b16 %v2129, %v2125
    %v2282 = vpack.c.b16 %v2130, %v2126
    %v2283 = vpack.c.b16 %v2131, %v2127
    %v2284 = vpack.c.b16 %v2136, %v2132
    %v2285 = vpack.c.b16 %v2137, %v2133
    %v2286 = vpack.c.b16 %v2138, %v2134
    %v2287 = vpack.c.b16 %v2139, %v2135
    %v2288 = vpack.c.b16 %v2144, %v2140
    %v2289 = vpack.c.b16 %v2145, %v2141
    %v2290 = vpack.c.b16 %v2146, %v2142
    %v2291 = vpack.c.b16 %v2147, %v2143
    %v2292 = vpack.c.b16 %v2152, %v2148
    %v2293 = vpack.c.b16 %v2153, %v2149
    %v2294 = vpack.c.b16 %v2154, %v2150
    %v2295 = vpack.c.b16 %v2155, %v2151
    %v2296 = vpack.c.b16 %v2160, %v2156
    %v2297 = vpack.c.b16 %v2161, %v2157
    %v2298 = vpack.c.b16 %v2162, %v2158
    %v2299 = vpack.c.b16 %v2163, %v2159
    %v2300 = vpack.c.b16 %v2168, %v2164
    %v2301 = vpack.c.b16 %v2169, %v2165
    %v2302 = vpack.c.b16 %v2170, %v2166
    %v2303 = vpack.c.b16 %v2171, %v2167
    %v2304 = vpack.c.b16 %v2176, %v2172
    %v2305 = vpack.c.b16 %v2177, %v2173
    %v2306 = vpack.c.b16 %v2178, %v2174
    %v2307 = vpack.c.b16 %v2179, %v2175
    %2436 = vmatprep.subr.bf16.mxu0 %v2181
    %2437 = vmatpush1.bf16.msra.mxu0 %v2180
    %2438 = vmatprep.subr.bf16.mxu0 %v2185
    %2439 = vmatpush1.bf16.msra.mxu0 %v2184
    %2440 = vmatprep.subr.bf16.mxu0 %v2189
    %2441 = vmatpush1.bf16.msra.mxu0 %v2188
    %2442 = vmatprep.subr.bf16.mxu0 %v2193
    %2443 = vmatpush1.bf16.msra.mxu0 %v2192
    %2444 = vmatprep.subr.bf16.mxu0 %v2197
    %2445 = vmatpush1.bf16.msra.mxu0 %v2196
    %2446 = vmatprep.subr.bf16.mxu0 %v2201
    %2447 = vmatpush1.bf16.msra.mxu0 %v2200
    %2448 = vmatprep.subr.bf16.mxu0 %v2205
    %2449 = vmatpush1.bf16.msra.mxu0 %v2204
    %2450 = vmatprep.subr.bf16.mxu0 %v2209
    %2451 = vmatpush1.bf16.msra.mxu0 %v2208
    %2452 = vmatprep.subr.bf16.mxu0 %v2213
    %2453 = vmatpush1.bf16.msra.mxu0 %v2212
    %2454 = vmatprep.subr.bf16.mxu0 %v2217
    %2455 = vmatpush1.bf16.msra.mxu0 %v2216
    %2456 = vmatprep.subr.bf16.mxu0 %v2221
    %2457 = vmatpush1.bf16.msra.mxu0 %v2220
    %2458 = vmatprep.subr.bf16.mxu0 %v2225
    %2459 = vmatpush1.bf16.msra.mxu0 %v2224
    %2460 = vmatprep.subr.bf16.mxu0 %v2229
    %2461 = vmatpush1.bf16.msra.mxu0 %v2228
    %2462 = vmatprep.subr.bf16.mxu0 %v2233
    %2463 = vmatpush1.bf16.msra.mxu0 %v2232
    %2464 = vmatprep.subr.bf16.mxu0 %v2237
    %2465 = vmatpush1.bf16.msra.mxu0 %v2236
    %2466 = vmatprep.subr.bf16.mxu0 %v2241
    %2467 = vmatpush1.bf16.msra.mxu0 %v2240
    %2468 = vmatprep.mubr.bf16.mxu0 %v1643
    %2469 = vmatmul.mubr.bf16.gmra.mrb[0].mxu0 %v1642
    %v2470 = vpop.f32.mrb[0].mxu0
    %v2471 = vadd.f32 %v1779, %v2470
    %v2472 = vpop.f32.mrb[0].mxu0
    %v2473 = vadd.f32 %v1783, %v2472
    %v2474 = vpop.f32.mrb[0].mxu0
    %v2475 = vpop.f32.mrb[0].mxu0
    %2476 = vdwg.mxu0
    %2477 = vmatprep.subr.bf16.mxu0 %v2245
    %2478 = vmatpush1.bf16.msra.mxu0 %v2244
    %2479 = vmatprep.subr.bf16.mxu0 %v2249
    %2480 = vmatpush1.bf16.msra.mxu0 %v2248
    %2481 = vmatprep.subr.bf16.mxu0 %v2253
    %2482 = vmatpush1.bf16.msra.mxu0 %v2252
    %2483 = vmatprep.subr.bf16.mxu0 %v2257
    %2484 = vmatpush1.bf16.msra.mxu0 %v2256
    %2485 = vmatprep.subr.bf16.mxu0 %v2261
    %2486 = vmatpush1.bf16.msra.mxu0 %v2260
    %2487 = vmatprep.subr.bf16.mxu0 %v2265
    %2488 = vmatpush1.bf16.msra.mxu0 %v2264
    %2489 = vmatprep.subr.bf16.mxu0 %v2269
    %2490 = vmatpush1.bf16.msra.mxu0 %v2268
    %2491 = vmatprep.subr.bf16.mxu0 %v2273
    %2492 = vmatpush1.bf16.msra.mxu0 %v2272
    %2493 = vmatprep.subr.bf16.mxu0 %v2277
    %2494 = vmatpush1.bf16.msra.mxu0 %v2276
    %2495 = vmatprep.subr.bf16.mxu0 %v2281
    %2496 = vmatpush1.bf16.msra.mxu0 %v2280
    %2497 = vmatprep.subr.bf16.mxu0 %v2285
    %2498 = vmatpush1.bf16.msra.mxu0 %v2284
    %2499 = vmatprep.subr.bf16.mxu0 %v2289
    %2500 = vmatpush1.bf16.msra.mxu0 %v2288
    %2501 = vmatprep.subr.bf16.mxu0 %v2293
    %2502 = vmatpush1.bf16.msra.mxu0 %v2292
    %2503 = vmatprep.subr.bf16.mxu0 %v2297
    %2504 = vmatpush1.bf16.msra.mxu0 %v2296
    %2505 = vmatprep.subr.bf16.mxu0 %v2301
    %2506 = vmatpush1.bf16.msra.mxu0 %v2300
    %2507 = vmatprep.subr.bf16.mxu0 %v2305
    %2508 = vmatpush1.bf16.msra.mxu0 %v2304
    %2509 = vmatprep.mubr.bf16.mxu0 %v1645
    %2510 = vmatmul.mubr.bf16.gmra.mrb[0].mxu0 %v1644
    %v2511 = vpop.f32.mrb[0].mxu0
    %v2512 = vadd.f32 %v2471, %v2511
    %v2513 = vpop.f32.mrb[0].mxu0
    %v2514 = vadd.f32 %v2473, %v2513
    %v2515 = vpop.f32.mrb[0].mxu0
    %v2516 = vpop.f32.mrb[0].mxu0
    %2517 = vdwg.mxu0
    %2518 = vmatprep.subr.bf16.mxu0 %v2183
    %2519 = vmatpush1.bf16.msra.mxu0 %v2182
    %2520 = vmatprep.subr.bf16.mxu0 %v2187
    %2521 = vmatpush1.bf16.msra.mxu0 %v2186
    %2522 = vmatprep.subr.bf16.mxu0 %v2191
    %2523 = vmatpush1.bf16.msra.mxu0 %v2190
    %2524 = vmatprep.subr.bf16.mxu0 %v2195
    %2525 = vmatpush1.bf16.msra.mxu0 %v2194
    %2526 = vmatprep.subr.bf16.mxu0 %v2199
    %2527 = vmatpush1.bf16.msra.mxu0 %v2198
    %2528 = vmatprep.subr.bf16.mxu0 %v2203
    %2529 = vmatpush1.bf16.msra.mxu0 %v2202
    %2530 = vmatprep.subr.bf16.mxu0 %v2207
    %2531 = vmatpush1.bf16.msra.mxu0 %v2206
    %2532 = vmatprep.subr.bf16.mxu0 %v2211
    %2533 = vmatpush1.bf16.msra.mxu0 %v2210
    %2534 = vmatprep.subr.bf16.mxu0 %v2215
    %2535 = vmatpush1.bf16.msra.mxu0 %v2214
    %2536 = vmatprep.subr.bf16.mxu0 %v2219
    %2537 = vmatpush1.bf16.msra.mxu0 %v2218
    %2538 = vmatprep.subr.bf16.mxu0 %v2223
    %2539 = vmatpush1.bf16.msra.mxu0 %v2222
    %2540 = vmatprep.subr.bf16.mxu0 %v2227
    %2541 = vmatpush1.bf16.msra.mxu0 %v2226
    %2542 = vmatprep.subr.bf16.mxu0 %v2231
    %2543 = vmatpush1.bf16.msra.mxu0 %v2230
    %2544 = vmatprep.subr.bf16.mxu0 %v2235
    %2545 = vmatpush1.bf16.msra.mxu0 %v2234
    %2546 = vmatprep.subr.bf16.mxu0 %v2239
    %2547 = vmatpush1.bf16.msra.mxu0 %v2238
    %2548 = vmatprep.subr.bf16.mxu0 %v2243
    %2549 = vmatpush1.bf16.msra.mxu0 %v2242
    %2550 = vmatprep.mubr.bf16.mxu0 %v1643
    %2551 = vmatmul.mubr.bf16.gmra.mrb[0].mxu0 %v1642
    %v2552 = vpop.f32.mrb[0].mxu0
    %v2553 = vadd.f32 %v1787, %v2552
    %v2554 = vpop.f32.mrb[0].mxu0
    %v2555 = vadd.f32 %v1791, %v2554
    %v2556 = vpop.f32.mrb[0].mxu0
    %v2557 = vpop.f32.mrb[0].mxu0
    %2558 = vdwg.mxu0
    %2559 = vmatprep.subr.bf16.mxu0 %v2247
    %2560 = vmatpush1.bf16.msra.mxu0 %v2246
    %2561 = vmatprep.subr.bf16.mxu0 %v2251
    %2562 = vmatpush1.bf16.msra.mxu0 %v2250
    %2563 = vmatprep.subr.bf16.mxu0 %v2255
    %2564 = vmatpush1.bf16.msra.mxu0 %v2254
    %2565 = vmatprep.subr.bf16.mxu0 %v2259
    %2566 = vmatpush1.bf16.msra.mxu0 %v2258
    %2567 = vmatprep.subr.bf16.mxu0 %v2263
    %2568 = vmatpush1.bf16.msra.mxu0 %v2262
    %2569 = vmatprep.subr.bf16.mxu0 %v2267
    %2570 = vmatpush1.bf16.msra.mxu0 %v2266
    %2571 = vmatprep.subr.bf16.mxu0 %v2271
    %2572 = vmatpush1.bf16.msra.mxu0 %v2270
    %2573 = vmatprep.subr.bf16.mxu0 %v2275
    %2574 = vmatpush1.bf16.msra.mxu0 %v2274
    %2575 = vmatprep.subr.bf16.mxu0 %v2279
    %2576 = vmatpush1.bf16.msra.mxu0 %v2278
    %2577 = vmatprep.subr.bf16.mxu0 %v2283
    %2578 = vmatpush1.bf16.msra.mxu0 %v2282
    %2579 = vmatprep.subr.bf16.mxu0 %v2287
    %2580 = vmatpush1.bf16.msra.mxu0 %v2286
    %2581 = vmatprep.subr.bf16.mxu0 %v2291
    %2582 = vmatpush1.bf16.msra.mxu0 %v2290
    %2583 = vmatprep.subr.bf16.mxu0 %v2295
    %2584 = vmatpush1.bf16.msra.mxu0 %v2294
    %2585 = vmatprep.subr.bf16.mxu0 %v2299
    %2586 = vmatpush1.bf16.msra.mxu0 %v2298
    %2587 = vmatprep.subr.bf16.mxu0 %v2303
    %2588 = vmatpush1.bf16.msra.mxu0 %v2302
    %2589 = vmatprep.subr.bf16.mxu0 %v2307
    %2590 = vmatpush1.bf16.msra.mxu0 %v2306
    %2591 = vmatprep.mubr.bf16.mxu0 %v1645
    %2592 = vmatmul.mubr.bf16.gmra.mrb[0].mxu0 %v1644
    %v2593 = vpop.f32.mrb[0].mxu0
    %v2594 = vadd.f32 %v2553, %v2593
    %v2595 = vpop.f32.mrb[0].mxu0
    %v2596 = vadd.f32 %v2555, %v2595
    %v2597 = vpop.f32.mrb[0].mxu0
    %v2598 = vpop.f32.mrb[0].mxu0
    %2599 = vdwg.mxu0
    %v2600 = vmax.f32 %v2512, 0.0
    %v2601 = vmax.f32 %v2514, 0.0
    %v2602 = vmax.f32 %v2594, 0.0
    %v2603 = vmax.f32 %v2596, 0.0
    %v2604 = vpack.c.bf16 %v1429, %v1429
    %v2605 = vpack.c.bf16 %v1430, %v1430
    %v2606 = vpack.c.bf16 %v1431, %v1431
    %v2607 = vpack.c.bf16 %v1432, %v1432
    %v2608 = vld [vmem:[#allocation13] sm:$0xff]
    %v2609 = vld [vmem:[#allocation13 + $0x8] sm:$0xff]
    %v2610 = vld [vmem:[#allocation13 + $0x10] sm:$0xff]
    %v2611 = vld [vmem:[#allocation13 + $0x18] sm:$0xff]
    %v2612 = vld [vmem:[#allocation13 + $0x20] sm:$0xff]
    %v2613 = vld [vmem:[#allocation13 + $0x28] sm:$0xff]
    %v2614 = vld [vmem:[#allocation13 + $0x30] sm:$0xff]
    %v2615 = vld [vmem:[#allocation13 + $0x38] sm:$0xff]
    %v2616 = vld [vmem:[#allocation13 + $0x40] sm:$0xff]
    %v2617 = vld [vmem:[#allocation13 + $0x48] sm:$0xff]
    %v2618 = vld [vmem:[#allocation13 + $0x50] sm:$0xff]
    %v2619 = vld [vmem:[#allocation13 + $0x58] sm:$0xff]
    %v2620 = vld [vmem:[#allocation13 + $0x60] sm:$0xff]
    %v2621 = vld [vmem:[#allocation13 + $0x68] sm:$0xff]
    %v2622 = vld [vmem:[#allocation13 + $0x70] sm:$0xff]
    %v2623 = vld [vmem:[#allocation13 + $0x78] sm:$0xff]
    %v2624 = vld [vmem:[#allocation13 + $0x80] sm:$0xff]
    %v2625 = vld [vmem:[#allocation13 + $0x88] sm:$0xff]
    %v2626 = vld [vmem:[#allocation13 + $0x90] sm:$0xff]
    %v2627 = vld [vmem:[#allocation13 + $0x98] sm:$0xff]
    %v2628 = vld [vmem:[#allocation13 + $0xa0] sm:$0xff]
    %v2629 = vld [vmem:[#allocation13 + $0xa8] sm:$0xff]
    %v2630 = vld [vmem:[#allocation13 + $0xb0] sm:$0xff]
    %v2631 = vld [vmem:[#allocation13 + $0xb8] sm:$0xff]
    %v2632 = vld [vmem:[#allocation13 + $0xc0] sm:$0xff]
    %v2633 = vld [vmem:[#allocation13 + $0xc8] sm:$0xff]
    %v2634 = vld [vmem:[#allocation13 + $0xd0] sm:$0xff]
    %v2635 = vld [vmem:[#allocation13 + $0xd8] sm:$0xff]
    %v2636 = vld [vmem:[#allocation13 + $0xe0] sm:$0xff]
    %v2637 = vld [vmem:[#allocation13 + $0xe8] sm:$0xff]
    %v2638 = vld [vmem:[#allocation13 + $0xf0] sm:$0xff]
    %v2639 = vld [vmem:[#allocation13 + $0xf8] sm:$0xff]
    %v2640 = vld [vmem:[#allocation13 + $0x100] sm:$0xff]
    %v2641 = vld [vmem:[#allocation13 + $0x108] sm:$0xff]
    %v2642 = vld [vmem:[#allocation13 + $0x110] sm:$0xff]
    %v2643 = vld [vmem:[#allocation13 + $0x118] sm:$0xff]
    %v2644 = vld [vmem:[#allocation13 + $0x120] sm:$0xff]
    %v2645 = vld [vmem:[#allocation13 + $0x128] sm:$0xff]
    %v2646 = vld [vmem:[#allocation13 + $0x130] sm:$0xff]
    %v2647 = vld [vmem:[#allocation13 + $0x138] sm:$0xff]
    %v2648 = vld [vmem:[#allocation13 + $0x140] sm:$0xff]
    %v2649 = vld [vmem:[#allocation13 + $0x148] sm:$0xff]
    %v2650 = vld [vmem:[#allocation13 + $0x150] sm:$0xff]
    %v2651 = vld [vmem:[#allocation13 + $0x158] sm:$0xff]
    %v2652 = vld [vmem:[#allocation13 + $0x160] sm:$0xff]
    %v2653 = vld [vmem:[#allocation13 + $0x168] sm:$0xff]
    %v2654 = vld [vmem:[#allocation13 + $0x170] sm:$0xff]
    %v2655 = vld [vmem:[#allocation13 + $0x178] sm:$0xff]
    %v2656 = vld [vmem:[#allocation13 + $0x180] sm:$0xff]
    %v2657 = vld [vmem:[#allocation13 + $0x188] sm:$0xff]
    %v2658 = vld [vmem:[#allocation13 + $0x190] sm:$0xff]
    %v2659 = vld [vmem:[#allocation13 + $0x198] sm:$0xff]
    %v2660 = vld [vmem:[#allocation13 + $0x1a0] sm:$0xff]
    %v2661 = vld [vmem:[#allocation13 + $0x1a8] sm:$0xff]
    %v2662 = vld [vmem:[#allocation13 + $0x1b0] sm:$0xff]
    %v2663 = vld [vmem:[#allocation13 + $0x1b8] sm:$0xff]
    %v2664 = vld [vmem:[#allocation13 + $0x1c0] sm:$0xff]
    %v2665 = vld [vmem:[#allocation13 + $0x1c8] sm:$0xff]
    %v2666 = vld [vmem:[#allocation13 + $0x1d0] sm:$0xff]
    %v2667 = vld [vmem:[#allocation13 + $0x1d8] sm:$0xff]
    %v2668 = vld [vmem:[#allocation13 + $0x1e0] sm:$0xff]
    %v2669 = vld [vmem:[#allocation13 + $0x1e8] sm:$0xff]
    %v2670 = vld [vmem:[#allocation13 + $0x1f0] sm:$0xff]
    %v2671 = vld [vmem:[#allocation13 + $0x1f8] sm:$0xff]
    %v2672 = vld [vmem:[#allocation13 + $0x200] sm:$0xff]
    %v2673 = vld [vmem:[#allocation13 + $0x208] sm:$0xff]
    %v2674 = vld [vmem:[#allocation13 + $0x210] sm:$0xff]
    %v2675 = vld [vmem:[#allocation13 + $0x218] sm:$0xff]
    %v2676 = vld [vmem:[#allocation13 + $0x220] sm:$0xff]
    %v2677 = vld [vmem:[#allocation13 + $0x228] sm:$0xff]
    %v2678 = vld [vmem:[#allocation13 + $0x230] sm:$0xff]
    %v2679 = vld [vmem:[#allocation13 + $0x238] sm:$0xff]
    %v2680 = vld [vmem:[#allocation13 + $0x240] sm:$0xff]
    %v2681 = vld [vmem:[#allocation13 + $0x248] sm:$0xff]
    %v2682 = vld [vmem:[#allocation13 + $0x250] sm:$0xff]
    %v2683 = vld [vmem:[#allocation13 + $0x258] sm:$0xff]
    %v2684 = vld [vmem:[#allocation13 + $0x260] sm:$0xff]
    %v2685 = vld [vmem:[#allocation13 + $0x268] sm:$0xff]
    %v2686 = vld [vmem:[#allocation13 + $0x270] sm:$0xff]
    %v2687 = vld [vmem:[#allocation13 + $0x278] sm:$0xff]
    %v2688 = vld [vmem:[#allocation13 + $0x280] sm:$0xff]
    %v2689 = vld [vmem:[#allocation13 + $0x288] sm:$0xff]
    %v2690 = vld [vmem:[#allocation13 + $0x290] sm:$0xff]
    %v2691 = vld [vmem:[#allocation13 + $0x298] sm:$0xff]
    %v2692 = vld [vmem:[#allocation13 + $0x2a0] sm:$0xff]
    %v2693 = vld [vmem:[#allocation13 + $0x2a8] sm:$0xff]
    %v2694 = vld [vmem:[#allocation13 + $0x2b0] sm:$0xff]
    %v2695 = vld [vmem:[#allocation13 + $0x2b8] sm:$0xff]
    %v2696 = vld [vmem:[#allocation13 + $0x2c0] sm:$0xff]
    %v2697 = vld [vmem:[#allocation13 + $0x2c8] sm:$0xff]
    %v2698 = vld [vmem:[#allocation13 + $0x2d0] sm:$0xff]
    %v2699 = vld [vmem:[#allocation13 + $0x2d8] sm:$0xff]
    %v2700 = vld [vmem:[#allocation13 + $0x2e0] sm:$0xff]
    %v2701 = vld [vmem:[#allocation13 + $0x2e8] sm:$0xff]
    %v2702 = vld [vmem:[#allocation13 + $0x2f0] sm:$0xff]
    %v2703 = vld [vmem:[#allocation13 + $0x2f8] sm:$0xff]
    %v2704 = vld [vmem:[#allocation13 + $0x300] sm:$0xff]
    %v2705 = vld [vmem:[#allocation13 + $0x308] sm:$0xff]
    %v2706 = vld [vmem:[#allocation13 + $0x310] sm:$0xff]
    %v2707 = vld [vmem:[#allocation13 + $0x318] sm:$0xff]
    %v2708 = vld [vmem:[#allocation13 + $0x320] sm:$0xff]
    %v2709 = vld [vmem:[#allocation13 + $0x328] sm:$0xff]
    %v2710 = vld [vmem:[#allocation13 + $0x330] sm:$0xff]
    %v2711 = vld [vmem:[#allocation13 + $0x338] sm:$0xff]
    %v2712 = vld [vmem:[#allocation13 + $0x340] sm:$0xff]
    %v2713 = vld [vmem:[#allocation13 + $0x348] sm:$0xff]
    %v2714 = vld [vmem:[#allocation13 + $0x350] sm:$0xff]
    %v2715 = vld [vmem:[#allocation13 + $0x358] sm:$0xff]
    %v2716 = vld [vmem:[#allocation13 + $0x360] sm:$0xff]
    %v2717 = vld [vmem:[#allocation13 + $0x368] sm:$0xff]
    %v2718 = vld [vmem:[#allocation13 + $0x370] sm:$0xff]
    %v2719 = vld [vmem:[#allocation13 + $0x378] sm:$0xff]
    %v2720 = vld [vmem:[#allocation13 + $0x380] sm:$0xff]
    %v2721 = vld [vmem:[#allocation13 + $0x388] sm:$0xff]
    %v2722 = vld [vmem:[#allocation13 + $0x390] sm:$0xff]
    %v2723 = vld [vmem:[#allocation13 + $0x398] sm:$0xff]
    %v2724 = vld [vmem:[#allocation13 + $0x3a0] sm:$0xff]
    %v2725 = vld [vmem:[#allocation13 + $0x3a8] sm:$0xff]
    %v2726 = vld [vmem:[#allocation13 + $0x3b0] sm:$0xff]
    %v2727 = vld [vmem:[#allocation13 + $0x3b8] sm:$0xff]
    %v2728 = vld [vmem:[#allocation13 + $0x3c0] sm:$0xff]
    %v2729 = vld [vmem:[#allocation13 + $0x3c8] sm:$0xff]
    %v2730 = vld [vmem:[#allocation13 + $0x3d0] sm:$0xff]
    %v2731 = vld [vmem:[#allocation13 + $0x3d8] sm:$0xff]
    %v2732 = vld [vmem:[#allocation13 + $0x3e0] sm:$0xff]
    %v2733 = vld [vmem:[#allocation13 + $0x3e8] sm:$0xff]
    %v2734 = vld [vmem:[#allocation13 + $0x3f0] sm:$0xff]
    %v2735 = vld [vmem:[#allocation13 + $0x3f8] sm:$0xff]
    %v2736 = vpack.c.bf16 %v2600, %v2600
    %v2737 = vpack.c.bf16 %v2601, %v2601
    %v2738 = vpack.c.bf16 %v2602, %v2602
    %v2739 = vpack.c.bf16 %v2603, %v2603
    %v2740 = vld [vmem:[#allocation14] sm:$0xff]
    %v2741 = vld [vmem:[#allocation14 + $0x8] sm:$0xff]
    %v2742 = vld [vmem:[#allocation14 + $0x10] sm:$0xff]
    %v2743 = vld [vmem:[#allocation14 + $0x18] sm:$0xff]
    %v2744 = vld [vmem:[#allocation14 + $0x20] sm:$0xff]
    %v2745 = vld [vmem:[#allocation14 + $0x28] sm:$0xff]
    %v2746 = vld [vmem:[#allocation14 + $0x30] sm:$0xff]
    %v2747 = vld [vmem:[#allocation14 + $0x38] sm:$0xff]
    %v2748 = vld [vmem:[#allocation14 + $0x40] sm:$0xff]
    %v2749 = vld [vmem:[#allocation14 + $0x48] sm:$0xff]
    %v2750 = vld [vmem:[#allocation14 + $0x50] sm:$0xff]
    %v2751 = vld [vmem:[#allocation14 + $0x58] sm:$0xff]
    %v2752 = vld [vmem:[#allocation14 + $0x60] sm:$0xff]
    %v2753 = vld [vmem:[#allocation14 + $0x68] sm:$0xff]
    %v2754 = vld [vmem:[#allocation14 + $0x70] sm:$0xff]
    %v2755 = vld [vmem:[#allocation14 + $0x78] sm:$0xff]
    %v2756 = vld [vmem:[#allocation14 + $0x80] sm:$0xff]
    %v2757 = vld [vmem:[#allocation14 + $0x88] sm:$0xff]
    %v2758 = vld [vmem:[#allocation14 + $0x90] sm:$0xff]
    %v2759 = vld [vmem:[#allocation14 + $0x98] sm:$0xff]
    %v2760 = vld [vmem:[#allocation14 + $0xa0] sm:$0xff]
    %v2761 = vld [vmem:[#allocation14 + $0xa8] sm:$0xff]
    %v2762 = vld [vmem:[#allocation14 + $0xb0] sm:$0xff]
    %v2763 = vld [vmem:[#allocation14 + $0xb8] sm:$0xff]
    %v2764 = vld [vmem:[#allocation14 + $0xc0] sm:$0xff]
    %v2765 = vld [vmem:[#allocation14 + $0xc8] sm:$0xff]
    %v2766 = vld [vmem:[#allocation14 + $0xd0] sm:$0xff]
    %v2767 = vld [vmem:[#allocation14 + $0xd8] sm:$0xff]
    %v2768 = vld [vmem:[#allocation14 + $0xe0] sm:$0xff]
    %v2769 = vld [vmem:[#allocation14 + $0xe8] sm:$0xff]
    %v2770 = vld [vmem:[#allocation14 + $0xf0] sm:$0xff]
    %v2771 = vld [vmem:[#allocation14 + $0xf8] sm:$0xff]
    %v2772 = vld [vmem:[#allocation14 + $0x100] sm:$0xff]
    %v2773 = vld [vmem:[#allocation14 + $0x108] sm:$0xff]
    %v2774 = vld [vmem:[#allocation14 + $0x110] sm:$0xff]
    %v2775 = vld [vmem:[#allocation14 + $0x118] sm:$0xff]
    %v2776 = vld [vmem:[#allocation14 + $0x120] sm:$0xff]
    %v2777 = vld [vmem:[#allocation14 + $0x128] sm:$0xff]
    %v2778 = vld [vmem:[#allocation14 + $0x130] sm:$0xff]
    %v2779 = vld [vmem:[#allocation14 + $0x138] sm:$0xff]
    %v2780 = vld [vmem:[#allocation14 + $0x140] sm:$0xff]
    %v2781 = vld [vmem:[#allocation14 + $0x148] sm:$0xff]
    %v2782 = vld [vmem:[#allocation14 + $0x150] sm:$0xff]
    %v2783 = vld [vmem:[#allocation14 + $0x158] sm:$0xff]
    %v2784 = vld [vmem:[#allocation14 + $0x160] sm:$0xff]
    %v2785 = vld [vmem:[#allocation14 + $0x168] sm:$0xff]
    %v2786 = vld [vmem:[#allocation14 + $0x170] sm:$0xff]
    %v2787 = vld [vmem:[#allocation14 + $0x178] sm:$0xff]
    %v2788 = vld [vmem:[#allocation14 + $0x180] sm:$0xff]
    %v2789 = vld [vmem:[#allocation14 + $0x188] sm:$0xff]
    %v2790 = vld [vmem:[#allocation14 + $0x190] sm:$0xff]
    %v2791 = vld [vmem:[#allocation14 + $0x198] sm:$0xff]
    %v2792 = vld [vmem:[#allocation14 + $0x1a0] sm:$0xff]
    %v2793 = vld [vmem:[#allocation14 + $0x1a8] sm:$0xff]
    %v2794 = vld [vmem:[#allocation14 + $0x1b0] sm:$0xff]
    %v2795 = vld [vmem:[#allocation14 + $0x1b8] sm:$0xff]
    %v2796 = vld [vmem:[#allocation14 + $0x1c0] sm:$0xff]
    %v2797 = vld [vmem:[#allocation14 + $0x1c8] sm:$0xff]
    %v2798 = vld [vmem:[#allocation14 + $0x1d0] sm:$0xff]
    %v2799 = vld [vmem:[#allocation14 + $0x1d8] sm:$0xff]
    %v2800 = vld [vmem:[#allocation14 + $0x1e0] sm:$0xff]
    %v2801 = vld [vmem:[#allocation14 + $0x1e8] sm:$0xff]
    %v2802 = vld [vmem:[#allocation14 + $0x1f0] sm:$0xff]
    %v2803 = vld [vmem:[#allocation14 + $0x1f8] sm:$0xff]
    %v2804 = vld [vmem:[#allocation14 + $0x200] sm:$0xff]
    %v2805 = vld [vmem:[#allocation14 + $0x208] sm:$0xff]
    %v2806 = vld [vmem:[#allocation14 + $0x210] sm:$0xff]
    %v2807 = vld [vmem:[#allocation14 + $0x218] sm:$0xff]
    %v2808 = vld [vmem:[#allocation14 + $0x220] sm:$0xff]
    %v2809 = vld [vmem:[#allocation14 + $0x228] sm:$0xff]
    %v2810 = vld [vmem:[#allocation14 + $0x230] sm:$0xff]
    %v2811 = vld [vmem:[#allocation14 + $0x238] sm:$0xff]
    %v2812 = vld [vmem:[#allocation14 + $0x240] sm:$0xff]
    %v2813 = vld [vmem:[#allocation14 + $0x248] sm:$0xff]
    %v2814 = vld [vmem:[#allocation14 + $0x250] sm:$0xff]
    %v2815 = vld [vmem:[#allocation14 + $0x258] sm:$0xff]
    %v2816 = vld [vmem:[#allocation14 + $0x260] sm:$0xff]
    %v2817 = vld [vmem:[#allocation14 + $0x268] sm:$0xff]
    %v2818 = vld [vmem:[#allocation14 + $0x270] sm:$0xff]
    %v2819 = vld [vmem:[#allocation14 + $0x278] sm:$0xff]
    %v2820 = vld [vmem:[#allocation14 + $0x280] sm:$0xff]
    %v2821 = vld [vmem:[#allocation14 + $0x288] sm:$0xff]
    %v2822 = vld [vmem:[#allocation14 + $0x290] sm:$0xff]
    %v2823 = vld [vmem:[#allocation14 + $0x298] sm:$0xff]
    %v2824 = vld [vmem:[#allocation14 + $0x2a0] sm:$0xff]
    %v2825 = vld [vmem:[#allocation14 + $0x2a8] sm:$0xff]
    %v2826 = vld [vmem:[#allocation14 + $0x2b0] sm:$0xff]
    %v2827 = vld [vmem:[#allocation14 + $0x2b8] sm:$0xff]
    %v2828 = vld [vmem:[#allocation14 + $0x2c0] sm:$0xff]
    %v2829 = vld [vmem:[#allocation14 + $0x2c8] sm:$0xff]
    %v2830 = vld [vmem:[#allocation14 + $0x2d0] sm:$0xff]
    %v2831 = vld [vmem:[#allocation14 + $0x2d8] sm:$0xff]
    %v2832 = vld [vmem:[#allocation14 + $0x2e0] sm:$0xff]
    %v2833 = vld [vmem:[#allocation14 + $0x2e8] sm:$0xff]
    %v2834 = vld [vmem:[#allocation14 + $0x2f0] sm:$0xff]
    %v2835 = vld [vmem:[#allocation14 + $0x2f8] sm:$0xff]
    %v2836 = vld [vmem:[#allocation14 + $0x300] sm:$0xff]
    %v2837 = vld [vmem:[#allocation14 + $0x308] sm:$0xff]
    %v2838 = vld [vmem:[#allocation14 + $0x310] sm:$0xff]
    %v2839 = vld [vmem:[#allocation14 + $0x318] sm:$0xff]
    %v2840 = vld [vmem:[#allocation14 + $0x320] sm:$0xff]
    %v2841 = vld [vmem:[#allocation14 + $0x328] sm:$0xff]
    %v2842 = vld [vmem:[#allocation14 + $0x330] sm:$0xff]
    %v2843 = vld [vmem:[#allocation14 + $0x338] sm:$0xff]
    %v2844 = vld [vmem:[#allocation14 + $0x340] sm:$0xff]
    %v2845 = vld [vmem:[#allocation14 + $0x348] sm:$0xff]
    %v2846 = vld [vmem:[#allocation14 + $0x350] sm:$0xff]
    %v2847 = vld [vmem:[#allocation14 + $0x358] sm:$0xff]
    %v2848 = vld [vmem:[#allocation14 + $0x360] sm:$0xff]
    %v2849 = vld [vmem:[#allocation14 + $0x368] sm:$0xff]
    %v2850 = vld [vmem:[#allocation14 + $0x370] sm:$0xff]
    %v2851 = vld [vmem:[#allocation14 + $0x378] sm:$0xff]
    %v2852 = vld [vmem:[#allocation14 + $0x380] sm:$0xff]
    %v2853 = vld [vmem:[#allocation14 + $0x388] sm:$0xff]
    %v2854 = vld [vmem:[#allocation14 + $0x390] sm:$0xff]
    %v2855 = vld [vmem:[#allocation14 + $0x398] sm:$0xff]
    %v2856 = vld [vmem:[#allocation14 + $0x3a0] sm:$0xff]
    %v2857 = vld [vmem:[#allocation14 + $0x3a8] sm:$0xff]
    %v2858 = vld [vmem:[#allocation14 + $0x3b0] sm:$0xff]
    %v2859 = vld [vmem:[#allocation14 + $0x3b8] sm:$0xff]
    %v2860 = vld [vmem:[#allocation14 + $0x3c0] sm:$0xff]
    %v2861 = vld [vmem:[#allocation14 + $0x3c8] sm:$0xff]
    %v2862 = vld [vmem:[#allocation14 + $0x3d0] sm:$0xff]
    %v2863 = vld [vmem:[#allocation14 + $0x3d8] sm:$0xff]
    %v2864 = vld [vmem:[#allocation14 + $0x3e0] sm:$0xff]
    %v2865 = vld [vmem:[#allocation14 + $0x3e8] sm:$0xff]
    %v2866 = vld [vmem:[#allocation14 + $0x3f0] sm:$0xff]
    %v2867 = vld [vmem:[#allocation14 + $0x3f8] sm:$0xff]
    %v2996 = vunpack.c.l.b16 %v2740
    %v2997 = vunpack.c.h.b16 %v2740
    %v2998 = vunpack.c.l.b16 %v2741
    %v2999 = vunpack.c.h.b16 %v2741
    %v3000 = vunpack.c.l.b16 %v2742
    %v3001 = vunpack.c.h.b16 %v2742
    %v3002 = vunpack.c.l.b16 %v2743
    %v3003 = vunpack.c.h.b16 %v2743
    %v3004 = vunpack.c.l.b16 %v2744
    %v3005 = vunpack.c.h.b16 %v2744
    %v3006 = vunpack.c.l.b16 %v2745
    %v3007 = vunpack.c.h.b16 %v2745
    %v3008 = vunpack.c.l.b16 %v2746
    %v3009 = vunpack.c.h.b16 %v2746
    %v3010 = vunpack.c.l.b16 %v2747
    %v3011 = vunpack.c.h.b16 %v2747
    %v3012 = vunpack.c.l.b16 %v2748
    %v3013 = vunpack.c.h.b16 %v2748
    %v3014 = vunpack.c.l.b16 %v2749
    %v3015 = vunpack.c.h.b16 %v2749
    %v3016 = vunpack.c.l.b16 %v2750
    %v3017 = vunpack.c.h.b16 %v2750
    %v3018 = vunpack.c.l.b16 %v2751
    %v3019 = vunpack.c.h.b16 %v2751
    %v3020 = vunpack.c.l.b16 %v2752
    %v3021 = vunpack.c.h.b16 %v2752
    %v3022 = vunpack.c.l.b16 %v2753
    %v3023 = vunpack.c.h.b16 %v2753
    %v3024 = vunpack.c.l.b16 %v2754
    %v3025 = vunpack.c.h.b16 %v2754
    %v3026 = vunpack.c.l.b16 %v2755
    %v3027 = vunpack.c.h.b16 %v2755
    %v3028 = vunpack.c.l.b16 %v2756
    %v3029 = vunpack.c.h.b16 %v2756
    %v3030 = vunpack.c.l.b16 %v2757
    %v3031 = vunpack.c.h.b16 %v2757
    %v3032 = vunpack.c.l.b16 %v2758
    %v3033 = vunpack.c.h.b16 %v2758
    %v3034 = vunpack.c.l.b16 %v2759
    %v3035 = vunpack.c.h.b16 %v2759
    %v3036 = vunpack.c.l.b16 %v2760
    %v3037 = vunpack.c.h.b16 %v2760
    %v3038 = vunpack.c.l.b16 %v2761
    %v3039 = vunpack.c.h.b16 %v2761
    %v3040 = vunpack.c.l.b16 %v2762
    %v3041 = vunpack.c.h.b16 %v2762
    %v3042 = vunpack.c.l.b16 %v2763
    %v3043 = vunpack.c.h.b16 %v2763
    %v3044 = vunpack.c.l.b16 %v2764
    %v3045 = vunpack.c.h.b16 %v2764
    %v3046 = vunpack.c.l.b16 %v2765
    %v3047 = vunpack.c.h.b16 %v2765
    %v3048 = vunpack.c.l.b16 %v2766
    %v3049 = vunpack.c.h.b16 %v2766
    %v3050 = vunpack.c.l.b16 %v2767
    %v3051 = vunpack.c.h.b16 %v2767
    %v3052 = vunpack.c.l.b16 %v2768
    %v3053 = vunpack.c.h.b16 %v2768
    %v3054 = vunpack.c.l.b16 %v2769
    %v3055 = vunpack.c.h.b16 %v2769
    %v3056 = vunpack.c.l.b16 %v2770
    %v3057 = vunpack.c.h.b16 %v2770
    %v3058 = vunpack.c.l.b16 %v2771
    %v3059 = vunpack.c.h.b16 %v2771
    %v3060 = vunpack.c.l.b16 %v2772
    %v3061 = vunpack.c.h.b16 %v2772
    %v3062 = vunpack.c.l.b16 %v2773
    %v3063 = vunpack.c.h.b16 %v2773
    %v3064 = vunpack.c.l.b16 %v2774
    %v3065 = vunpack.c.h.b16 %v2774
    %v3066 = vunpack.c.l.b16 %v2775
    %v3067 = vunpack.c.h.b16 %v2775
    %v3068 = vunpack.c.l.b16 %v2776
    %v3069 = vunpack.c.h.b16 %v2776
    %v3070 = vunpack.c.l.b16 %v2777
    %v3071 = vunpack.c.h.b16 %v2777
    %v3072 = vunpack.c.l.b16 %v2778
    %v3073 = vunpack.c.h.b16 %v2778
    %v3074 = vunpack.c.l.b16 %v2779
    %v3075 = vunpack.c.h.b16 %v2779
    %v3076 = vunpack.c.l.b16 %v2780
    %v3077 = vunpack.c.h.b16 %v2780
    %v3078 = vunpack.c.l.b16 %v2781
    %v3079 = vunpack.c.h.b16 %v2781
    %v3080 = vunpack.c.l.b16 %v2782
    %v3081 = vunpack.c.h.b16 %v2782
    %v3082 = vunpack.c.l.b16 %v2783
    %v3083 = vunpack.c.h.b16 %v2783
    %v3084 = vunpack.c.l.b16 %v2784
    %v3085 = vunpack.c.h.b16 %v2784
    %v3086 = vunpack.c.l.b16 %v2785
    %v3087 = vunpack.c.h.b16 %v2785
    %v3088 = vunpack.c.l.b16 %v2786
    %v3089 = vunpack.c.h.b16 %v2786
    %v3090 = vunpack.c.l.b16 %v2787
    %v3091 = vunpack.c.h.b16 %v2787
    %v3092 = vunpack.c.l.b16 %v2788
    %v3093 = vunpack.c.h.b16 %v2788
    %v3094 = vunpack.c.l.b16 %v2789
    %v3095 = vunpack.c.h.b16 %v2789
    %v3096 = vunpack.c.l.b16 %v2790
    %v3097 = vunpack.c.h.b16 %v2790
    %v3098 = vunpack.c.l.b16 %v2791
    %v3099 = vunpack.c.h.b16 %v2791
    %v3100 = vunpack.c.l.b16 %v2792
    %v3101 = vunpack.c.h.b16 %v2792
    %v3102 = vunpack.c.l.b16 %v2793
    %v3103 = vunpack.c.h.b16 %v2793
    %v3104 = vunpack.c.l.b16 %v2794
    %v3105 = vunpack.c.h.b16 %v2794
    %v3106 = vunpack.c.l.b16 %v2795
    %v3107 = vunpack.c.h.b16 %v2795
    %v3108 = vunpack.c.l.b16 %v2796
    %v3109 = vunpack.c.h.b16 %v2796
    %v3110 = vunpack.c.l.b16 %v2797
    %v3111 = vunpack.c.h.b16 %v2797
    %v3112 = vunpack.c.l.b16 %v2798
    %v3113 = vunpack.c.h.b16 %v2798
    %v3114 = vunpack.c.l.b16 %v2799
    %v3115 = vunpack.c.h.b16 %v2799
    %v3116 = vunpack.c.l.b16 %v2800
    %v3117 = vunpack.c.h.b16 %v2800
    %v3118 = vunpack.c.l.b16 %v2801
    %v3119 = vunpack.c.h.b16 %v2801
    %v3120 = vunpack.c.l.b16 %v2802
    %v3121 = vunpack.c.h.b16 %v2802
    %v3122 = vunpack.c.l.b16 %v2803
    %v3123 = vunpack.c.h.b16 %v2803
    %v3124 = vunpack.c.l.b16 %v2804
    %v3125 = vunpack.c.h.b16 %v2804
    %v3126 = vunpack.c.l.b16 %v2805
    %v3127 = vunpack.c.h.b16 %v2805
    %v3128 = vunpack.c.l.b16 %v2806
    %v3129 = vunpack.c.h.b16 %v2806
    %v3130 = vunpack.c.l.b16 %v2807
    %v3131 = vunpack.c.h.b16 %v2807
    %v3132 = vunpack.c.l.b16 %v2808
    %v3133 = vunpack.c.h.b16 %v2808
    %v3134 = vunpack.c.l.b16 %v2809
    %v3135 = vunpack.c.h.b16 %v2809
    %v3136 = vunpack.c.l.b16 %v2810
    %v3137 = vunpack.c.h.b16 %v2810
    %v3138 = vunpack.c.l.b16 %v2811
    %v3139 = vunpack.c.h.b16 %v2811
    %v3140 = vunpack.c.l.b16 %v2812
    %v3141 = vunpack.c.h.b16 %v2812
    %v3142 = vunpack.c.l.b16 %v2813
    %v3143 = vunpack.c.h.b16 %v2813
    %v3144 = vunpack.c.l.b16 %v2814
    %v3145 = vunpack.c.h.b16 %v2814
    %v3146 = vunpack.c.l.b16 %v2815
    %v3147 = vunpack.c.h.b16 %v2815
    %v3148 = vunpack.c.l.b16 %v2816
    %v3149 = vunpack.c.h.b16 %v2816
    %v3150 = vunpack.c.l.b16 %v2817
    %v3151 = vunpack.c.h.b16 %v2817
    %v3152 = vunpack.c.l.b16 %v2818
    %v3153 = vunpack.c.h.b16 %v2818
    %v3154 = vunpack.c.l.b16 %v2819
    %v3155 = vunpack.c.h.b16 %v2819
    %v3156 = vunpack.c.l.b16 %v2820
    %v3157 = vunpack.c.h.b16 %v2820
    %v3158 = vunpack.c.l.b16 %v2821
    %v3159 = vunpack.c.h.b16 %v2821
    %v3160 = vunpack.c.l.b16 %v2822
    %v3161 = vunpack.c.h.b16 %v2822
    %v3162 = vunpack.c.l.b16 %v2823
    %v3163 = vunpack.c.h.b16 %v2823
    %v3164 = vunpack.c.l.b16 %v2824
    %v3165 = vunpack.c.h.b16 %v2824
    %v3166 = vunpack.c.l.b16 %v2825
    %v3167 = vunpack.c.h.b16 %v2825
    %v3168 = vunpack.c.l.b16 %v2826
    %v3169 = vunpack.c.h.b16 %v2826
    %v3170 = vunpack.c.l.b16 %v2827
    %v3171 = vunpack.c.h.b16 %v2827
    %v3172 = vunpack.c.l.b16 %v2828
    %v3173 = vunpack.c.h.b16 %v2828
    %v3174 = vunpack.c.l.b16 %v2829
    %v3175 = vunpack.c.h.b16 %v2829
    %v3176 = vunpack.c.l.b16 %v2830
    %v3177 = vunpack.c.h.b16 %v2830
    %v3178 = vunpack.c.l.b16 %v2831
    %v3179 = vunpack.c.h.b16 %v2831
    %v3180 = vunpack.c.l.b16 %v2832
    %v3181 = vunpack.c.h.b16 %v2832
    %v3182 = vunpack.c.l.b16 %v2833
    %v3183 = vunpack.c.h.b16 %v2833
    %v3184 = vunpack.c.l.b16 %v2834
    %v3185 = vunpack.c.h.b16 %v2834
    %v3186 = vunpack.c.l.b16 %v2835
    %v3187 = vunpack.c.h.b16 %v2835
    %v3188 = vunpack.c.l.b16 %v2836
    %v3189 = vunpack.c.h.b16 %v2836
    %v3190 = vunpack.c.l.b16 %v2837
    %v3191 = vunpack.c.h.b16 %v2837
    %v3192 = vunpack.c.l.b16 %v2838
    %v3193 = vunpack.c.h.b16 %v2838
    %v3194 = vunpack.c.l.b16 %v2839
    %v3195 = vunpack.c.h.b16 %v2839
    %v3196 = vunpack.c.l.b16 %v2840
    %v3197 = vunpack.c.h.b16 %v2840
    %v3198 = vunpack.c.l.b16 %v2841
    %v3199 = vunpack.c.h.b16 %v2841
    %v3200 = vunpack.c.l.b16 %v2842
    %v3201 = vunpack.c.h.b16 %v2842
    %v3202 = vunpack.c.l.b16 %v2843
    %v3203 = vunpack.c.h.b16 %v2843
    %v3204 = vunpack.c.l.b16 %v2844
    %v3205 = vunpack.c.h.b16 %v2844
    %v3206 = vunpack.c.l.b16 %v2845
    %v3207 = vunpack.c.h.b16 %v2845
    %v3208 = vunpack.c.l.b16 %v2846
    %v3209 = vunpack.c.h.b16 %v2846
    %v3210 = vunpack.c.l.b16 %v2847
    %v3211 = vunpack.c.h.b16 %v2847
    %v3212 = vunpack.c.l.b16 %v2848
    %v3213 = vunpack.c.h.b16 %v2848
    %v3214 = vunpack.c.l.b16 %v2849
    %v3215 = vunpack.c.h.b16 %v2849
    %v3216 = vunpack.c.l.b16 %v2850
    %v3217 = vunpack.c.h.b16 %v2850
    %v3218 = vunpack.c.l.b16 %v2851
    %v3219 = vunpack.c.h.b16 %v2851
    %v3220 = vunpack.c.l.b16 %v2852
    %v3221 = vunpack.c.h.b16 %v2852
    %v3222 = vunpack.c.l.b16 %v2853
    %v3223 = vunpack.c.h.b16 %v2853
    %v3224 = vunpack.c.l.b16 %v2854
    %v3225 = vunpack.c.h.b16 %v2854
    %v3226 = vunpack.c.l.b16 %v2855
    %v3227 = vunpack.c.h.b16 %v2855
    %v3228 = vunpack.c.l.b16 %v2856
    %v3229 = vunpack.c.h.b16 %v2856
    %v3230 = vunpack.c.l.b16 %v2857
    %v3231 = vunpack.c.h.b16 %v2857
    %v3232 = vunpack.c.l.b16 %v2858
    %v3233 = vunpack.c.h.b16 %v2858
    %v3234 = vunpack.c.l.b16 %v2859
    %v3235 = vunpack.c.h.b16 %v2859
    %v3236 = vunpack.c.l.b16 %v2860
    %v3237 = vunpack.c.h.b16 %v2860
    %v3238 = vunpack.c.l.b16 %v2861
    %v3239 = vunpack.c.h.b16 %v2861
    %v3240 = vunpack.c.l.b16 %v2862
    %v3241 = vunpack.c.h.b16 %v2862
    %v3242 = vunpack.c.l.b16 %v2863
    %v3243 = vunpack.c.h.b16 %v2863
    %v3244 = vunpack.c.l.b16 %v2864
    %v3245 = vunpack.c.h.b16 %v2864
    %v3246 = vunpack.c.l.b16 %v2865
    %v3247 = vunpack.c.h.b16 %v2865
    %v3248 = vunpack.c.l.b16 %v2866
    %v3249 = vunpack.c.h.b16 %v2866
    %v3250 = vunpack.c.l.b16 %v2867
    %v3251 = vunpack.c.h.b16 %v2867
    %v3252 = vpack.c.b16 %v3000, %v2996
    %v3253 = vpack.c.b16 %v3001, %v2997
    %v3254 = vpack.c.b16 %v3002, %v2998
    %v3255 = vpack.c.b16 %v3003, %v2999
    %v3256 = vpack.c.b16 %v3008, %v3004
    %v3257 = vpack.c.b16 %v3009, %v3005
    %v3258 = vpack.c.b16 %v3010, %v3006
    %v3259 = vpack.c.b16 %v3011, %v3007
    %v3260 = vpack.c.b16 %v3016, %v3012
    %v3261 = vpack.c.b16 %v3017, %v3013
    %v3262 = vpack.c.b16 %v3018, %v3014
    %v3263 = vpack.c.b16 %v3019, %v3015
    %v3264 = vpack.c.b16 %v3024, %v3020
    %v3265 = vpack.c.b16 %v3025, %v3021
    %v3266 = vpack.c.b16 %v3026, %v3022
    %v3267 = vpack.c.b16 %v3027, %v3023
    %v3268 = vpack.c.b16 %v3032, %v3028
    %v3269 = vpack.c.b16 %v3033, %v3029
    %v3270 = vpack.c.b16 %v3034, %v3030
    %v3271 = vpack.c.b16 %v3035, %v3031
    %v3272 = vpack.c.b16 %v3040, %v3036
    %v3273 = vpack.c.b16 %v3041, %v3037
    %v3274 = vpack.c.b16 %v3042, %v3038
    %v3275 = vpack.c.b16 %v3043, %v3039
    %v3276 = vpack.c.b16 %v3048, %v3044
    %v3277 = vpack.c.b16 %v3049, %v3045
    %v3278 = vpack.c.b16 %v3050, %v3046
    %v3279 = vpack.c.b16 %v3051, %v3047
    %v3280 = vpack.c.b16 %v3056, %v3052
    %v3281 = vpack.c.b16 %v3057, %v3053
    %v3282 = vpack.c.b16 %v3058, %v3054
    %v3283 = vpack.c.b16 %v3059, %v3055
    %v3284 = vpack.c.b16 %v3064, %v3060
    %v3285 = vpack.c.b16 %v3065, %v3061
    %v3286 = vpack.c.b16 %v3066, %v3062
    %v3287 = vpack.c.b16 %v3067, %v3063
    %v3288 = vpack.c.b16 %v3072, %v3068
    %v3289 = vpack.c.b16 %v3073, %v3069
    %v3290 = vpack.c.b16 %v3074, %v3070
    %v3291 = vpack.c.b16 %v3075, %v3071
    %v3292 = vpack.c.b16 %v3080, %v3076
    %v3293 = vpack.c.b16 %v3081, %v3077
    %v3294 = vpack.c.b16 %v3082, %v3078
    %v3295 = vpack.c.b16 %v3083, %v3079
    %v3296 = vpack.c.b16 %v3088, %v3084
    %v3297 = vpack.c.b16 %v3089, %v3085
    %v3298 = vpack.c.b16 %v3090, %v3086
    %v3299 = vpack.c.b16 %v3091, %v3087
    %v3300 = vpack.c.b16 %v3096, %v3092
    %v3301 = vpack.c.b16 %v3097, %v3093
    %v3302 = vpack.c.b16 %v3098, %v3094
    %v3303 = vpack.c.b16 %v3099, %v3095
    %v3304 = vpack.c.b16 %v3104, %v3100
    %v3305 = vpack.c.b16 %v3105, %v3101
    %v3306 = vpack.c.b16 %v3106, %v3102
    %v3307 = vpack.c.b16 %v3107, %v3103
    %v3308 = vpack.c.b16 %v3112, %v3108
    %v3309 = vpack.c.b16 %v3113, %v3109
    %v3310 = vpack.c.b16 %v3114, %v3110
    %v3311 = vpack.c.b16 %v3115, %v3111
    %v3312 = vpack.c.b16 %v3120, %v3116
    %v3313 = vpack.c.b16 %v3121, %v3117
    %v3314 = vpack.c.b16 %v3122, %v3118
    %v3315 = vpack.c.b16 %v3123, %v3119
    %v3316 = vpack.c.b16 %v3128, %v3124
    %v3317 = vpack.c.b16 %v3129, %v3125
    %v3318 = vpack.c.b16 %v3130, %v3126
    %v3319 = vpack.c.b16 %v3131, %v3127
    %v3320 = vpack.c.b16 %v3136, %v3132
    %v3321 = vpack.c.b16 %v3137, %v3133
    %v3322 = vpack.c.b16 %v3138, %v3134
    %v3323 = vpack.c.b16 %v3139, %v3135
    %v3324 = vpack.c.b16 %v3144, %v3140
    %v3325 = vpack.c.b16 %v3145, %v3141
    %v3326 = vpack.c.b16 %v3146, %v3142
    %v3327 = vpack.c.b16 %v3147, %v3143
    %v3328 = vpack.c.b16 %v3152, %v3148
    %v3329 = vpack.c.b16 %v3153, %v3149
    %v3330 = vpack.c.b16 %v3154, %v3150
    %v3331 = vpack.c.b16 %v3155, %v3151
    %v3332 = vpack.c.b16 %v3160, %v3156
    %v3333 = vpack.c.b16 %v3161, %v3157
    %v3334 = vpack.c.b16 %v3162, %v3158
    %v3335 = vpack.c.b16 %v3163, %v3159
    %v3336 = vpack.c.b16 %v3168, %v3164
    %v3337 = vpack.c.b16 %v3169, %v3165
    %v3338 = vpack.c.b16 %v3170, %v3166
    %v3339 = vpack.c.b16 %v3171, %v3167
    %v3340 = vpack.c.b16 %v3176, %v3172
    %v3341 = vpack.c.b16 %v3177, %v3173
    %v3342 = vpack.c.b16 %v3178, %v3174
    %v3343 = vpack.c.b16 %v3179, %v3175
    %v3344 = vpack.c.b16 %v3184, %v3180
    %v3345 = vpack.c.b16 %v3185, %v3181
    %v3346 = vpack.c.b16 %v3186, %v3182
    %v3347 = vpack.c.b16 %v3187, %v3183
    %v3348 = vpack.c.b16 %v3192, %v3188
    %v3349 = vpack.c.b16 %v3193, %v3189
    %v3350 = vpack.c.b16 %v3194, %v3190
    %v3351 = vpack.c.b16 %v3195, %v3191
    %v3352 = vpack.c.b16 %v3200, %v3196
    %v3353 = vpack.c.b16 %v3201, %v3197
    %v3354 = vpack.c.b16 %v3202, %v3198
    %v3355 = vpack.c.b16 %v3203, %v3199
    %v3356 = vpack.c.b16 %v3208, %v3204
    %v3357 = vpack.c.b16 %v3209, %v3205
    %v3358 = vpack.c.b16 %v3210, %v3206
    %v3359 = vpack.c.b16 %v3211, %v3207
    %v3360 = vpack.c.b16 %v3216, %v3212
    %v3361 = vpack.c.b16 %v3217, %v3213
    %v3362 = vpack.c.b16 %v3218, %v3214
    %v3363 = vpack.c.b16 %v3219, %v3215
    %v3364 = vpack.c.b16 %v3224, %v3220
    %v3365 = vpack.c.b16 %v3225, %v3221
    %v3366 = vpack.c.b16 %v3226, %v3222
    %v3367 = vpack.c.b16 %v3227, %v3223
    %v3368 = vpack.c.b16 %v3232, %v3228
    %v3369 = vpack.c.b16 %v3233, %v3229
    %v3370 = vpack.c.b16 %v3234, %v3230
    %v3371 = vpack.c.b16 %v3235, %v3231
    %v3372 = vpack.c.b16 %v3240, %v3236
    %v3373 = vpack.c.b16 %v3241, %v3237
    %v3374 = vpack.c.b16 %v3242, %v3238
    %v3375 = vpack.c.b16 %v3243, %v3239
    %v3376 = vpack.c.b16 %v3248, %v3244
    %v3377 = vpack.c.b16 %v3249, %v3245
    %v3378 = vpack.c.b16 %v3250, %v3246
    %v3379 = vpack.c.b16 %v3251, %v3247
    %3508 = vmatprep.subr.bf16.mxu0 %v3253
    %3509 = vmatpush1.bf16.msra.mxu0 %v3252
    %3510 = vmatprep.subr.bf16.mxu0 %v3257
    %3511 = vmatpush1.bf16.msra.mxu0 %v3256
    %3512 = vmatprep.subr.bf16.mxu0 %v3261
    %3513 = vmatpush1.bf16.msra.mxu0 %v3260
    %3514 = vmatprep.subr.bf16.mxu0 %v3265
    %3515 = vmatpush1.bf16.msra.mxu0 %v3264
    %3516 = vmatprep.subr.bf16.mxu0 %v3269
    %3517 = vmatpush1.bf16.msra.mxu0 %v3268
    %3518 = vmatprep.subr.bf16.mxu0 %v3273
    %3519 = vmatpush1.bf16.msra.mxu0 %v3272
    %3520 = vmatprep.subr.bf16.mxu0 %v3277
    %3521 = vmatpush1.bf16.msra.mxu0 %v3276
    %3522 = vmatprep.subr.bf16.mxu0 %v3281
    %3523 = vmatpush1.bf16.msra.mxu0 %v3280
    %3524 = vmatprep.subr.bf16.mxu0 %v3285
    %3525 = vmatpush1.bf16.msra.mxu0 %v3284
    %3526 = vmatprep.subr.bf16.mxu0 %v3289
    %3527 = vmatpush1.bf16.msra.mxu0 %v3288
    %3528 = vmatprep.subr.bf16.mxu0 %v3293
    %3529 = vmatpush1.bf16.msra.mxu0 %v3292
    %3530 = vmatprep.subr.bf16.mxu0 %v3297
    %3531 = vmatpush1.bf16.msra.mxu0 %v3296
    %3532 = vmatprep.subr.bf16.mxu0 %v3301
    %3533 = vmatpush1.bf16.msra.mxu0 %v3300
    %3534 = vmatprep.subr.bf16.mxu0 %v3305
    %3535 = vmatpush1.bf16.msra.mxu0 %v3304
    %3536 = vmatprep.subr.bf16.mxu0 %v3309
    %3537 = vmatpush1.bf16.msra.mxu0 %v3308
    %3538 = vmatprep.subr.bf16.mxu0 %v3313
    %3539 = vmatpush1.bf16.msra.mxu0 %v3312
    %3540 = vmatprep.mubr.bf16.mxu0 %v2737
    %3541 = vmatmul.mubr.bf16.gmra.mrb[0].mxu0 %v2736
    %v3542 = vpop.f32.mrb[0].mxu0
    %v3543 = vadd.f32 0.0, %v3542
    %v3544 = vpop.f32.mrb[0].mxu0
    %v3545 = vadd.f32 0.0, %v3544
    %v3546 = vpop.f32.mrb[0].mxu0
    %v3547 = vpop.f32.mrb[0].mxu0
    %3548 = vdwg.mxu0
    %3549 = vmatprep.subr.bf16.mxu0 %v3317
    %3550 = vmatpush1.bf16.msra.mxu0 %v3316
    %3551 = vmatprep.subr.bf16.mxu0 %v3321
    %3552 = vmatpush1.bf16.msra.mxu0 %v3320
    %3553 = vmatprep.subr.bf16.mxu0 %v3325
    %3554 = vmatpush1.bf16.msra.mxu0 %v3324
    %3555 = vmatprep.subr.bf16.mxu0 %v3329
    %3556 = vmatpush1.bf16.msra.mxu0 %v3328
    %3557 = vmatprep.subr.bf16.mxu0 %v3333
    %3558 = vmatpush1.bf16.msra.mxu0 %v3332
    %3559 = vmatprep.subr.bf16.mxu0 %v3337
    %3560 = vmatpush1.bf16.msra.mxu0 %v3336
    %3561 = vmatprep.subr.bf16.mxu0 %v3341
    %3562 = vmatpush1.bf16.msra.mxu0 %v3340
    %3563 = vmatprep.subr.bf16.mxu0 %v3345
    %3564 = vmatpush1.bf16.msra.mxu0 %v3344
    %3565 = vmatprep.subr.bf16.mxu0 %v3349
    %3566 = vmatpush1.bf16.msra.mxu0 %v3348
    %3567 = vmatprep.subr.bf16.mxu0 %v3353
    %3568 = vmatpush1.bf16.msra.mxu0 %v3352
    %3569 = vmatprep.subr.bf16.mxu0 %v3357
    %3570 = vmatpush1.bf16.msra.mxu0 %v3356
    %3571 = vmatprep.subr.bf16.mxu0 %v3361
    %3572 = vmatpush1.bf16.msra.mxu0 %v3360
    %3573 = vmatprep.subr.bf16.mxu0 %v3365
    %3574 = vmatpush1.bf16.msra.mxu0 %v3364
    %3575 = vmatprep.subr.bf16.mxu0 %v3369
    %3576 = vmatpush1.bf16.msra.mxu0 %v3368
    %3577 = vmatprep.subr.bf16.mxu0 %v3373
    %3578 = vmatpush1.bf16.msra.mxu0 %v3372
    %3579 = vmatprep.subr.bf16.mxu0 %v3377
    %3580 = vmatpush1.bf16.msra.mxu0 %v3376
    %3581 = vmatprep.mubr.bf16.mxu0 %v2739
    %3582 = vmatmul.mubr.bf16.gmra.mrb[0].mxu0 %v2738
    %v3583 = vpop.f32.mrb[0].mxu0
    %v3584 = vadd.f32 %v3543, %v3583
    %v3585 = vpop.f32.mrb[0].mxu0
    %v3586 = vadd.f32 %v3545, %v3585
    %v3587 = vpop.f32.mrb[0].mxu0
    %v3588 = vpop.f32.mrb[0].mxu0
    %3589 = vdwg.mxu0
    %3590 = vmatprep.subr.bf16.mxu0 %v3255
    %3591 = vmatpush1.bf16.msra.mxu0 %v3254
    %3592 = vmatprep.subr.bf16.mxu0 %v3259
    %3593 = vmatpush1.bf16.msra.mxu0 %v3258
    %3594 = vmatprep.subr.bf16.mxu0 %v3263
    %3595 = vmatpush1.bf16.msra.mxu0 %v3262
    %3596 = vmatprep.subr.bf16.mxu0 %v3267
    %3597 = vmatpush1.bf16.msra.mxu0 %v3266
    %3598 = vmatprep.subr.bf16.mxu0 %v3271
    %3599 = vmatpush1.bf16.msra.mxu0 %v3270
    %3600 = vmatprep.subr.bf16.mxu0 %v3275
    %3601 = vmatpush1.bf16.msra.mxu0 %v3274
    %3602 = vmatprep.subr.bf16.mxu0 %v3279
    %3603 = vmatpush1.bf16.msra.mxu0 %v3278
    %3604 = vmatprep.subr.bf16.mxu0 %v3283
    %3605 = vmatpush1.bf16.msra.mxu0 %v3282
    %3606 = vmatprep.subr.bf16.mxu0 %v3287
    %3607 = vmatpush1.bf16.msra.mxu0 %v3286
    %3608 = vmatprep.subr.bf16.mxu0 %v3291
    %3609 = vmatpush1.bf16.msra.mxu0 %v3290
    %3610 = vmatprep.subr.bf16.mxu0 %v3295
    %3611 = vmatpush1.bf16.msra.mxu0 %v3294
    %3612 = vmatprep.subr.bf16.mxu0 %v3299
    %3613 = vmatpush1.bf16.msra.mxu0 %v3298
    %3614 = vmatprep.subr.bf16.mxu0 %v3303
    %3615 = vmatpush1.bf16.msra.mxu0 %v3302
    %3616 = vmatprep.subr.bf16.mxu0 %v3307
    %3617 = vmatpush1.bf16.msra.mxu0 %v3306
    %3618 = vmatprep.subr.bf16.mxu0 %v3311
    %3619 = vmatpush1.bf16.msra.mxu0 %v3310
    %3620 = vmatprep.subr.bf16.mxu0 %v3315
    %3621 = vmatpush1.bf16.msra.mxu0 %v3314
    %3622 = vmatprep.mubr.bf16.mxu0 %v2737
    %3623 = vmatmul.mubr.bf16.gmra.mrb[0].mxu0 %v2736
    %v3624 = vpop.f32.mrb[0].mxu0
    %v3625 = vadd.f32 0.0, %v3624
    %v3626 = vpop.f32.mrb[0].mxu0
    %v3627 = vadd.f32 0.0, %v3626
    %v3628 = vpop.f32.mrb[0].mxu0
    %v3629 = vpop.f32.mrb[0].mxu0
    %3630 = vdwg.mxu0
    %3631 = vmatprep.subr.bf16.mxu0 %v3319
    %3632 = vmatpush1.bf16.msra.mxu0 %v3318
    %3633 = vmatprep.subr.bf16.mxu0 %v3323
    %3634 = vmatpush1.bf16.msra.mxu0 %v3322
    %3635 = vmatprep.subr.bf16.mxu0 %v3327
    %3636 = vmatpush1.bf16.msra.mxu0 %v3326
    %3637 = vmatprep.subr.bf16.mxu0 %v3331
    %3638 = vmatpush1.bf16.msra.mxu0 %v3330
    %3639 = vmatprep.subr.bf16.mxu0 %v3335
    %3640 = vmatpush1.bf16.msra.mxu0 %v3334
    %3641 = vmatprep.subr.bf16.mxu0 %v3339
    %3642 = vmatpush1.bf16.msra.mxu0 %v3338
    %3643 = vmatprep.subr.bf16.mxu0 %v3343
    %3644 = vmatpush1.bf16.msra.mxu0 %v3342
    %3645 = vmatprep.subr.bf16.mxu0 %v3347
    %3646 = vmatpush1.bf16.msra.mxu0 %v3346
    %3647 = vmatprep.subr.bf16.mxu0 %v3351
    %3648 = vmatpush1.bf16.msra.mxu0 %v3350
    %3649 = vmatprep.subr.bf16.mxu0 %v3355
    %3650 = vmatpush1.bf16.msra.mxu0 %v3354
    %3651 = vmatprep.subr.bf16.mxu0 %v3359
    %3652 = vmatpush1.bf16.msra.mxu0 %v3358
    %3653 = vmatprep.subr.bf16.mxu0 %v3363
    %3654 = vmatpush1.bf16.msra.mxu0 %v3362
    %3655 = vmatprep.subr.bf16.mxu0 %v3367
    %3656 = vmatpush1.bf16.msra.mxu0 %v3366
    %3657 = vmatprep.subr.bf16.mxu0 %v3371
    %3658 = vmatpush1.bf16.msra.mxu0 %v3370
    %3659 = vmatprep.subr.bf16.mxu0 %v3375
    %3660 = vmatpush1.bf16.msra.mxu0 %v3374
    %3661 = vmatprep.subr.bf16.mxu0 %v3379
    %3662 = vmatpush1.bf16.msra.mxu0 %v3378
    %3663 = vmatprep.mubr.bf16.mxu0 %v2739
    %3664 = vmatmul.mubr.bf16.gmra.mrb[0].mxu0 %v2738
    %v3665 = vpop.f32.mrb[0].mxu0
    %v3666 = vadd.f32 %v3625, %v3665
    %v3667 = vpop.f32.mrb[0].mxu0
    %v3668 = vadd.f32 %v3627, %v3667
    %v3669 = vpop.f32.mrb[0].mxu0
    %v3670 = vpop.f32.mrb[0].mxu0
    %3671 = vdwg.mxu0
    %v3800 = vunpack.c.l.b16 %v2608
    %v3801 = vunpack.c.h.b16 %v2608
    %v3802 = vunpack.c.l.b16 %v2609
    %v3803 = vunpack.c.h.b16 %v2609
    %v3804 = vunpack.c.l.b16 %v2610
    %v3805 = vunpack.c.h.b16 %v2610
    %v3806 = vunpack.c.l.b16 %v2611
    %v3807 = vunpack.c.h.b16 %v2611
    %v3808 = vunpack.c.l.b16 %v2612
    %v3809 = vunpack.c.h.b16 %v2612
    %v3810 = vunpack.c.l.b16 %v2613
    %v3811 = vunpack.c.h.b16 %v2613
    %v3812 = vunpack.c.l.b16 %v2614
    %v3813 = vunpack.c.h.b16 %v2614
    %v3814 = vunpack.c.l.b16 %v2615
    %v3815 = vunpack.c.h.b16 %v2615
    %v3816 = vunpack.c.l.b16 %v2616
    %v3817 = vunpack.c.h.b16 %v2616
    %v3818 = vunpack.c.l.b16 %v2617
    %v3819 = vunpack.c.h.b16 %v2617
    %v3820 = vunpack.c.l.b16 %v2618
    %v3821 = vunpack.c.h.b16 %v2618
    %v3822 = vunpack.c.l.b16 %v2619
    %v3823 = vunpack.c.h.b16 %v2619
    %v3824 = vunpack.c.l.b16 %v2620
    %v3825 = vunpack.c.h.b16 %v2620
    %v3826 = vunpack.c.l.b16 %v2621
    %v3827 = vunpack.c.h.b16 %v2621
    %v3828 = vunpack.c.l.b16 %v2622
    %v3829 = vunpack.c.h.b16 %v2622
    %v3830 = vunpack.c.l.b16 %v2623
    %v3831 = vunpack.c.h.b16 %v2623
    %v3832 = vunpack.c.l.b16 %v2624
    %v3833 = vunpack.c.h.b16 %v2624
    %v3834 = vunpack.c.l.b16 %v2625
    %v3835 = vunpack.c.h.b16 %v2625
    %v3836 = vunpack.c.l.b16 %v2626
    %v3837 = vunpack.c.h.b16 %v2626
    %v3838 = vunpack.c.l.b16 %v2627
    %v3839 = vunpack.c.h.b16 %v2627
    %v3840 = vunpack.c.l.b16 %v2628
    %v3841 = vunpack.c.h.b16 %v2628
    %v3842 = vunpack.c.l.b16 %v2629
    %v3843 = vunpack.c.h.b16 %v2629
    %v3844 = vunpack.c.l.b16 %v2630
    %v3845 = vunpack.c.h.b16 %v2630
    %v3846 = vunpack.c.l.b16 %v2631
    %v3847 = vunpack.c.h.b16 %v2631
    %v3848 = vunpack.c.l.b16 %v2632
    %v3849 = vunpack.c.h.b16 %v2632
    %v3850 = vunpack.c.l.b16 %v2633
    %v3851 = vunpack.c.h.b16 %v2633
    %v3852 = vunpack.c.l.b16 %v2634
    %v3853 = vunpack.c.h.b16 %v2634
    %v3854 = vunpack.c.l.b16 %v2635
    %v3855 = vunpack.c.h.b16 %v2635
    %v3856 = vunpack.c.l.b16 %v2636
    %v3857 = vunpack.c.h.b16 %v2636
    %v3858 = vunpack.c.l.b16 %v2637
    %v3859 = vunpack.c.h.b16 %v2637
    %v3860 = vunpack.c.l.b16 %v2638
    %v3861 = vunpack.c.h.b16 %v2638
    %v3862 = vunpack.c.l.b16 %v2639
    %v3863 = vunpack.c.h.b16 %v2639
    %v3864 = vunpack.c.l.b16 %v2640
    %v3865 = vunpack.c.h.b16 %v2640
    %v3866 = vunpack.c.l.b16 %v2641
    %v3867 = vunpack.c.h.b16 %v2641
    %v3868 = vunpack.c.l.b16 %v2642
    %v3869 = vunpack.c.h.b16 %v2642
    %v3870 = vunpack.c.l.b16 %v2643
    %v3871 = vunpack.c.h.b16 %v2643
    %v3872 = vunpack.c.l.b16 %v2644
    %v3873 = vunpack.c.h.b16 %v2644
    %v3874 = vunpack.c.l.b16 %v2645
    %v3875 = vunpack.c.h.b16 %v2645
    %v3876 = vunpack.c.l.b16 %v2646
    %v3877 = vunpack.c.h.b16 %v2646
    %v3878 = vunpack.c.l.b16 %v2647
    %v3879 = vunpack.c.h.b16 %v2647
    %v3880 = vunpack.c.l.b16 %v2648
    %v3881 = vunpack.c.h.b16 %v2648
    %v3882 = vunpack.c.l.b16 %v2649
    %v3883 = vunpack.c.h.b16 %v2649
    %v3884 = vunpack.c.l.b16 %v2650
    %v3885 = vunpack.c.h.b16 %v2650
    %v3886 = vunpack.c.l.b16 %v2651
    %v3887 = vunpack.c.h.b16 %v2651
    %v3888 = vunpack.c.l.b16 %v2652
    %v3889 = vunpack.c.h.b16 %v2652
    %v3890 = vunpack.c.l.b16 %v2653
    %v3891 = vunpack.c.h.b16 %v2653
    %v3892 = vunpack.c.l.b16 %v2654
    %v3893 = vunpack.c.h.b16 %v2654
    %v3894 = vunpack.c.l.b16 %v2655
    %v3895 = vunpack.c.h.b16 %v2655
    %v3896 = vunpack.c.l.b16 %v2656
    %v3897 = vunpack.c.h.b16 %v2656
    %v3898 = vunpack.c.l.b16 %v2657
    %v3899 = vunpack.c.h.b16 %v2657
    %v3900 = vunpack.c.l.b16 %v2658
    %v3901 = vunpack.c.h.b16 %v2658
    %v3902 = vunpack.c.l.b16 %v2659
    %v3903 = vunpack.c.h.b16 %v2659
    %v3904 = vunpack.c.l.b16 %v2660
    %v3905 = vunpack.c.h.b16 %v2660
    %v3906 = vunpack.c.l.b16 %v2661
    %v3907 = vunpack.c.h.b16 %v2661
    %v3908 = vunpack.c.l.b16 %v2662
    %v3909 = vunpack.c.h.b16 %v2662
    %v3910 = vunpack.c.l.b16 %v2663
    %v3911 = vunpack.c.h.b16 %v2663
    %v3912 = vunpack.c.l.b16 %v2664
    %v3913 = vunpack.c.h.b16 %v2664
    %v3914 = vunpack.c.l.b16 %v2665
    %v3915 = vunpack.c.h.b16 %v2665
    %v3916 = vunpack.c.l.b16 %v2666
    %v3917 = vunpack.c.h.b16 %v2666
    %v3918 = vunpack.c.l.b16 %v2667
    %v3919 = vunpack.c.h.b16 %v2667
    %v3920 = vunpack.c.l.b16 %v2668
    %v3921 = vunpack.c.h.b16 %v2668
    %v3922 = vunpack.c.l.b16 %v2669
    %v3923 = vunpack.c.h.b16 %v2669
    %v3924 = vunpack.c.l.b16 %v2670
    %v3925 = vunpack.c.h.b16 %v2670
    %v3926 = vunpack.c.l.b16 %v2671
    %v3927 = vunpack.c.h.b16 %v2671
    %v3928 = vunpack.c.l.b16 %v2672
    %v3929 = vunpack.c.h.b16 %v2672
    %v3930 = vunpack.c.l.b16 %v2673
    %v3931 = vunpack.c.h.b16 %v2673
    %v3932 = vunpack.c.l.b16 %v2674
    %v3933 = vunpack.c.h.b16 %v2674
    %v3934 = vunpack.c.l.b16 %v2675
    %v3935 = vunpack.c.h.b16 %v2675
    %v3936 = vunpack.c.l.b16 %v2676
    %v3937 = vunpack.c.h.b16 %v2676
    %v3938 = vunpack.c.l.b16 %v2677
    %v3939 = vunpack.c.h.b16 %v2677
    %v3940 = vunpack.c.l.b16 %v2678
    %v3941 = vunpack.c.h.b16 %v2678
    %v3942 = vunpack.c.l.b16 %v2679
    %v3943 = vunpack.c.h.b16 %v2679
    %v3944 = vunpack.c.l.b16 %v2680
    %v3945 = vunpack.c.h.b16 %v2680
    %v3946 = vunpack.c.l.b16 %v2681
    %v3947 = vunpack.c.h.b16 %v2681
    %v3948 = vunpack.c.l.b16 %v2682
    %v3949 = vunpack.c.h.b16 %v2682
    %v3950 = vunpack.c.l.b16 %v2683
    %v3951 = vunpack.c.h.b16 %v2683
    %v3952 = vunpack.c.l.b16 %v2684
    %v3953 = vunpack.c.h.b16 %v2684
    %v3954 = vunpack.c.l.b16 %v2685
    %v3955 = vunpack.c.h.b16 %v2685
    %v3956 = vunpack.c.l.b16 %v2686
    %v3957 = vunpack.c.h.b16 %v2686
    %v3958 = vunpack.c.l.b16 %v2687
    %v3959 = vunpack.c.h.b16 %v2687
    %v3960 = vunpack.c.l.b16 %v2688
    %v3961 = vunpack.c.h.b16 %v2688
    %v3962 = vunpack.c.l.b16 %v2689
    %v3963 = vunpack.c.h.b16 %v2689
    %v3964 = vunpack.c.l.b16 %v2690
    %v3965 = vunpack.c.h.b16 %v2690
    %v3966 = vunpack.c.l.b16 %v2691
    %v3967 = vunpack.c.h.b16 %v2691
    %v3968 = vunpack.c.l.b16 %v2692
    %v3969 = vunpack.c.h.b16 %v2692
    %v3970 = vunpack.c.l.b16 %v2693
    %v3971 = vunpack.c.h.b16 %v2693
    %v3972 = vunpack.c.l.b16 %v2694
    %v3973 = vunpack.c.h.b16 %v2694
    %v3974 = vunpack.c.l.b16 %v2695
    %v3975 = vunpack.c.h.b16 %v2695
    %v3976 = vunpack.c.l.b16 %v2696
    %v3977 = vunpack.c.h.b16 %v2696
    %v3978 = vunpack.c.l.b16 %v2697
    %v3979 = vunpack.c.h.b16 %v2697
    %v3980 = vunpack.c.l.b16 %v2698
    %v3981 = vunpack.c.h.b16 %v2698
    %v3982 = vunpack.c.l.b16 %v2699
    %v3983 = vunpack.c.h.b16 %v2699
    %v3984 = vunpack.c.l.b16 %v2700
    %v3985 = vunpack.c.h.b16 %v2700
    %v3986 = vunpack.c.l.b16 %v2701
    %v3987 = vunpack.c.h.b16 %v2701
    %v3988 = vunpack.c.l.b16 %v2702
    %v3989 = vunpack.c.h.b16 %v2702
    %v3990 = vunpack.c.l.b16 %v2703
    %v3991 = vunpack.c.h.b16 %v2703
    %v3992 = vunpack.c.l.b16 %v2704
    %v3993 = vunpack.c.h.b16 %v2704
    %v3994 = vunpack.c.l.b16 %v2705
    %v3995 = vunpack.c.h.b16 %v2705
    %v3996 = vunpack.c.l.b16 %v2706
    %v3997 = vunpack.c.h.b16 %v2706
    %v3998 = vunpack.c.l.b16 %v2707
    %v3999 = vunpack.c.h.b16 %v2707
    %v4000 = vunpack.c.l.b16 %v2708
    %v4001 = vunpack.c.h.b16 %v2708
    %v4002 = vunpack.c.l.b16 %v2709
    %v4003 = vunpack.c.h.b16 %v2709
    %v4004 = vunpack.c.l.b16 %v2710
    %v4005 = vunpack.c.h.b16 %v2710
    %v4006 = vunpack.c.l.b16 %v2711
    %v4007 = vunpack.c.h.b16 %v2711
    %v4008 = vunpack.c.l.b16 %v2712
    %v4009 = vunpack.c.h.b16 %v2712
    %v4010 = vunpack.c.l.b16 %v2713
    %v4011 = vunpack.c.h.b16 %v2713
    %v4012 = vunpack.c.l.b16 %v2714
    %v4013 = vunpack.c.h.b16 %v2714
    %v4014 = vunpack.c.l.b16 %v2715
    %v4015 = vunpack.c.h.b16 %v2715
    %v4016 = vunpack.c.l.b16 %v2716
    %v4017 = vunpack.c.h.b16 %v2716
    %v4018 = vunpack.c.l.b16 %v2717
    %v4019 = vunpack.c.h.b16 %v2717
    %v4020 = vunpack.c.l.b16 %v2718
    %v4021 = vunpack.c.h.b16 %v2718
    %v4022 = vunpack.c.l.b16 %v2719
    %v4023 = vunpack.c.h.b16 %v2719
    %v4024 = vunpack.c.l.b16 %v2720
    %v4025 = vunpack.c.h.b16 %v2720
    %v4026 = vunpack.c.l.b16 %v2721
    %v4027 = vunpack.c.h.b16 %v2721
    %v4028 = vunpack.c.l.b16 %v2722
    %v4029 = vunpack.c.h.b16 %v2722
    %v4030 = vunpack.c.l.b16 %v2723
    %v4031 = vunpack.c.h.b16 %v2723
    %v4032 = vunpack.c.l.b16 %v2724
    %v4033 = vunpack.c.h.b16 %v2724
    %v4034 = vunpack.c.l.b16 %v2725
    %v4035 = vunpack.c.h.b16 %v2725
    %v4036 = vunpack.c.l.b16 %v2726
    %v4037 = vunpack.c.h.b16 %v2726
    %v4038 = vunpack.c.l.b16 %v2727
    %v4039 = vunpack.c.h.b16 %v2727
    %v4040 = vunpack.c.l.b16 %v2728
    %v4041 = vunpack.c.h.b16 %v2728
    %v4042 = vunpack.c.l.b16 %v2729
    %v4043 = vunpack.c.h.b16 %v2729
    %v4044 = vunpack.c.l.b16 %v2730
    %v4045 = vunpack.c.h.b16 %v2730
    %v4046 = vunpack.c.l.b16 %v2731
    %v4047 = vunpack.c.h.b16 %v2731
    %v4048 = vunpack.c.l.b16 %v2732
    %v4049 = vunpack.c.h.b16 %v2732
    %v4050 = vunpack.c.l.b16 %v2733
    %v4051 = vunpack.c.h.b16 %v2733
    %v4052 = vunpack.c.l.b16 %v2734
    %v4053 = vunpack.c.h.b16 %v2734
    %v4054 = vunpack.c.l.b16 %v2735
    %v4055 = vunpack.c.h.b16 %v2735
    %v4056 = vpack.c.b16 %v3804, %v3800
    %v4057 = vpack.c.b16 %v3805, %v3801
    %v4058 = vpack.c.b16 %v3806, %v3802
    %v4059 = vpack.c.b16 %v3807, %v3803
    %v4060 = vpack.c.b16 %v3812, %v3808
    %v4061 = vpack.c.b16 %v3813, %v3809
    %v4062 = vpack.c.b16 %v3814, %v3810
    %v4063 = vpack.c.b16 %v3815, %v3811
    %v4064 = vpack.c.b16 %v3820, %v3816
    %v4065 = vpack.c.b16 %v3821, %v3817
    %v4066 = vpack.c.b16 %v3822, %v3818
    %v4067 = vpack.c.b16 %v3823, %v3819
    %v4068 = vpack.c.b16 %v3828, %v3824
    %v4069 = vpack.c.b16 %v3829, %v3825
    %v4070 = vpack.c.b16 %v3830, %v3826
    %v4071 = vpack.c.b16 %v3831, %v3827
    %v4072 = vpack.c.b16 %v3836, %v3832
    %v4073 = vpack.c.b16 %v3837, %v3833
    %v4074 = vpack.c.b16 %v3838, %v3834
    %v4075 = vpack.c.b16 %v3839, %v3835
    %v4076 = vpack.c.b16 %v3844, %v3840
    %v4077 = vpack.c.b16 %v3845, %v3841
    %v4078 = vpack.c.b16 %v3846, %v3842
    %v4079 = vpack.c.b16 %v3847, %v3843
    %v4080 = vpack.c.b16 %v3852, %v3848
    %v4081 = vpack.c.b16 %v3853, %v3849
    %v4082 = vpack.c.b16 %v3854, %v3850
    %v4083 = vpack.c.b16 %v3855, %v3851
    %v4084 = vpack.c.b16 %v3860, %v3856
    %v4085 = vpack.c.b16 %v3861, %v3857
    %v4086 = vpack.c.b16 %v3862, %v3858
    %v4087 = vpack.c.b16 %v3863, %v3859
    %v4088 = vpack.c.b16 %v3868, %v3864
    %v4089 = vpack.c.b16 %v3869, %v3865
    %v4090 = vpack.c.b16 %v3870, %v3866
    %v4091 = vpack.c.b16 %v3871, %v3867
    %v4092 = vpack.c.b16 %v3876, %v3872
    %v4093 = vpack.c.b16 %v3877, %v3873
    %v4094 = vpack.c.b16 %v3878, %v3874
    %v4095 = vpack.c.b16 %v3879, %v3875
    %v4096 = vpack.c.b16 %v3884, %v3880
    %v4097 = vpack.c.b16 %v3885, %v3881
    %v4098 = vpack.c.b16 %v3886, %v3882
    %v4099 = vpack.c.b16 %v3887, %v3883
    %v4100 = vpack.c.b16 %v3892, %v3888
    %v4101 = vpack.c.b16 %v3893, %v3889
    %v4102 = vpack.c.b16 %v3894, %v3890
    %v4103 = vpack.c.b16 %v3895, %v3891
    %v4104 = vpack.c.b16 %v3900, %v3896
    %v4105 = vpack.c.b16 %v3901, %v3897
    %v4106 = vpack.c.b16 %v3902, %v3898
    %v4107 = vpack.c.b16 %v3903, %v3899
    %v4108 = vpack.c.b16 %v3908, %v3904
    %v4109 = vpack.c.b16 %v3909, %v3905
    %v4110 = vpack.c.b16 %v3910, %v3906
    %v4111 = vpack.c.b16 %v3911, %v3907
    %v4112 = vpack.c.b16 %v3916, %v3912
    %v4113 = vpack.c.b16 %v3917, %v3913
    %v4114 = vpack.c.b16 %v3918, %v3914
    %v4115 = vpack.c.b16 %v3919, %v3915
    %v4116 = vpack.c.b16 %v3924, %v3920
    %v4117 = vpack.c.b16 %v3925, %v3921
    %v4118 = vpack.c.b16 %v3926, %v3922
    %v4119 = vpack.c.b16 %v3927, %v3923
    %v4120 = vpack.c.b16 %v3932, %v3928
    %v4121 = vpack.c.b16 %v3933, %v3929
    %v4122 = vpack.c.b16 %v3934, %v3930
    %v4123 = vpack.c.b16 %v3935, %v3931
    %v4124 = vpack.c.b16 %v3940, %v3936
    %v4125 = vpack.c.b16 %v3941, %v3937
    %v4126 = vpack.c.b16 %v3942, %v3938
    %v4127 = vpack.c.b16 %v3943, %v3939
    %v4128 = vpack.c.b16 %v3948, %v3944
    %v4129 = vpack.c.b16 %v3949, %v3945
    %v4130 = vpack.c.b16 %v3950, %v3946
    %v4131 = vpack.c.b16 %v3951, %v3947
    %v4132 = vpack.c.b16 %v3956, %v3952
    %v4133 = vpack.c.b16 %v3957, %v3953
    %v4134 = vpack.c.b16 %v3958, %v3954
    %v4135 = vpack.c.b16 %v3959, %v3955
    %v4136 = vpack.c.b16 %v3964, %v3960
    %v4137 = vpack.c.b16 %v3965, %v3961
    %v4138 = vpack.c.b16 %v3966, %v3962
    %v4139 = vpack.c.b16 %v3967, %v3963
    %v4140 = vpack.c.b16 %v3972, %v3968
    %v4141 = vpack.c.b16 %v3973, %v3969
    %v4142 = vpack.c.b16 %v3974, %v3970
    %v4143 = vpack.c.b16 %v3975, %v3971
    %v4144 = vpack.c.b16 %v3980, %v3976
    %v4145 = vpack.c.b16 %v3981, %v3977
    %v4146 = vpack.c.b16 %v3982, %v3978
    %v4147 = vpack.c.b16 %v3983, %v3979
    %v4148 = vpack.c.b16 %v3988, %v3984
    %v4149 = vpack.c.b16 %v3989, %v3985
    %v4150 = vpack.c.b16 %v3990, %v3986
    %v4151 = vpack.c.b16 %v3991, %v3987
    %v4152 = vpack.c.b16 %v3996, %v3992
    %v4153 = vpack.c.b16 %v3997, %v3993
    %v4154 = vpack.c.b16 %v3998, %v3994
    %v4155 = vpack.c.b16 %v3999, %v3995
    %v4156 = vpack.c.b16 %v4004, %v4000
    %v4157 = vpack.c.b16 %v4005, %v4001
    %v4158 = vpack.c.b16 %v4006, %v4002
    %v4159 = vpack.c.b16 %v4007, %v4003
    %v4160 = vpack.c.b16 %v4012, %v4008
    %v4161 = vpack.c.b16 %v4013, %v4009
    %v4162 = vpack.c.b16 %v4014, %v4010
    %v4163 = vpack.c.b16 %v4015, %v4011
    %v4164 = vpack.c.b16 %v4020, %v4016
    %v4165 = vpack.c.b16 %v4021, %v4017
    %v4166 = vpack.c.b16 %v4022, %v4018
    %v4167 = vpack.c.b16 %v4023, %v4019
    %v4168 = vpack.c.b16 %v4028, %v4024
    %v4169 = vpack.c.b16 %v4029, %v4025
    %v4170 = vpack.c.b16 %v4030, %v4026
    %v4171 = vpack.c.b16 %v4031, %v4027
    %v4172 = vpack.c.b16 %v4036, %v4032
    %v4173 = vpack.c.b16 %v4037, %v4033
    %v4174 = vpack.c.b16 %v4038, %v4034
    %v4175 = vpack.c.b16 %v4039, %v4035
    %v4176 = vpack.c.b16 %v4044, %v4040
    %v4177 = vpack.c.b16 %v4045, %v4041
    %v4178 = vpack.c.b16 %v4046, %v4042
    %v4179 = vpack.c.b16 %v4047, %v4043
    %v4180 = vpack.c.b16 %v4052, %v4048
    %v4181 = vpack.c.b16 %v4053, %v4049
    %v4182 = vpack.c.b16 %v4054, %v4050
    %v4183 = vpack.c.b16 %v4055, %v4051
    %4312 = vmatprep.subr.bf16.mxu0 %v4057
    %4313 = vmatpush1.bf16.msra.mxu0 %v4056
    %4314 = vmatprep.subr.bf16.mxu0 %v4061
    %4315 = vmatpush1.bf16.msra.mxu0 %v4060
    %4316 = vmatprep.subr.bf16.mxu0 %v4065
    %4317 = vmatpush1.bf16.msra.mxu0 %v4064
    %4318 = vmatprep.subr.bf16.mxu0 %v4069
    %4319 = vmatpush1.bf16.msra.mxu0 %v4068
    %4320 = vmatprep.subr.bf16.mxu0 %v4073
    %4321 = vmatpush1.bf16.msra.mxu0 %v4072
    %4322 = vmatprep.subr.bf16.mxu0 %v4077
    %4323 = vmatpush1.bf16.msra.mxu0 %v4076
    %4324 = vmatprep.subr.bf16.mxu0 %v4081
    %4325 = vmatpush1.bf16.msra.mxu0 %v4080
    %4326 = vmatprep.subr.bf16.mxu0 %v4085
    %4327 = vmatpush1.bf16.msra.mxu0 %v4084
    %4328 = vmatprep.subr.bf16.mxu0 %v4089
    %4329 = vmatpush1.bf16.msra.mxu0 %v4088
    %4330 = vmatprep.subr.bf16.mxu0 %v4093
    %4331 = vmatpush1.bf16.msra.mxu0 %v4092
    %4332 = vmatprep.subr.bf16.mxu0 %v4097
    %4333 = vmatpush1.bf16.msra.mxu0 %v4096
    %4334 = vmatprep.subr.bf16.mxu0 %v4101
    %4335 = vmatpush1.bf16.msra.mxu0 %v4100
    %4336 = vmatprep.subr.bf16.mxu0 %v4105
    %4337 = vmatpush1.bf16.msra.mxu0 %v4104
    %4338 = vmatprep.subr.bf16.mxu0 %v4109
    %4339 = vmatpush1.bf16.msra.mxu0 %v4108
    %4340 = vmatprep.subr.bf16.mxu0 %v4113
    %4341 = vmatpush1.bf16.msra.mxu0 %v4112
    %4342 = vmatprep.subr.bf16.mxu0 %v4117
    %4343 = vmatpush1.bf16.msra.mxu0 %v4116
    %4344 = vmatprep.mubr.bf16.mxu0 %v2605
    %4345 = vmatmul.mubr.bf16.gmra.mrb[0].mxu0 %v2604
    %v4346 = vpop.f32.mrb[0].mxu0
    %v4347 = vadd.f32 %v3584, %v4346
    %v4348 = vpop.f32.mrb[0].mxu0
    %v4349 = vadd.f32 %v3586, %v4348
    %v4350 = vpop.f32.mrb[0].mxu0
    %v4351 = vpop.f32.mrb[0].mxu0
    %4352 = vdwg.mxu0
    %4353 = vmatprep.subr.bf16.mxu0 %v4121
    %4354 = vmatpush1.bf16.msra.mxu0 %v4120
    %4355 = vmatprep.subr.bf16.mxu0 %v4125
    %4356 = vmatpush1.bf16.msra.mxu0 %v4124
    %4357 = vmatprep.subr.bf16.mxu0 %v4129
    %4358 = vmatpush1.bf16.msra.mxu0 %v4128
    %4359 = vmatprep.subr.bf16.mxu0 %v4133
    %4360 = vmatpush1.bf16.msra.mxu0 %v4132
    %4361 = vmatprep.subr.bf16.mxu0 %v4137
    %4362 = vmatpush1.bf16.msra.mxu0 %v4136
    %4363 = vmatprep.subr.bf16.mxu0 %v4141
    %4364 = vmatpush1.bf16.msra.mxu0 %v4140
    %4365 = vmatprep.subr.bf16.mxu0 %v4145
    %4366 = vmatpush1.bf16.msra.mxu0 %v4144
    %4367 = vmatprep.subr.bf16.mxu0 %v4149
    %4368 = vmatpush1.bf16.msra.mxu0 %v4148
    %4369 = vmatprep.subr.bf16.mxu0 %v4153
    %4370 = vmatpush1.bf16.msra.mxu0 %v4152
    %4371 = vmatprep.subr.bf16.mxu0 %v4157
    %4372 = vmatpush1.bf16.msra.mxu0 %v4156
    %4373 = vmatprep.subr.bf16.mxu0 %v4161
    %4374 = vmatpush1.bf16.msra.mxu0 %v4160
    %4375 = vmatprep.subr.bf16.mxu0 %v4165
    %4376 = vmatpush1.bf16.msra.mxu0 %v4164
    %4377 = vmatprep.subr.bf16.mxu0 %v4169
    %4378 = vmatpush1.bf16.msra.mxu0 %v4168
    %4379 = vmatprep.subr.bf16.mxu0 %v4173
    %4380 = vmatpush1.bf16.msra.mxu0 %v4172
    %4381 = vmatprep.subr.bf16.mxu0 %v4177
    %4382 = vmatpush1.bf16.msra.mxu0 %v4176
    %4383 = vmatprep.subr.bf16.mxu0 %v4181
    %4384 = vmatpush1.bf16.msra.mxu0 %v4180
    %4385 = vmatprep.mubr.bf16.mxu0 %v2607
    %4386 = vmatmul.mubr.bf16.gmra.mrb[0].mxu0 %v2606
    %v4387 = vpop.f32.mrb[0].mxu0
    %v4388 = vadd.f32 %v4347, %v4387
    %v4389 = vpop.f32.mrb[0].mxu0
    %v4390 = vadd.f32 %v4349, %v4389
    %v4391 = vpop.f32.mrb[0].mxu0
    %v4392 = vpop.f32.mrb[0].mxu0
    %4393 = vdwg.mxu0
    %4394 = vmatprep.subr.bf16.mxu0 %v4059
    %4395 = vmatpush1.bf16.msra.mxu0 %v4058
    %4396 = vmatprep.subr.bf16.mxu0 %v4063
    %4397 = vmatpush1.bf16.msra.mxu0 %v4062
    %4398 = vmatprep.subr.bf16.mxu0 %v4067
    %4399 = vmatpush1.bf16.msra.mxu0 %v4066
    %4400 = vmatprep.subr.bf16.mxu0 %v4071
    %4401 = vmatpush1.bf16.msra.mxu0 %v4070
    %4402 = vmatprep.subr.bf16.mxu0 %v4075
    %4403 = vmatpush1.bf16.msra.mxu0 %v4074
    %4404 = vmatprep.subr.bf16.mxu0 %v4079
    %4405 = vmatpush1.bf16.msra.mxu0 %v4078
    %4406 = vmatprep.subr.bf16.mxu0 %v4083
    %4407 = vmatpush1.bf16.msra.mxu0 %v4082
    %4408 = vmatprep.subr.bf16.mxu0 %v4087
    %4409 = vmatpush1.bf16.msra.mxu0 %v4086
    %4410 = vmatprep.subr.bf16.mxu0 %v4091
    %4411 = vmatpush1.bf16.msra.mxu0 %v4090
    %4412 = vmatprep.subr.bf16.mxu0 %v4095
    %4413 = vmatpush1.bf16.msra.mxu0 %v4094
    %4414 = vmatprep.subr.bf16.mxu0 %v4099
    %4415 = vmatpush1.bf16.msra.mxu0 %v4098
    %4416 = vmatprep.subr.bf16.mxu0 %v4103
    %4417 = vmatpush1.bf16.msra.mxu0 %v4102
    %4418 = vmatprep.subr.bf16.mxu0 %v4107
    %4419 = vmatpush1.bf16.msra.mxu0 %v4106
    %4420 = vmatprep.subr.bf16.mxu0 %v4111
    %4421 = vmatpush1.bf16.msra.mxu0 %v4110
    %4422 = vmatprep.subr.bf16.mxu0 %v4115
    %4423 = vmatpush1.bf16.msra.mxu0 %v4114
    %4424 = vmatprep.subr.bf16.mxu0 %v4119
    %4425 = vmatpush1.bf16.msra.mxu0 %v4118
    %4426 = vmatprep.mubr.bf16.mxu0 %v2605
    %4427 = vmatmul.mubr.bf16.gmra.mrb[0].mxu0 %v2604
    %v4428 = vpop.f32.mrb[0].mxu0
    %v4429 = vadd.f32 %v3666, %v4428
    %v4430 = vpop.f32.mrb[0].mxu0
    %v4431 = vadd.f32 %v3668, %v4430
    %v4432 = vpop.f32.mrb[0].mxu0
    %v4433 = vpop.f32.mrb[0].mxu0
    %4434 = vdwg.mxu0
    %4435 = vmatprep.subr.bf16.mxu0 %v4123
    %4436 = vmatpush1.bf16.msra.mxu0 %v4122
    %4437 = vmatprep.subr.bf16.mxu0 %v4127
    %4438 = vmatpush1.bf16.msra.mxu0 %v4126
    %4439 = vmatprep.subr.bf16.mxu0 %v4131
    %4440 = vmatpush1.bf16.msra.mxu0 %v4130
    %4441 = vmatprep.subr.bf16.mxu0 %v4135
    %4442 = vmatpush1.bf16.msra.mxu0 %v4134
    %4443 = vmatprep.subr.bf16.mxu0 %v4139
    %4444 = vmatpush1.bf16.msra.mxu0 %v4138
    %4445 = vmatprep.subr.bf16.mxu0 %v4143
    %4446 = vmatpush1.bf16.msra.mxu0 %v4142
    %4447 = vmatprep.subr.bf16.mxu0 %v4147
    %4448 = vmatpush1.bf16.msra.mxu0 %v4146
    %4449 = vmatprep.subr.bf16.mxu0 %v4151
    %4450 = vmatpush1.bf16.msra.mxu0 %v4150
    %4451 = vmatprep.subr.bf16.mxu0 %v4155
    %4452 = vmatpush1.bf16.msra.mxu0 %v4154
    %4453 = vmatprep.subr.bf16.mxu0 %v4159
    %4454 = vmatpush1.bf16.msra.mxu0 %v4158
    %4455 = vmatprep.subr.bf16.mxu0 %v4163
    %4456 = vmatpush1.bf16.msra.mxu0 %v4162
    %4457 = vmatprep.subr.bf16.mxu0 %v4167
    %4458 = vmatpush1.bf16.msra.mxu0 %v4166
    %4459 = vmatprep.subr.bf16.mxu0 %v4171
    %4460 = vmatpush1.bf16.msra.mxu0 %v4170
    %4461 = vmatprep.subr.bf16.mxu0 %v4175
    %4462 = vmatpush1.bf16.msra.mxu0 %v4174
    %4463 = vmatprep.subr.bf16.mxu0 %v4179
    %4464 = vmatpush1.bf16.msra.mxu0 %v4178
    %4465 = vmatprep.subr.bf16.mxu0 %v4183
    %4466 = vmatpush1.bf16.msra.mxu0 %v4182
    %4467 = vmatprep.mubr.bf16.mxu0 %v2607
    %4468 = vmatmul.mubr.bf16.gmra.mrb[0].mxu0 %v2606
    %v4469 = vpop.f32.mrb[0].mxu0
    %v4470 = vadd.f32 %v4429, %v4469
    %v4471 = vpop.f32.mrb[0].mxu0
    %v4472 = vadd.f32 %v4431, %v4471
    %v4473 = vpop.f32.mrb[0].mxu0
    %v4474 = vpop.f32.mrb[0].mxu0
    %4475 = vdwg.mxu0
    %v4476 = vld [vmem:[%s12] sm:$0xf]
    %v4478 = vlaneseq
    %v4479 = vshrl.u32 %v4478, 7
    %v4480 = vsub.s32 0, %v4479
    %v4481 = vrot.slane %v4476, %v4480
    %v4482 = vlaneseq
    %v4483 = vshrl.u32 %v4482, 7
    %v4484 = vsub.s32 1, %v4483
    %v4485 = vrot.slane %v4476, %v4484
    %v4486 = vlaneseq
    %v4487 = vshrl.u32 %v4486, 7
    %v4488 = vsub.s32 2, %v4487
    %v4489 = vrot.slane %v4476, %v4488
    %v4490 = vlaneseq
    %v4491 = vshrl.u32 %v4490, 7
    %v4492 = vsub.s32 3, %v4491
    %v4493 = vrot.slane %v4476, %v4492
    %v4498 = vadd.f32 %v4388, %v4481
    %v4499 = vadd.f32 %v4390, %v4485
    %v4500 = vadd.f32 %v4470, %v4489
    %v4501 = vadd.f32 %v4472, %v4493
    %v4502 = vmax.f32 %v4498, 0.0
    %v4503 = vmax.f32 %v4499, 0.0
    %v4504 = vmax.f32 %v4500, 0.0
    %v4505 = vmax.f32 %v4501, 0.0
    %v4506 = vpack.c.bf16 %v4502, %v4502
    %v4507 = vpack.c.bf16 %v4503, %v4503
    %v4508 = vpack.c.bf16 %v4504, %v4504
    %v4509 = vpack.c.bf16 %v4505, %v4505
    %v4510 = vld [vmem:[#allocation16] sm:$0xf]
    %v4511 = vld [vmem:[#allocation16 + $0x4] sm:$0xf]
    %v4512 = vld [vmem:[#allocation16 + $0x8] sm:$0xf]
    %v4513 = vld [vmem:[#allocation16 + $0xc] sm:$0xf]
    %v4514 = vld [vmem:[#allocation16 + $0x10] sm:$0xf]
    %v4515 = vld [vmem:[#allocation16 + $0x14] sm:$0xf]
    %v4516 = vld [vmem:[#allocation16 + $0x18] sm:$0xf]
    %v4517 = vld [vmem:[#allocation16 + $0x1c] sm:$0xf]
    %v4518 = vld [vmem:[#allocation16 + $0x20] sm:$0xf]
    %v4519 = vld [vmem:[#allocation16 + $0x24] sm:$0xf]
    %v4520 = vld [vmem:[#allocation16 + $0x28] sm:$0xf]
    %v4521 = vld [vmem:[#allocation16 + $0x2c] sm:$0xf]
    %v4522 = vld [vmem:[#allocation16 + $0x30] sm:$0xf]
    %v4523 = vld [vmem:[#allocation16 + $0x34] sm:$0xf]
    %v4524 = vld [vmem:[#allocation16 + $0x38] sm:$0xf]
    %v4525 = vld [vmem:[#allocation16 + $0x3c] sm:$0xf]
    %v4526 = vld [vmem:[#allocation16 + $0x40] sm:$0xf]
    %v4527 = vld [vmem:[#allocation16 + $0x44] sm:$0xf]
    %v4528 = vld [vmem:[#allocation16 + $0x48] sm:$0xf]
    %v4529 = vld [vmem:[#allocation16 + $0x4c] sm:$0xf]
    %v4530 = vld [vmem:[#allocation16 + $0x50] sm:$0xf]
    %v4531 = vld [vmem:[#allocation16 + $0x54] sm:$0xf]
    %v4532 = vld [vmem:[#allocation16 + $0x58] sm:$0xf]
    %v4533 = vld [vmem:[#allocation16 + $0x5c] sm:$0xf]
    %v4534 = vld [vmem:[#allocation16 + $0x60] sm:$0xf]
    %v4535 = vld [vmem:[#allocation16 + $0x64] sm:$0xf]
    %v4536 = vld [vmem:[#allocation16 + $0x68] sm:$0xf]
    %v4537 = vld [vmem:[#allocation16 + $0x6c] sm:$0xf]
    %v4538 = vld [vmem:[#allocation16 + $0x70] sm:$0xf]
    %v4539 = vld [vmem:[#allocation16 + $0x74] sm:$0xf]
    %v4540 = vld [vmem:[#allocation16 + $0x78] sm:$0xf]
    %v4541 = vld [vmem:[#allocation16 + $0x7c] sm:$0xf]
    %v4542 = vld [vmem:[#allocation16 + $0x80] sm:$0xf]
    %v4543 = vld [vmem:[#allocation16 + $0x84] sm:$0xf]
    %v4544 = vld [vmem:[#allocation16 + $0x88] sm:$0xf]
    %v4545 = vld [vmem:[#allocation16 + $0x8c] sm:$0xf]
    %v4546 = vld [vmem:[#allocation16 + $0x90] sm:$0xf]
    %v4547 = vld [vmem:[#allocation16 + $0x94] sm:$0xf]
    %v4548 = vld [vmem:[#allocation16 + $0x98] sm:$0xf]
    %v4549 = vld [vmem:[#allocation16 + $0x9c] sm:$0xf]
    %v4550 = vld [vmem:[#allocation16 + $0xa0] sm:$0xf]
    %v4551 = vld [vmem:[#allocation16 + $0xa4] sm:$0xf]
    %v4552 = vld [vmem:[#allocation16 + $0xa8] sm:$0xf]
    %v4553 = vld [vmem:[#allocation16 + $0xac] sm:$0xf]
    %v4554 = vld [vmem:[#allocation16 + $0xb0] sm:$0xf]
    %v4555 = vld [vmem:[#allocation16 + $0xb4] sm:$0xf]
    %v4556 = vld [vmem:[#allocation16 + $0xb8] sm:$0xf]
    %v4557 = vld [vmem:[#allocation16 + $0xbc] sm:$0xf]
    %v4558 = vld [vmem:[#allocation16 + $0xc0] sm:$0xf]
    %v4559 = vld [vmem:[#allocation16 + $0xc4] sm:$0xf]
    %v4560 = vld [vmem:[#allocation16 + $0xc8] sm:$0xf]
    %v4561 = vld [vmem:[#allocation16 + $0xcc] sm:$0xf]
    %v4562 = vld [vmem:[#allocation16 + $0xd0] sm:$0xf]
    %v4563 = vld [vmem:[#allocation16 + $0xd4] sm:$0xf]
    %v4564 = vld [vmem:[#allocation16 + $0xd8] sm:$0xf]
    %v4565 = vld [vmem:[#allocation16 + $0xdc] sm:$0xf]
    %v4566 = vld [vmem:[#allocation16 + $0xe0] sm:$0xf]
    %v4567 = vld [vmem:[#allocation16 + $0xe4] sm:$0xf]
    %v4568 = vld [vmem:[#allocation16 + $0xe8] sm:$0xf]
    %v4569 = vld [vmem:[#allocation16 + $0xec] sm:$0xf]
    %v4570 = vld [vmem:[#allocation16 + $0xf0] sm:$0xf]
    %v4571 = vld [vmem:[#allocation16 + $0xf4] sm:$0xf]
    %v4572 = vld [vmem:[#allocation16 + $0xf8] sm:$0xf]
    %v4573 = vld [vmem:[#allocation16 + $0xfc] sm:$0xf]
    %v4574 = vld [vmem:[%s14] sm:$0x1]
    %v4576 = vlaneseq
    %v4577 = vshrl.u32 %v4576, 7
    %v4578 = vsub.s32 0, %v4577
    %v4579 = vrot.slane %v4574, %v4578
    %v4645 = vunpack.c.l.b16 %v4510
    %v4646 = vunpack.c.l.b16 %v4511
    %v4647 = vunpack.c.l.b16 %v4512
    %v4648 = vunpack.c.l.b16 %v4513
    %v4649 = vunpack.c.l.b16 %v4514
    %v4650 = vunpack.c.l.b16 %v4515
    %v4651 = vunpack.c.l.b16 %v4516
    %v4652 = vunpack.c.l.b16 %v4517
    %v4653 = vunpack.c.l.b16 %v4518
    %v4654 = vunpack.c.l.b16 %v4519
    %v4655 = vunpack.c.l.b16 %v4520
    %v4656 = vunpack.c.l.b16 %v4521
    %v4657 = vunpack.c.l.b16 %v4522
    %v4658 = vunpack.c.l.b16 %v4523
    %v4659 = vunpack.c.l.b16 %v4524
    %v4660 = vunpack.c.l.b16 %v4525
    %v4661 = vunpack.c.l.b16 %v4526
    %v4662 = vunpack.c.l.b16 %v4527
    %v4663 = vunpack.c.l.b16 %v4528
    %v4664 = vunpack.c.l.b16 %v4529
    %v4665 = vunpack.c.l.b16 %v4530
    %v4666 = vunpack.c.l.b16 %v4531
    %v4667 = vunpack.c.l.b16 %v4532
    %v4668 = vunpack.c.l.b16 %v4533
    %v4669 = vunpack.c.l.b16 %v4534
    %v4670 = vunpack.c.l.b16 %v4535
    %v4671 = vunpack.c.l.b16 %v4536
    %v4672 = vunpack.c.l.b16 %v4537
    %v4673 = vunpack.c.l.b16 %v4538
    %v4674 = vunpack.c.l.b16 %v4539
    %v4675 = vunpack.c.l.b16 %v4540
    %v4676 = vunpack.c.l.b16 %v4541
    %v4677 = vunpack.c.l.b16 %v4542
    %v4678 = vunpack.c.l.b16 %v4543
    %v4679 = vunpack.c.l.b16 %v4544
    %v4680 = vunpack.c.l.b16 %v4545
    %v4681 = vunpack.c.l.b16 %v4546
    %v4682 = vunpack.c.l.b16 %v4547
    %v4683 = vunpack.c.l.b16 %v4548
    %v4684 = vunpack.c.l.b16 %v4549
    %v4685 = vunpack.c.l.b16 %v4550
    %v4686 = vunpack.c.l.b16 %v4551
    %v4687 = vunpack.c.l.b16 %v4552
    %v4688 = vunpack.c.l.b16 %v4553
    %v4689 = vunpack.c.l.b16 %v4554
    %v4690 = vunpack.c.l.b16 %v4555
    %v4691 = vunpack.c.l.b16 %v4556
    %v4692 = vunpack.c.l.b16 %v4557
    %v4693 = vunpack.c.l.b16 %v4558
    %v4694 = vunpack.c.l.b16 %v4559
    %v4695 = vunpack.c.l.b16 %v4560
    %v4696 = vunpack.c.l.b16 %v4561
    %v4697 = vunpack.c.l.b16 %v4562
    %v4698 = vunpack.c.l.b16 %v4563
    %v4699 = vunpack.c.l.b16 %v4564
    %v4700 = vunpack.c.l.b16 %v4565
    %v4701 = vunpack.c.l.b16 %v4566
    %v4702 = vunpack.c.l.b16 %v4567
    %v4703 = vunpack.c.l.b16 %v4568
    %v4704 = vunpack.c.l.b16 %v4569
    %v4705 = vunpack.c.l.b16 %v4570
    %v4706 = vunpack.c.l.b16 %v4571
    %v4707 = vunpack.c.l.b16 %v4572
    %v4708 = vunpack.c.l.b16 %v4573
    %v4709 = vpack.c.b16 %v4646, %v4645
    %v4710 = vpack.c.b16 %v4648, %v4647
    %v4711 = vpack.c.b16 %v4650, %v4649
    %v4712 = vpack.c.b16 %v4652, %v4651
    %v4713 = vpack.c.b16 %v4654, %v4653
    %v4714 = vpack.c.b16 %v4656, %v4655
    %v4715 = vpack.c.b16 %v4658, %v4657
    %v4716 = vpack.c.b16 %v4660, %v4659
    %v4717 = vpack.c.b16 %v4662, %v4661
    %v4718 = vpack.c.b16 %v4664, %v4663
    %v4719 = vpack.c.b16 %v4666, %v4665
    %v4720 = vpack.c.b16 %v4668, %v4667
    %v4721 = vpack.c.b16 %v4670, %v4669
    %v4722 = vpack.c.b16 %v4672, %v4671
    %v4723 = vpack.c.b16 %v4674, %v4673
    %v4724 = vpack.c.b16 %v4676, %v4675
    %v4725 = vpack.c.b16 %v4678, %v4677
    %v4726 = vpack.c.b16 %v4680, %v4679
    %v4727 = vpack.c.b16 %v4682, %v4681
    %v4728 = vpack.c.b16 %v4684, %v4683
    %v4729 = vpack.c.b16 %v4686, %v4685
    %v4730 = vpack.c.b16 %v4688, %v4687
    %v4731 = vpack.c.b16 %v4690, %v4689
    %v4732 = vpack.c.b16 %v4692, %v4691
    %v4733 = vpack.c.b16 %v4694, %v4693
    %v4734 = vpack.c.b16 %v4696, %v4695
    %v4735 = vpack.c.b16 %v4698, %v4697
    %v4736 = vpack.c.b16 %v4700, %v4699
    %v4737 = vpack.c.b16 %v4702, %v4701
    %v4738 = vpack.c.b16 %v4704, %v4703
    %v4739 = vpack.c.b16 %v4706, %v4705
    %v4740 = vpack.c.b16 %v4708, %v4707
    %4773 = vmatprep.subr.bf16.mxu0 0
    %4774 = vmatpush1.bf16.msra.mxu0 %v4709
    %4775 = vmatprep.subr.bf16.mxu0 0
    %4776 = vmatpush1.bf16.msra.mxu0 %v4710
    %4777 = vmatprep.subr.bf16.mxu0 0
    %4778 = vmatpush1.bf16.msra.mxu0 %v4711
    %4779 = vmatprep.subr.bf16.mxu0 0
    %4780 = vmatpush1.bf16.msra.mxu0 %v4712
    %4781 = vmatprep.subr.bf16.mxu0 0
    %4782 = vmatpush1.bf16.msra.mxu0 %v4713
    %4783 = vmatprep.subr.bf16.mxu0 0
    %4784 = vmatpush1.bf16.msra.mxu0 %v4714
    %4785 = vmatprep.subr.bf16.mxu0 0
    %4786 = vmatpush1.bf16.msra.mxu0 %v4715
    %4787 = vmatprep.subr.bf16.mxu0 0
    %4788 = vmatpush1.bf16.msra.mxu0 %v4716
    %4789 = vmatprep.subr.bf16.mxu0 0
    %4790 = vmatpush1.bf16.msra.mxu0 %v4717
    %4791 = vmatprep.subr.bf16.mxu0 0
    %4792 = vmatpush1.bf16.msra.mxu0 %v4718
    %4793 = vmatprep.subr.bf16.mxu0 0
    %4794 = vmatpush1.bf16.msra.mxu0 %v4719
    %4795 = vmatprep.subr.bf16.mxu0 0
    %4796 = vmatpush1.bf16.msra.mxu0 %v4720
    %4797 = vmatprep.subr.bf16.mxu0 0
    %4798 = vmatpush1.bf16.msra.mxu0 %v4721
    %4799 = vmatprep.subr.bf16.mxu0 0
    %4800 = vmatpush1.bf16.msra.mxu0 %v4722
    %4801 = vmatprep.subr.bf16.mxu0 0
    %4802 = vmatpush1.bf16.msra.mxu0 %v4723
    %4803 = vmatprep.subr.bf16.mxu0 0
    %4804 = vmatpush1.bf16.msra.mxu0 %v4724
    %4805 = vmatprep.mubr.bf16.mxu0 %v4507
    %4806 = vmatmul.mubr.bf16.gmra.mrb[0].mxu0 %v4506
    %v4807 = vpop.f32.mrb[0].mxu0
    %v4808 = vadd.f32 %v4579, %v4807
    %v4809 = vpop.f32.mrb[0].mxu0
    %v4810 = vpop.f32.mrb[0].mxu0
    %v4811 = vpop.f32.mrb[0].mxu0
    %4812 = vdwg.mxu0
    %4813 = vmatprep.subr.bf16.mxu0 0
    %4814 = vmatpush1.bf16.msra.mxu0 %v4725
    %4815 = vmatprep.subr.bf16.mxu0 0
    %4816 = vmatpush1.bf16.msra.mxu0 %v4726
    %4817 = vmatprep.subr.bf16.mxu0 0
    %4818 = vmatpush1.bf16.msra.mxu0 %v4727
    %4819 = vmatprep.subr.bf16.mxu0 0
    %4820 = vmatpush1.bf16.msra.mxu0 %v4728
    %4821 = vmatprep.subr.bf16.mxu0 0
    %4822 = vmatpush1.bf16.msra.mxu0 %v4729
    %4823 = vmatprep.subr.bf16.mxu0 0
    %4824 = vmatpush1.bf16.msra.mxu0 %v4730
    %4825 = vmatprep.subr.bf16.mxu0 0
    %4826 = vmatpush1.bf16.msra.mxu0 %v4731
    %4827 = vmatprep.subr.bf16.mxu0 0
    %4828 = vmatpush1.bf16.msra.mxu0 %v4732
    %4829 = vmatprep.subr.bf16.mxu0 0
    %4830 = vmatpush1.bf16.msra.mxu0 %v4733
    %4831 = vmatprep.subr.bf16.mxu0 0
    %4832 = vmatpush1.bf16.msra.mxu0 %v4734
    %4833 = vmatprep.subr.bf16.mxu0 0
    %4834 = vmatpush1.bf16.msra.mxu0 %v4735
    %4835 = vmatprep.subr.bf16.mxu0 0
    %4836 = vmatpush1.bf16.msra.mxu0 %v4736
    %4837 = vmatprep.subr.bf16.mxu0 0
    %4838 = vmatpush1.bf16.msra.mxu0 %v4737
    %4839 = vmatprep.subr.bf16.mxu0 0
    %4840 = vmatpush1.bf16.msra.mxu0 %v4738
    %4841 = vmatprep.subr.bf16.mxu0 0
    %4842 = vmatpush1.bf16.msra.mxu0 %v4739
    %4843 = vmatprep.subr.bf16.mxu0 0
    %4844 = vmatpush1.bf16.msra.mxu0 %v4740
    %4845 = vmatprep.mubr.bf16.mxu0 %v4509
    %4846 = vmatmul.mubr.bf16.gmra.mrb[0].mxu0 %v4508
    %v4847 = vpop.f32.mrb[0].mxu0
    %v4848 = vadd.f32 %v4808, %v4847
    %v4849 = vpop.f32.mrb[0].mxu0
    %v4850 = vpop.f32.mrb[0].mxu0
    %v4851 = vpop.f32.mrb[0].mxu0
    %4852 = vdwg.mxu0
    %4853 = vst [vmem:[#allocation17] sm:$0xff] %v4848
    // Predicated region
    $region98: #{tpu_custom_call.1} parent=1 // pred_check
      _
    $region99: #{tpu_custom_call.1} parent=1 // pred_check_branch
      %4855 = sbr.rel (0) target = $region101
    $region100: #{tpu_custom_call.1} parent=1 // pred_region
      %s4857 = ssub.s32 128, 128
      %4858 = vsyncadd [#allocation4], %s4857
      %s4860 = sshll.u32 [#allocation17], 4
      %s4861 = int_to_ptr.vmem [resolvable:$true] %s4860
      %4863 = dma.vmem_to_hbm [thread:$0]  %s4861, 128, %s15, [#allocation4]
    $region101: #{tpu_custom_call.1} parent=1 // pred_fallthru
      _
    // Predicated region
    $region102: #{tpu_custom_call.1} parent=1 // pred_check
      _
    $region103: #{tpu_custom_call.1} parent=1 // pred_check_branch
      %4865 = sbr.rel (0) target = $region105
    $region104: #{tpu_custom_call.1} parent=1 // pred_region
      %4866 = dma.done [#allocation4], 128
    $region105: #{tpu_custom_call.1} parent=1 // pred_fallthru
      _
    %4867 = vsyncpa [#allocation3], 1
    %4868 = vsyncpa [#allocation6], 1
    %4869 = vsyncpa [#allocation9], 1
    %4870 = vsyncpa [#allocation12], 1
    %4871 = vsyncpa [#allocation15], 1
    %4872 = vsyncpa [#allocation4], 1

</llo_original>
